<compile_context>
chip_gen: v5e
topology: v5e:2x2
jax: 0.10.0
libtpu: 0.0.40
codegen_flags: <defaults>
</compile_context>

<pallas_src>
import functools

import numpy as np
import jax
import jax.numpy as jnp
from jax.experimental import pallas as pl
from jax.experimental.pallas import tpu as pltpu


# -----------------------------------------------------------------------------
# In-kernel helpers (f32 math)
# -----------------------------------------------------------------------------

def _ln_f32(x, g, b, eps):
    """LayerNorm over the last dim, all in f32. x:[M,D], g/b:[1,D]."""
    mean = jnp.mean(x, axis=-1, keepdims=True)
    var = jnp.mean(jnp.square(x - mean), axis=-1, keepdims=True)
    return (x - mean) * jax.lax.rsqrt(var + eps) * g + b


# -----------------------------------------------------------------------------
# The single fused ViT kernel
# -----------------------------------------------------------------------------

def _vit_kernel(xp_ref, pw_ref, pb_ref, cls_ref, pos_ref, amask_ref,
                ln1_g, ln1_b, qkv_w, qkv_b, proj_w, proj_b,
                ln2_g, ln2_b, fc1_w, fc1_b, fc2_w, fc2_b,
                norm_g, norm_b, head_w, head_b,
                o_ref, xs_ref, *,
                batch, num_patches, n_real, n_pad, depth, num_heads, head_dim, eps):
    D = num_heads * head_dim

    # ---------------- prologue: patch embed + cls/pos/pad assembly (f32) ----------------
    pt = jnp.dot(xp_ref[...], pw_ref[...], preferred_element_type=jnp.float32)
    pt = pt + pb_ref[...]                                   # (B*P, D) f32
    cls_row = cls_ref[...] + pos_ref[0:1, :]                # (1, D) f32
    pos_rest = pos_ref[1:n_real, :]                         # (P, D) f32

    xs_ref[...] = jnp.zeros_like(xs_ref)                    # zero pad rows
    for b in range(batch):
        base = b * n_pad
        xs_ref[base:base + 1, :] = cls_row
        xs_ref[base + 1:base + n_real, :] = (
            pt[b * num_patches:(b + 1) * num_patches, :] + pos_rest)
    x = xs_ref[...]                                         # (B*n_pad, D) f32 residual slab

    amask = amask_ref[...]                                  # (1, M, M) additive mask, f32

    # ---------------- transformer blocks (statically unrolled over depth) ----------------
    for d in range(depth):
        # --- attention branch: LN1 fused into the batch-folded QKV matmul ---
        h = _ln_f32(x, ln1_g[d], ln1_b[d], eps)
        qkv = jnp.dot(h.astype(jnp.bfloat16), qkv_w[d],
                      preferred_element_type=jnp.float32) + qkv_b[d]   # (M, 3D) f32
        qkv_bf = qkv.astype(jnp.bfloat16)                    # cast the slab to bf16 once

        q = jnp.stack([qkv_bf[:, hd * head_dim:(hd + 1) * head_dim]
                       for hd in range(num_heads)], axis=0)             # (H, M, Dh)
        k = jnp.stack([qkv_bf[:, D + hd * head_dim:D + (hd + 1) * head_dim]
                       for hd in range(num_heads)], axis=0)
        v = jnp.stack([qkv_bf[:, 2 * D + hd * head_dim:2 * D + (hd + 1) * head_dim]
                       for hd in range(num_heads)], axis=0)

        # attention scale is pre-folded into the q columns of qkv_w / qkv_b (pack time)
        s = jnp.einsum('hqd,hkd->hqk', q, k,
                       preferred_element_type=jnp.float32) + amask      # (H, M, M) f32
        s = s - jnp.max(s, axis=-1, keepdims=True)
        p = jnp.exp(s)
        # TODO(synk): approx reciprocal (~2^-12 rel. error) vs an exact softmax denominator.
        p = p * pl.reciprocal(jnp.sum(p, axis=-1, keepdims=True), approx=True)
        o = jnp.einsum('hqk,hkd->hqd', p.astype(jnp.bfloat16), v,
                       preferred_element_type=jnp.float32)              # (H, M, Dh) f32

        # concat heads along lanes -> one full-width (M,D)@(D,D) output projection
        attn = jnp.concatenate([o[hd] for hd in range(num_heads)],
                               axis=-1).astype(jnp.bfloat16)            # (M, D) bf16
        x = x + jnp.dot(attn, proj_w[d], preferred_element_type=jnp.float32) + proj_b[d]

        # --- MLP branch: LN2 fused into fc1 ---
        h = _ln_f32(x, ln2_g[d], ln2_b[d], eps)
        h = jnp.dot(h.astype(jnp.bfloat16), fc1_w[d],
                    preferred_element_type=jnp.float32) + fc1_b[d]
        # TODO(synk): timm uses exact (erf) GELU; tanh-approx GELU used for robust lowering.
        h = jax.nn.gelu(h, approximate=True)
        h = jnp.dot(h.astype(jnp.bfloat16), fc2_w[d],
                    preferred_element_type=jnp.float32) + fc2_b[d]
        x = x + h

    # ---------------- epilogue: final LN + masked token mean-pool + head ----------------
    y = _ln_f32(x, norm_g[...], norm_b[...], eps)            # (M, D) f32
    pooled = jnp.concatenate(
        [jnp.sum(y[b * n_pad:b * n_pad + n_real, :], axis=0, keepdims=True)
         for b in range(batch)], axis=0) * (1.0 / n_real)    # (B, D) == feats.mean(dim=1)

    logits = jnp.dot(pooled.astype(jnp.bfloat16), head_w[...],
                     preferred_element_type=jnp.float32) + head_b[...]
    # (B, num_classes) store is lane-sparse (8 lanes) -> a single masked vst; negligible at
    # this size (pad head_w's output dim to 128 and slice outside if reused at scale).
    o_ref[...] = logits


# -----------------------------------------------------------------------------
# Parameters (deterministic synthetic, f32 "PyTorch-like" storage) + packing
# -----------------------------------------------------------------------------

CFG = dict(
    img_size=16,
    patch=4,
    in_chans=3,
    embed_dim=128,    # multiple of 128 -> lane-dense matmul outputs
    depth=2,
    num_heads=4,      # head_dim = 32
    mlp_ratio=4,      # hidden = 512
    num_classes=8,
)


def init_params(key, cfg):
    D = cfg["embed_dim"]
    C = cfg["in_chans"]
    p = cfg["patch"]
    num_patches = (cfg["img_size"] // p) ** 2
    hidden = cfg["mlp_ratio"] * D

    def normal(k, shape, std=0.02):
        return std * jax.random.normal(k, shape, dtype=jnp.float32)

    keys = iter(jax.random.split(key, 8 + cfg["depth"] * 8))
    params = {
        "patch_w": normal(next(keys), (C * p * p, D)),   # conv weight flattened (c,ph,pw) x D
        "patch_b": jnp.zeros((1, D), jnp.float32),
        "cls_token": normal(next(keys), (1, 1, D)),
        "pos_embed": normal(next(keys), (1, num_patches + 1, D)),
        "norm_g": jnp.ones((1, D), jnp.float32),
        "norm_b": jnp.zeros((1, D), jnp.float32),
        "head_w": normal(next(keys), (D, cfg["num_classes"])),
        "head_b": jnp.zeros((1, cfg["num_classes"]), jnp.float32),
        "blocks": [],
    }
    for _ in range(cfg["depth"]):
        params["blocks"].append({
            "ln1_g": jnp.ones((1, D), jnp.float32),
            "ln1_b": jnp.zeros((1, D), jnp.float32),
            "qkv_w": normal(next(keys), (D, 3 * D)),
            "qkv_b": jnp.zeros((1, 3 * D), jnp.float32),
            "proj_w": normal(next(keys), (D, D)),
            "proj_b": jnp.zeros((1, D), jnp.float32),
            "ln2_g": jnp.ones((1, D), jnp.float32),
            "ln2_b": jnp.zeros((1, D), jnp.float32),
            "fc1_w": normal(next(keys), (D, hidden)),
            "fc1_b": jnp.zeros((1, hidden), jnp.float32),
            "fc2_w": normal(next(keys), (hidden, D)),
            "fc2_b": jnp.zeros((1, D), jnp.float32),
        })
    return params


def pack_params(params, cfg, batch):
    """Stack per-block weights along depth, fold the attention scale into Q, build the
    additive attention mask, and cast to kernel dtypes (weights bf16, biases/LN/pos f32)."""
    D = cfg["embed_dim"]
    Dh = D // cfg["num_heads"]
    scale = float(Dh) ** -0.5
    num_patches = (cfg["img_size"] // cfg["patch"]) ** 2
    n_real = num_patches + 1
    n_pad = ((n_real + 7) // 8) * 8
    M = batch * n_pad

    def stack(name, dtype):
        return jnp.stack([blk[name] for blk in params["blocks"]], axis=0).astype(dtype)

    # Fold head_dim**-0.5 into the q columns (mathematically identical to scaling q).
    qkv_w = stack("qkv_w", jnp.float32).at[:, :, :D].multiply(scale)
    qkv_b = stack("qkv_b", jnp.float32).at[:, :, :D].multiply(scale)

    # Additive attention mask over the batch-folded (M, M) scores: block-diagonal across
    # batches, pad-token key columns disabled. Built once on the host.
    ri = np.arange(M)[:, None]
    ci = np.arange(M)[None, :]
    valid = (ri // n_pad == ci // n_pad) & ((ci % n_pad) < n_real)
    amask = jnp.asarray(np.where(valid, 0.0, -1e30), dtype=jnp.float32)[None]

    return dict(
        patch_w=params["patch_w"].astype(jnp.bfloat16),
        patch_b=params["patch_b"].astype(jnp.float32),
        cls=params["cls_token"].reshape(1, D).astype(jnp.float32),
        pos=params["pos_embed"].reshape(n_real, D).astype(jnp.float32),
        amask=amask,
        ln1_g=stack("ln1_g", jnp.float32), ln1_b=stack("ln1_b", jnp.float32),
        qkv_w=qkv_w.astype(jnp.bfloat16), qkv_b=qkv_b,
        proj_w=stack("proj_w", jnp.bfloat16), proj_b=stack("proj_b", jnp.float32),
        ln2_g=stack("ln2_g", jnp.float32), ln2_b=stack("ln2_b", jnp.float32),
        fc1_w=stack("fc1_w", jnp.bfloat16), fc1_b=stack("fc1_b", jnp.float32),
        fc2_w=stack("fc2_w", jnp.bfloat16), fc2_b=stack("fc2_b", jnp.float32),
        norm_g=params["norm_g"].astype(jnp.float32),
        norm_b=params["norm_b"].astype(jnp.float32),
        head_w=params["head_w"].astype(jnp.bfloat16),
        head_b=params["head_b"].astype(jnp.float32),
    )


# -----------------------------------------------------------------------------
# Forward (equivalent of Vit.forward)
# -----------------------------------------------------------------------------

def vit_forward(x, packed, cfg, training=False):
    """Returns logits (training) or (logits, 'avg') (eval), matching the PyTorch module."""
    B, C, H, W = x.shape
    p = cfg["patch"]
    D = cfg["embed_dim"]
    gh, gw = H // p, W // p
    P = gh * gw
    n_real = P + 1
    n_pad = ((n_real + 7) // 8) * 8
    M = B * n_pad

    # im2col of the patch-embedding conv (kernel=stride=p); tiny, done once in XLA.
    xp = x.reshape(B, C, gh, p, gw, p).transpose(0, 2, 4, 1, 3, 5)
    xp = xp.reshape(B * P, C * p * p).astype(jnp.bfloat16)

    kernel = functools.partial(
        _vit_kernel, batch=B, num_patches=P, n_real=n_real, n_pad=n_pad,
        depth=cfg["depth"], num_heads=cfg["num_heads"],
        head_dim=D // cfg["num_heads"], eps=1e-6)

    logits = pl.pallas_call(
        kernel,
        out_shape=jax.ShapeDtypeStruct((B, cfg["num_classes"]), jnp.float32),
        scratch_shapes=[pltpu.VMEM((M, D), jnp.float32)],   # resident residual slab
    )(xp, packed["patch_w"], packed["patch_b"], packed["cls"], packed["pos"],
      packed["amask"],
      packed["ln1_g"], packed["ln1_b"], packed["qkv_w"], packed["qkv_b"],
      packed["proj_w"], packed["proj_b"], packed["ln2_g"], packed["ln2_b"],
      packed["fc1_w"], packed["fc1_b"], packed["fc2_w"], packed["fc2_b"],
      packed["norm_g"], packed["norm_b"], packed["head_w"], packed["head_b"])

    if training:
        return logits
    return (logits, "avg")


# -----------------------------------------------------------------------------
# Main
# -----------------------------------------------------------------------------

if __name__ == "__main__":
    key = jax.random.PRNGKey(0)
    k_params, k_x = jax.random.split(key)

    params = init_params(k_params, CFG)
    packed = pack_params(params, CFG, batch=2)
    x = jax.random.normal(
        k_x, (2, CFG["in_chans"], CFG["img_size"], CFG["img_size"]), dtype=jnp.float32
    )

    logits, pool_mode = vit_forward(x, packed, CFG, training=False)
    logits = jax.block_until_ready(logits)

    assert logits.shape == (2, CFG["num_classes"])
    assert pool_mode == "avg"
    assert bool(jnp.all(jnp.isfinite(logits)))
    print("KERNEL_OK")
</pallas_src>

<mosaic_0001>
module attributes {stable_mosaic.version = 11 : i64} {
  func.func @_vit_kernel(%arg0: memref<32x48xbf16, #tpu.memory_space<vmem>>, %arg1: memref<48x128xbf16, #tpu.memory_space<vmem>>, %arg2: memref<1x128xf32, #tpu.memory_space<vmem>>, %arg3: memref<1x128xf32, #tpu.memory_space<vmem>>, %arg4: memref<17x128xf32, #tpu.memory_space<vmem>>, %arg5: memref<1x48x48xf32, #tpu.memory_space<vmem>>, %arg6: memref<2x1x128xf32, #tpu.memory_space<vmem>>, %arg7: memref<2x1x128xf32, #tpu.memory_space<vmem>>, %arg8: memref<2x128x384xbf16, #tpu.memory_space<vmem>>, %arg9: memref<2x1x384xf32, #tpu.memory_space<vmem>>, %arg10: memref<2x128x128xbf16, #tpu.memory_space<vmem>>, %arg11: memref<2x1x128xf32, #tpu.memory_space<vmem>>, %arg12: memref<2x1x128xf32, #tpu.memory_space<vmem>>, %arg13: memref<2x1x128xf32, #tpu.memory_space<vmem>>, %arg14: memref<2x128x512xbf16, #tpu.memory_space<vmem>>, %arg15: memref<2x1x512xf32, #tpu.memory_space<vmem>>, %arg16: memref<2x512x128xbf16, #tpu.memory_space<vmem>>, %arg17: memref<2x1x128xf32, #tpu.memory_space<vmem>>, %arg18: memref<1x128xf32, #tpu.memory_space<vmem>>, %arg19: memref<1x128xf32, #tpu.memory_space<vmem>>, %arg20: memref<128x8xbf16, #tpu.memory_space<vmem>>, %arg21: memref<1x8xf32, #tpu.memory_space<vmem>>, %arg22: memref<2x8xf32, #tpu.memory_space<vmem>>, %arg23: memref<48x128xf32, #tpu.memory_space<vmem>>) attributes {dimension_semantics = [], scalar_prefetch = 0 : i64, scratch_operands = 1 : i64, tpu.core_type = #tpu.core_type<tc>} {
    %c0 = arith.constant 0 : index
    %c0_0 = arith.constant 0 : index
    %0 = vector.load %arg0[%c0, %c0_0] : memref<32x48xbf16, #tpu.memory_space<vmem>>, vector<32x48xbf16>
    %c0_1 = arith.constant 0 : index
    %c0_2 = arith.constant 0 : index
    %1 = vector.load %arg1[%c0_1, %c0_2] : memref<48x128xbf16, #tpu.memory_space<vmem>>, vector<48x128xbf16>
    %cst = arith.constant dense<0.000000e+00> : vector<32x128xf32>
    %2 = tpu.matmul %0, %1, %cst {dimension_numbers = #tpu.dot_dimension_numbers<[1], [0], [0], [1], [0, 0, 1, 1], [], []>} : vector<32x48xbf16>, vector<48x128xbf16>, vector<32x128xf32> -> vector<32x128xf32>
    %c0_3 = arith.constant 0 : index
    %c0_4 = arith.constant 0 : index
    %3 = vector.load %arg2[%c0_3, %c0_4] : memref<1x128xf32, #tpu.memory_space<vmem>>, vector<1x128xf32>
    %4 = vector.broadcast %3 : vector<1x128xf32> to vector<32x128xf32>
    %5 = arith.addf %2, %4 : vector<32x128xf32>
    %c0_5 = arith.constant 0 : index
    %c0_6 = arith.constant 0 : index
    %6 = vector.load %arg3[%c0_5, %c0_6] : memref<1x128xf32, #tpu.memory_space<vmem>>, vector<1x128xf32>
    %c0_7 = arith.constant 0 : index
    %c0_8 = arith.constant 0 : index
    %7 = vector.load %arg4[%c0_7, %c0_8] : memref<17x128xf32, #tpu.memory_space<vmem>>, vector<1x128xf32>
    %8 = arith.addf %6, %7 : vector<1x128xf32>
    %c1 = arith.constant 1 : index
    %c0_9 = arith.constant 0 : index
    %9 = vector.load %arg4[%c1, %c0_9] : memref<17x128xf32, #tpu.memory_space<vmem>>, vector<16x128xf32>
    %cst_10 = arith.constant 0.000000e+00 : f32
    %10 = vector.broadcast %cst_10 : f32 to vector<48x128xf32>
    %c0_11 = arith.constant 0 : index
    %c0_12 = arith.constant 0 : index
    %11 = vector.load %arg23[%c0_11, %c0_12] : memref<48x128xf32, #tpu.memory_space<vmem>>, vector<48x128xf32>
    tpu.vector_store %arg23[%c0_11, %c0_12], %10 {strides = array<i32>} : memref<48x128xf32, #tpu.memory_space<vmem>>, vector<48x128xf32>,
    %c0_13 = arith.constant 0 : index
    %c0_14 = arith.constant 0 : index
    %12 = vector.load %arg23[%c0_13, %c0_14] : memref<48x128xf32, #tpu.memory_space<vmem>>, vector<1x128xf32>
    tpu.vector_store %arg23[%c0_13, %c0_14], %8 {strides = array<i32>} : memref<48x128xf32, #tpu.memory_space<vmem>>, vector<1x128xf32>,
    %13 = vector.extract_strided_slice %5 {offsets = [0, 0], sizes = [16, 128], strides = [1, 1]} : vector<32x128xf32> to vector<16x128xf32>
    %14 = arith.addf %13, %9 : vector<16x128xf32>
    %c1_15 = arith.constant 1 : index
    %c0_16 = arith.constant 0 : index
    %15 = vector.load %arg23[%c1_15, %c0_16] : memref<48x128xf32, #tpu.memory_space<vmem>>, vector<16x128xf32>
    tpu.vector_store %arg23[%c1_15, %c0_16], %14 {strides = array<i32>} : memref<48x128xf32, #tpu.memory_space<vmem>>, vector<16x128xf32>,
    %c24 = arith.constant 24 : index
    %c0_17 = arith.constant 0 : index
    %16 = vector.load %arg23[%c24, %c0_17] : memref<48x128xf32, #tpu.memory_space<vmem>>, vector<1x128xf32>
    tpu.vector_store %arg23[%c24, %c0_17], %8 {strides = array<i32>} : memref<48x128xf32, #tpu.memory_space<vmem>>, vector<1x128xf32>,
    %17 = vector.extract_strided_slice %5 {offsets = [16, 0], sizes = [16, 128], strides = [1, 1]} : vector<32x128xf32> to vector<16x128xf32>
    %18 = arith.addf %17, %9 : vector<16x128xf32>
    %c25 = arith.constant 25 : index
    %c0_18 = arith.constant 0 : index
    %19 = vector.load %arg23[%c25, %c0_18] : memref<48x128xf32, #tpu.memory_space<vmem>>, vector<16x128xf32>
    tpu.vector_store %arg23[%c25, %c0_18], %18 {strides = array<i32>} : memref<48x128xf32, #tpu.memory_space<vmem>>, vector<16x128xf32>,
    %c0_19 = arith.constant 0 : index
    %c0_20 = arith.constant 0 : index
    %20 = vector.load %arg23[%c0_19, %c0_20] : memref<48x128xf32, #tpu.memory_space<vmem>>, vector<48x128xf32>
    %c0_21 = arith.constant 0 : index
    %c0_22 = arith.constant 0 : index
    %c0_23 = arith.constant 0 : index
    %21 = vector.load %arg5[%c0_21, %c0_22, %c0_23] : memref<1x48x48xf32, #tpu.memory_space<vmem>>, vector<1x48x48xf32>
    %c0_24 = arith.constant 0 : index
    %c0_25 = arith.constant 0 : index
    %c0_26 = arith.constant 0 : index
    %22 = vector.load %arg6[%c0_24, %c0_25, %c0_26] : memref<2x1x128xf32, #tpu.memory_space<vmem>>, vector<1x1x128xf32>
    %23 = vector.shape_cast %22 : vector<1x1x128xf32> to vector<1x128xf32>
    %c0_27 = arith.constant 0 : index
    %c0_28 = arith.constant 0 : index
    %c0_29 = arith.constant 0 : index
    %24 = vector.load %arg7[%c0_27, %c0_28, %c0_29] : memref<2x1x128xf32, #tpu.memory_space<vmem>>, vector<1x1x128xf32>
    %25 = vector.shape_cast %24 : vector<1x1x128xf32> to vector<1x128xf32>
    %cst_30 = arith.constant dense<0.000000e+00> : vector<48xf32>
    %26 = vector.multi_reduction <add>, %20, %cst_30 [1] : vector<48x128xf32> to vector<48xf32>
    %27 = vector.shape_cast %26 : vector<48xf32> to vector<48x1xf32>
    %cst_31 = arith.constant 1.280000e+02 : f32
    %28 = vector.broadcast %cst_31 : f32 to vector<48x1xf32>
    %29 = arith.divf %27, %28 : vector<48x1xf32>
    %30 = vector.broadcast %29 : vector<48x1xf32> to vector<48x128xf32>
    %31 = arith.subf %20, %30 : vector<48x128xf32>
    %32 = arith.mulf %31, %31 : vector<48x128xf32>
    %cst_32 = arith.constant dense<0.000000e+00> : vector<48xf32>
    %33 = vector.multi_reduction <add>, %32, %cst_32 [1] : vector<48x128xf32> to vector<48xf32>
    %34 = vector.shape_cast %33 : vector<48xf32> to vector<48x1xf32>
    %cst_33 = arith.constant 1.280000e+02 : f32
    %35 = vector.broadcast %cst_33 : f32 to vector<48x1xf32>
    %36 = arith.divf %34, %35 : vector<48x1xf32>
    %37 = vector.broadcast %29 : vector<48x1xf32> to vector<48x128xf32>
    %38 = arith.subf %20, %37 : vector<48x128xf32>
    %cst_34 = arith.constant 9.99999997E-7 : f32
    %39 = vector.broadcast %cst_34 : f32 to vector<48x1xf32>
    %40 = arith.addf %36, %39 : vector<48x1xf32>
    %41 = math.rsqrt %40 : vector<48x1xf32>
    %42 = vector.broadcast %41 : vector<48x1xf32> to vector<48x128xf32>
    %43 = arith.mulf %38, %42 : vector<48x128xf32>
    %44 = vector.broadcast %23 : vector<1x128xf32> to vector<48x128xf32>
    %45 = arith.mulf %43, %44 : vector<48x128xf32>
    %46 = vector.broadcast %25 : vector<1x128xf32> to vector<48x128xf32>
    %47 = arith.addf %45, %46 : vector<48x128xf32>
    %48 = arith.truncf %47 : vector<48x128xf32> to vector<48x128xbf16>
    %c0_35 = arith.constant 0 : index
    %c0_36 = arith.constant 0 : index
    %c0_37 = arith.constant 0 : index
    %49 = vector.load %arg8[%c0_35, %c0_36, %c0_37] : memref<2x128x384xbf16, #tpu.memory_space<vmem>>, vector<1x128x384xbf16>
    %50 = vector.shape_cast %49 : vector<1x128x384xbf16> to vector<128x384xbf16>
    %cst_38 = arith.constant dense<0.000000e+00> : vector<48x384xf32>
    %51 = tpu.matmul %48, %50, %cst_38 {dimension_numbers = #tpu.dot_dimension_numbers<[1], [0], [0], [1], [0, 0, 1, 1], [], []>} : vector<48x128xbf16>, vector<128x384xbf16>, vector<48x384xf32> -> vector<48x384xf32>
    %c0_39 = arith.constant 0 : index
    %c0_40 = arith.constant 0 : index
    %c0_41 = arith.constant 0 : index
    %52 = vector.load %arg9[%c0_39, %c0_40, %c0_41] : memref<2x1x384xf32, #tpu.memory_space<vmem>>, vector<1x1x384xf32>
    %53 = vector.shape_cast %52 : vector<1x1x384xf32> to vector<1x384xf32>
    %54 = vector.broadcast %53 : vector<1x384xf32> to vector<48x384xf32>
    %55 = arith.addf %51, %54 : vector<48x384xf32>
    %56 = arith.truncf %55 : vector<48x384xf32> to vector<48x384xbf16>
    %57 = vector.extract_strided_slice %56 {offsets = [0, 0], sizes = [48, 32], strides = [1, 1]} : vector<48x384xbf16> to vector<48x32xbf16>
    %58 = vector.extract_strided_slice %56 {offsets = [0, 32], sizes = [48, 32], strides = [1, 1]} : vector<48x384xbf16> to vector<48x32xbf16>
    %59 = vector.extract_strided_slice %56 {offsets = [0, 64], sizes = [48, 32], strides = [1, 1]} : vector<48x384xbf16> to vector<48x32xbf16>
    %60 = vector.extract_strided_slice %56 {offsets = [0, 96], sizes = [48, 32], strides = [1, 1]} : vector<48x384xbf16> to vector<48x32xbf16>
    %61 = vector.shape_cast %57 : vector<48x32xbf16> to vector<1x48x32xbf16>
    %62 = vector.shape_cast %58 : vector<48x32xbf16> to vector<1x48x32xbf16>
    %63 = vector.shape_cast %59 : vector<48x32xbf16> to vector<1x48x32xbf16>
    %64 = vector.shape_cast %60 : vector<48x32xbf16> to vector<1x48x32xbf16>
    %65 = tpu.concatenate %61, %62, %63, %64 in 0 : vector<1x48x32xbf16>, vector<1x48x32xbf16>, vector<1x48x32xbf16>, vector<1x48x32xbf16> -> vector<4x48x32xbf16>
    %66 = vector.extract_strided_slice %56 {offsets = [0, 128], sizes = [48, 32], strides = [1, 1]} : vector<48x384xbf16> to vector<48x32xbf16>
    %67 = vector.extract_strided_slice %56 {offsets = [0, 160], sizes = [48, 32], strides = [1, 1]} : vector<48x384xbf16> to vector<48x32xbf16>
    %68 = vector.extract_strided_slice %56 {offsets = [0, 192], sizes = [48, 32], strides = [1, 1]} : vector<48x384xbf16> to vector<48x32xbf16>
    %69 = vector.extract_strided_slice %56 {offsets = [0, 224], sizes = [48, 32], strides = [1, 1]} : vector<48x384xbf16> to vector<48x32xbf16>
    %70 = vector.shape_cast %66 : vector<48x32xbf16> to vector<1x48x32xbf16>
    %71 = vector.shape_cast %67 : vector<48x32xbf16> to vector<1x48x32xbf16>
    %72 = vector.shape_cast %68 : vector<48x32xbf16> to vector<1x48x32xbf16>
    %73 = vector.shape_cast %69 : vector<48x32xbf16> to vector<1x48x32xbf16>
    %74 = tpu.concatenate %70, %71, %72, %73 in 0 : vector<1x48x32xbf16>, vector<1x48x32xbf16>, vector<1x48x32xbf16>, vector<1x48x32xbf16> -> vector<4x48x32xbf16>
    %75 = vector.extract_strided_slice %56 {offsets = [0, 256], sizes = [48, 32], strides = [1, 1]} : vector<48x384xbf16> to vector<48x32xbf16>
    %76 = vector.extract_strided_slice %56 {offsets = [0, 288], sizes = [48, 32], strides = [1, 1]} : vector<48x384xbf16> to vector<48x32xbf16>
    %77 = vector.extract_strided_slice %56 {offsets = [0, 320], sizes = [48, 32], strides = [1, 1]} : vector<48x384xbf16> to vector<48x32xbf16>
    %78 = vector.extract_strided_slice %56 {offsets = [0, 352], sizes = [48, 32], strides = [1, 1]} : vector<48x384xbf16> to vector<48x32xbf16>
    %79 = vector.shape_cast %75 : vector<48x32xbf16> to vector<1x48x32xbf16>
    %80 = vector.shape_cast %76 : vector<48x32xbf16> to vector<1x48x32xbf16>
    %81 = vector.shape_cast %77 : vector<48x32xbf16> to vector<1x48x32xbf16>
    %82 = vector.shape_cast %78 : vector<48x32xbf16> to vector<1x48x32xbf16>
    %83 = tpu.concatenate %79, %80, %81, %82 in 0 : vector<1x48x32xbf16>, vector<1x48x32xbf16>, vector<1x48x32xbf16>, vector<1x48x32xbf16> -> vector<4x48x32xbf16>
    "tpu.trace_start"() <{level = 10 : i32, message = "hqd,hkd->hqk"}> : () -> ()
    %cst_42 = arith.constant dense<0.000000e+00> : vector<4x48x48xf32>
    %84 = tpu.matmul %65, %74, %cst_42 {dimension_numbers = #tpu.dot_dimension_numbers<[2], [2], [1], [1], [0, 0, 0, 1, 1, 1], [0], [0]>} : vector<4x48x32xbf16>, vector<4x48x32xbf16>, vector<4x48x48xf32> -> vector<4x48x48xf32>
    "tpu.trace_stop"() : () -> ()
    %85 = vector.broadcast %21 : vector<1x48x48xf32> to vector<4x48x48xf32>
    %86 = arith.addf %84, %85 : vector<4x48x48xf32>
    %cst_43 = arith.constant dense<0xFF800000> : vector<4x48xf32>
    %87 = vector.multi_reduction <maximumf>, %86, %cst_43 [2] : vector<4x48x48xf32> to vector<4x48xf32>
    %88 = vector.shape_cast %87 : vector<4x48xf32> to vector<4x48x1xf32>
    %89 = vector.broadcast %88 : vector<4x48x1xf32> to vector<4x48x48xf32>
    %90 = arith.subf %86, %89 : vector<4x48x48xf32>
    %91 = math.exp %90 : vector<4x48x48xf32>
    %cst_44 = arith.constant dense<0.000000e+00> : vector<4x48xf32>
    %92 = vector.multi_reduction <add>, %91, %cst_44 [2] : vector<4x48x48xf32> to vector<4x48xf32>
    %93 = vector.shape_cast %92 : vector<4x48xf32> to vector<4x48x1xf32>
    %94 = tpu.reciprocal %93 {approx = true} : vector<4x48x1xf32> -> vector<4x48x1xf32>
    %95 = vector.broadcast %94 : vector<4x48x1xf32> to vector<4x48x48xf32>
    %96 = arith.mulf %91, %95 : vector<4x48x48xf32>
    %97 = arith.truncf %96 : vector<4x48x48xf32> to vector<4x48x48xbf16>
    "tpu.trace_start"() <{level = 10 : i32, message = "hqk,hkd->hqd"}> : () -> ()
    %cst_45 = arith.constant dense<0.000000e+00> : vector<4x48x32xf32>
    %98 = tpu.matmul %97, %83, %cst_45 {dimension_numbers = #tpu.dot_dimension_numbers<[2], [1], [1], [2], [0, 0, 0, 1, 1, 2], [0], [0]>} : vector<4x48x48xbf16>, vector<4x48x32xbf16>, vector<4x48x32xf32> -> vector<4x48x32xf32>
    "tpu.trace_stop"() : () -> ()
    %99 = vector.extract_strided_slice %98 {offsets = [0, 0, 0], sizes = [1, 48, 32], strides = [1, 1, 1]} : vector<4x48x32xf32> to vector<1x48x32xf32>
    %100 = vector.shape_cast %99 : vector<1x48x32xf32> to vector<48x32xf32>
    %101 = vector.extract_strided_slice %98 {offsets = [1, 0, 0], sizes = [1, 48, 32], strides = [1, 1, 1]} : vector<4x48x32xf32> to vector<1x48x32xf32>
    %102 = vector.shape_cast %101 : vector<1x48x32xf32> to vector<48x32xf32>
    %103 = vector.extract_strided_slice %98 {offsets = [2, 0, 0], sizes = [1, 48, 32], strides = [1, 1, 1]} : vector<4x48x32xf32> to vector<1x48x32xf32>
    %104 = vector.shape_cast %103 : vector<1x48x32xf32> to vector<48x32xf32>
    %105 = vector.extract_strided_slice %98 {offsets = [3, 0, 0], sizes = [1, 48, 32], strides = [1, 1, 1]} : vector<4x48x32xf32> to vector<1x48x32xf32>
    %106 = vector.shape_cast %105 : vector<1x48x32xf32> to vector<48x32xf32>
    %107 = tpu.concatenate %100, %102, %104, %106 in 1 : vector<48x32xf32>, vector<48x32xf32>, vector<48x32xf32>, vector<48x32xf32> -> vector<48x128xf32>
    %108 = arith.truncf %107 : vector<48x128xf32> to vector<48x128xbf16>
    %c0_46 = arith.constant 0 : index
    %c0_47 = arith.constant 0 : index
    %c0_48 = arith.constant 0 : index
    %109 = vector.load %arg10[%c0_46, %c0_47, %c0_48] : memref<2x128x128xbf16, #tpu.memory_space<vmem>>, vector<1x128x128xbf16>
    %110 = vector.shape_cast %109 : vector<1x128x128xbf16> to vector<128x128xbf16>
    %cst_49 = arith.constant dense<0.000000e+00> : vector<48x128xf32>
    %111 = tpu.matmul %108, %110, %cst_49 {dimension_numbers = #tpu.dot_dimension_numbers<[1], [0], [0], [1], [0, 0, 1, 1], [], []>} : vector<48x128xbf16>, vector<128x128xbf16>, vector<48x128xf32> -> vector<48x128xf32>
    %112 = arith.addf %20, %111 : vector<48x128xf32>
    %c0_50 = arith.constant 0 : index
    %c0_51 = arith.constant 0 : index
    %c0_52 = arith.constant 0 : index
    %113 = vector.load %arg11[%c0_50, %c0_51, %c0_52] : memref<2x1x128xf32, #tpu.memory_space<vmem>>, vector<1x1x128xf32>
    %114 = vector.shape_cast %113 : vector<1x1x128xf32> to vector<1x128xf32>
    %115 = vector.broadcast %114 : vector<1x128xf32> to vector<48x128xf32>
    %116 = arith.addf %112, %115 : vector<48x128xf32>
    %c0_53 = arith.constant 0 : index
    %c0_54 = arith.constant 0 : index
    %c0_55 = arith.constant 0 : index
    %117 = vector.load %arg12[%c0_53, %c0_54, %c0_55] : memref<2x1x128xf32, #tpu.memory_space<vmem>>, vector<1x1x128xf32>
    %118 = vector.shape_cast %117 : vector<1x1x128xf32> to vector<1x128xf32>
    %c0_56 = arith.constant 0 : index
    %c0_57 = arith.constant 0 : index
    %c0_58 = arith.constant 0 : index
    %119 = vector.load %arg13[%c0_56, %c0_57, %c0_58] : memref<2x1x128xf32, #tpu.memory_space<vmem>>, vector<1x1x128xf32>
    %120 = vector.shape_cast %119 : vector<1x1x128xf32> to vector<1x128xf32>
    %cst_59 = arith.constant dense<0.000000e+00> : vector<48xf32>
    %121 = vector.multi_reduction <add>, %116, %cst_59 [1] : vector<48x128xf32> to vector<48xf32>
    %122 = vector.shape_cast %121 : vector<48xf32> to vector<48x1xf32>
    %cst_60 = arith.constant 1.280000e+02 : f32
    %123 = vector.broadcast %cst_60 : f32 to vector<48x1xf32>
    %124 = arith.divf %122, %123 : vector<48x1xf32>
    %125 = vector.broadcast %124 : vector<48x1xf32> to vector<48x128xf32>
    %126 = arith.subf %116, %125 : vector<48x128xf32>
    %127 = arith.mulf %126, %126 : vector<48x128xf32>
    %cst_61 = arith.constant dense<0.000000e+00> : vector<48xf32>
    %128 = vector.multi_reduction <add>, %127, %cst_61 [1] : vector<48x128xf32> to vector<48xf32>
    %129 = vector.shape_cast %128 : vector<48xf32> to vector<48x1xf32>
    %cst_62 = arith.constant 1.280000e+02 : f32
    %130 = vector.broadcast %cst_62 : f32 to vector<48x1xf32>
    %131 = arith.divf %129, %130 : vector<48x1xf32>
    %132 = vector.broadcast %124 : vector<48x1xf32> to vector<48x128xf32>
    %133 = arith.subf %116, %132 : vector<48x128xf32>
    %cst_63 = arith.constant 9.99999997E-7 : f32
    %134 = vector.broadcast %cst_63 : f32 to vector<48x1xf32>
    %135 = arith.addf %131, %134 : vector<48x1xf32>
    %136 = math.rsqrt %135 : vector<48x1xf32>
    %137 = vector.broadcast %136 : vector<48x1xf32> to vector<48x128xf32>
    %138 = arith.mulf %133, %137 : vector<48x128xf32>
    %139 = vector.broadcast %118 : vector<1x128xf32> to vector<48x128xf32>
    %140 = arith.mulf %138, %139 : vector<48x128xf32>
    %141 = vector.broadcast %120 : vector<1x128xf32> to vector<48x128xf32>
    %142 = arith.addf %140, %141 : vector<48x128xf32>
    %143 = arith.truncf %142 : vector<48x128xf32> to vector<48x128xbf16>
    %c0_64 = arith.constant 0 : index
    %c0_65 = arith.constant 0 : index
    %c0_66 = arith.constant 0 : index
    %144 = vector.load %arg14[%c0_64, %c0_65, %c0_66] : memref<2x128x512xbf16, #tpu.memory_space<vmem>>, vector<1x128x512xbf16>
    %145 = vector.shape_cast %144 : vector<1x128x512xbf16> to vector<128x512xbf16>
    %cst_67 = arith.constant dense<0.000000e+00> : vector<48x512xf32>
    %146 = tpu.matmul %143, %145, %cst_67 {dimension_numbers = #tpu.dot_dimension_numbers<[1], [0], [0], [1], [0, 0, 1, 1], [], []>} : vector<48x128xbf16>, vector<128x512xbf16>, vector<48x512xf32> -> vector<48x512xf32>
    %c0_68 = arith.constant 0 : index
    %c0_69 = arith.constant 0 : index
    %c0_70 = arith.constant 0 : index
    %147 = vector.load %arg15[%c0_68, %c0_69, %c0_70] : memref<2x1x512xf32, #tpu.memory_space<vmem>>, vector<1x1x512xf32>
    %148 = vector.shape_cast %147 : vector<1x1x512xf32> to vector<1x512xf32>
    %149 = vector.broadcast %148 : vector<1x512xf32> to vector<48x512xf32>
    %150 = arith.addf %146, %149 : vector<48x512xf32>
    %151 = arith.mulf %150, %150 : vector<48x512xf32>
    %152 = arith.mulf %150, %151 : vector<48x512xf32>
    %cst_71 = arith.constant 4.471500e-02 : f32
    %153 = vector.broadcast %cst_71 : f32 to vector<48x512xf32>
    %154 = arith.mulf %153, %152 : vector<48x512xf32>
    %155 = arith.addf %150, %154 : vector<48x512xf32>
    %cst_72 = arith.constant 0.797884583 : f32
    %156 = vector.broadcast %cst_72 : f32 to vector<48x512xf32>
    %157 = arith.mulf %156, %155 : vector<48x512xf32>
    %158 = math.tanh %157 : vector<48x512xf32>
    %cst_73 = arith.constant 1.000000e+00 : f32
    %159 = vector.broadcast %cst_73 : f32 to vector<48x512xf32>
    %160 = arith.addf %159, %158 : vector<48x512xf32>
    %cst_74 = arith.constant 5.000000e-01 : f32
    %161 = vector.broadcast %cst_74 : f32 to vector<48x512xf32>
    %162 = arith.mulf %161, %160 : vector<48x512xf32>
    %163 = arith.mulf %150, %162 : vector<48x512xf32>
    %164 = arith.truncf %163 : vector<48x512xf32> to vector<48x512xbf16>
    %c0_75 = arith.constant 0 : index
    %c0_76 = arith.constant 0 : index
    %c0_77 = arith.constant 0 : index
    %165 = vector.load %arg16[%c0_75, %c0_76, %c0_77] : memref<2x512x128xbf16, #tpu.memory_space<vmem>>, vector<1x512x128xbf16>
    %166 = vector.shape_cast %165 : vector<1x512x128xbf16> to vector<512x128xbf16>
    %cst_78 = arith.constant dense<0.000000e+00> : vector<48x128xf32>
    %167 = tpu.matmul %164, %166, %cst_78 {dimension_numbers = #tpu.dot_dimension_numbers<[1], [0], [0], [1], [0, 0, 1, 1], [], []>} : vector<48x512xbf16>, vector<512x128xbf16>, vector<48x128xf32> -> vector<48x128xf32>
    %c0_79 = arith.constant 0 : index
    %c0_80 = arith.constant 0 : index
    %c0_81 = arith.constant 0 : index
    %168 = vector.load %arg17[%c0_79, %c0_80, %c0_81] : memref<2x1x128xf32, #tpu.memory_space<vmem>>, vector<1x1x128xf32>
    %169 = vector.shape_cast %168 : vector<1x1x128xf32> to vector<1x128xf32>
    %170 = vector.broadcast %169 : vector<1x128xf32> to vector<48x128xf32>
    %171 = arith.addf %167, %170 : vector<48x128xf32>
    %172 = arith.addf %116, %171 : vector<48x128xf32>
    %c1_82 = arith.constant 1 : index
    %c0_83 = arith.constant 0 : index
    %c0_84 = arith.constant 0 : index
    %173 = vector.load %arg6[%c1_82, %c0_83, %c0_84] : memref<2x1x128xf32, #tpu.memory_space<vmem>>, vector<1x1x128xf32>
    %174 = vector.shape_cast %173 : vector<1x1x128xf32> to vector<1x128xf32>
    %c1_85 = arith.constant 1 : index
    %c0_86 = arith.constant 0 : index
    %c0_87 = arith.constant 0 : index
    %175 = vector.load %arg7[%c1_85, %c0_86, %c0_87] : memref<2x1x128xf32, #tpu.memory_space<vmem>>, vector<1x1x128xf32>
    %176 = vector.shape_cast %175 : vector<1x1x128xf32> to vector<1x128xf32>
    %cst_88 = arith.constant dense<0.000000e+00> : vector<48xf32>
    %177 = vector.multi_reduction <add>, %172, %cst_88 [1] : vector<48x128xf32> to vector<48xf32>
    %178 = vector.shape_cast %177 : vector<48xf32> to vector<48x1xf32>
    %cst_89 = arith.constant 1.280000e+02 : f32
    %179 = vector.broadcast %cst_89 : f32 to vector<48x1xf32>
    %180 = arith.divf %178, %179 : vector<48x1xf32>
    %181 = vector.broadcast %180 : vector<48x1xf32> to vector<48x128xf32>
    %182 = arith.subf %172, %181 : vector<48x128xf32>
    %183 = arith.mulf %182, %182 : vector<48x128xf32>
    %cst_90 = arith.constant dense<0.000000e+00> : vector<48xf32>
    %184 = vector.multi_reduction <add>, %183, %cst_90 [1] : vector<48x128xf32> to vector<48xf32>
    %185 = vector.shape_cast %184 : vector<48xf32> to vector<48x1xf32>
    %cst_91 = arith.constant 1.280000e+02 : f32
    %186 = vector.broadcast %cst_91 : f32 to vector<48x1xf32>
    %187 = arith.divf %185, %186 : vector<48x1xf32>
    %188 = vector.broadcast %180 : vector<48x1xf32> to vector<48x128xf32>
    %189 = arith.subf %172, %188 : vector<48x128xf32>
    %cst_92 = arith.constant 9.99999997E-7 : f32
    %190 = vector.broadcast %cst_92 : f32 to vector<48x1xf32>
    %191 = arith.addf %187, %190 : vector<48x1xf32>
    %192 = math.rsqrt %191 : vector<48x1xf32>
    %193 = vector.broadcast %192 : vector<48x1xf32> to vector<48x128xf32>
    %194 = arith.mulf %189, %193 : vector<48x128xf32>
    %195 = vector.broadcast %174 : vector<1x128xf32> to vector<48x128xf32>
    %196 = arith.mulf %194, %195 : vector<48x128xf32>
    %197 = vector.broadcast %176 : vector<1x128xf32> to vector<48x128xf32>
    %198 = arith.addf %196, %197 : vector<48x128xf32>
    %199 = arith.truncf %198 : vector<48x128xf32> to vector<48x128xbf16>
    %c1_93 = arith.constant 1 : index
    %c0_94 = arith.constant 0 : index
    %c0_95 = arith.constant 0 : index
    %200 = vector.load %arg8[%c1_93, %c0_94, %c0_95] : memref<2x128x384xbf16, #tpu.memory_space<vmem>>, vector<1x128x384xbf16>
    %201 = vector.shape_cast %200 : vector<1x128x384xbf16> to vector<128x384xbf16>
    %cst_96 = arith.constant dense<0.000000e+00> : vector<48x384xf32>
    %202 = tpu.matmul %199, %201, %cst_96 {dimension_numbers = #tpu.dot_dimension_numbers<[1], [0], [0], [1], [0, 0, 1, 1], [], []>} : vector<48x128xbf16>, vector<128x384xbf16>, vector<48x384xf32> -> vector<48x384xf32>
    %c1_97 = arith.constant 1 : index
    %c0_98 = arith.constant 0 : index
    %c0_99 = arith.constant 0 : index
    %203 = vector.load %arg9[%c1_97, %c0_98, %c0_99] : memref<2x1x384xf32, #tpu.memory_space<vmem>>, vector<1x1x384xf32>
    %204 = vector.shape_cast %203 : vector<1x1x384xf32> to vector<1x384xf32>
    %205 = vector.broadcast %204 : vector<1x384xf32> to vector<48x384xf32>
    %206 = arith.addf %202, %205 : vector<48x384xf32>
    %207 = arith.truncf %206 : vector<48x384xf32> to vector<48x384xbf16>
    %208 = vector.extract_strided_slice %207 {offsets = [0, 0], sizes = [48, 32], strides = [1, 1]} : vector<48x384xbf16> to vector<48x32xbf16>
    %209 = vector.extract_strided_slice %207 {offsets = [0, 32], sizes = [48, 32], strides = [1, 1]} : vector<48x384xbf16> to vector<48x32xbf16>
    %210 = vector.extract_strided_slice %207 {offsets = [0, 64], sizes = [48, 32], strides = [1, 1]} : vector<48x384xbf16> to vector<48x32xbf16>
    %211 = vector.extract_strided_slice %207 {offsets = [0, 96], sizes = [48, 32], strides = [1, 1]} : vector<48x384xbf16> to vector<48x32xbf16>
    %212 = vector.shape_cast %208 : vector<48x32xbf16> to vector<1x48x32xbf16>
    %213 = vector.shape_cast %209 : vector<48x32xbf16> to vector<1x48x32xbf16>
    %214 = vector.shape_cast %210 : vector<48x32xbf16> to vector<1x48x32xbf16>
    %215 = vector.shape_cast %211 : vector<48x32xbf16> to vector<1x48x32xbf16>
    %216 = tpu.concatenate %212, %213, %214, %215 in 0 : vector<1x48x32xbf16>, vector<1x48x32xbf16>, vector<1x48x32xbf16>, vector<1x48x32xbf16> -> vector<4x48x32xbf16>
    %217 = vector.extract_strided_slice %207 {offsets = [0, 128], sizes = [48, 32], strides = [1, 1]} : vector<48x384xbf16> to vector<48x32xbf16>
    %218 = vector.extract_strided_slice %207 {offsets = [0, 160], sizes = [48, 32], strides = [1, 1]} : vector<48x384xbf16> to vector<48x32xbf16>
    %219 = vector.extract_strided_slice %207 {offsets = [0, 192], sizes = [48, 32], strides = [1, 1]} : vector<48x384xbf16> to vector<48x32xbf16>
    %220 = vector.extract_strided_slice %207 {offsets = [0, 224], sizes = [48, 32], strides = [1, 1]} : vector<48x384xbf16> to vector<48x32xbf16>
    %221 = vector.shape_cast %217 : vector<48x32xbf16> to vector<1x48x32xbf16>
    %222 = vector.shape_cast %218 : vector<48x32xbf16> to vector<1x48x32xbf16>
    %223 = vector.shape_cast %219 : vector<48x32xbf16> to vector<1x48x32xbf16>
    %224 = vector.shape_cast %220 : vector<48x32xbf16> to vector<1x48x32xbf16>
    %225 = tpu.concatenate %221, %222, %223, %224 in 0 : vector<1x48x32xbf16>, vector<1x48x32xbf16>, vector<1x48x32xbf16>, vector<1x48x32xbf16> -> vector<4x48x32xbf16>
    %226 = vector.extract_strided_slice %207 {offsets = [0, 256], sizes = [48, 32], strides = [1, 1]} : vector<48x384xbf16> to vector<48x32xbf16>
    %227 = vector.extract_strided_slice %207 {offsets = [0, 288], sizes = [48, 32], strides = [1, 1]} : vector<48x384xbf16> to vector<48x32xbf16>
    %228 = vector.extract_strided_slice %207 {offsets = [0, 320], sizes = [48, 32], strides = [1, 1]} : vector<48x384xbf16> to vector<48x32xbf16>
    %229 = vector.extract_strided_slice %207 {offsets = [0, 352], sizes = [48, 32], strides = [1, 1]} : vector<48x384xbf16> to vector<48x32xbf16>
    %230 = vector.shape_cast %226 : vector<48x32xbf16> to vector<1x48x32xbf16>
    %231 = vector.shape_cast %227 : vector<48x32xbf16> to vector<1x48x32xbf16>
    %232 = vector.shape_cast %228 : vector<48x32xbf16> to vector<1x48x32xbf16>
    %233 = vector.shape_cast %229 : vector<48x32xbf16> to vector<1x48x32xbf16>
    %234 = tpu.concatenate %230, %231, %232, %233 in 0 : vector<1x48x32xbf16>, vector<1x48x32xbf16>, vector<1x48x32xbf16>, vector<1x48x32xbf16> -> vector<4x48x32xbf16>
    "tpu.trace_start"() <{level = 10 : i32, message = "hqd,hkd->hqk"}> : () -> ()
    %cst_100 = arith.constant dense<0.000000e+00> : vector<4x48x48xf32>
    %235 = tpu.matmul %216, %225, %cst_100 {dimension_numbers = #tpu.dot_dimension_numbers<[2], [2], [1], [1], [0, 0, 0, 1, 1, 1], [0], [0]>} : vector<4x48x32xbf16>, vector<4x48x32xbf16>, vector<4x48x48xf32> -> vector<4x48x48xf32>
    "tpu.trace_stop"() : () -> ()
    %236 = vector.broadcast %21 : vector<1x48x48xf32> to vector<4x48x48xf32>
    %237 = arith.addf %235, %236 : vector<4x48x48xf32>
    %cst_101 = arith.constant dense<0xFF800000> : vector<4x48xf32>
    %238 = vector.multi_reduction <maximumf>, %237, %cst_101 [2] : vector<4x48x48xf32> to vector<4x48xf32>
    %239 = vector.shape_cast %238 : vector<4x48xf32> to vector<4x48x1xf32>
    %240 = vector.broadcast %239 : vector<4x48x1xf32> to vector<4x48x48xf32>
    %241 = arith.subf %237, %240 : vector<4x48x48xf32>
    %242 = math.exp %241 : vector<4x48x48xf32>
    %cst_102 = arith.constant dense<0.000000e+00> : vector<4x48xf32>
    %243 = vector.multi_reduction <add>, %242, %cst_102 [2] : vector<4x48x48xf32> to vector<4x48xf32>
    %244 = vector.shape_cast %243 : vector<4x48xf32> to vector<4x48x1xf32>
    %245 = tpu.reciprocal %244 {approx = true} : vector<4x48x1xf32> -> vector<4x48x1xf32>
    %246 = vector.broadcast %245 : vector<4x48x1xf32> to vector<4x48x48xf32>
    %247 = arith.mulf %242, %246 : vector<4x48x48xf32>
    %248 = arith.truncf %247 : vector<4x48x48xf32> to vector<4x48x48xbf16>
    "tpu.trace_start"() <{level = 10 : i32, message = "hqk,hkd->hqd"}> : () -> ()
    %cst_103 = arith.constant dense<0.000000e+00> : vector<4x48x32xf32>
    %249 = tpu.matmul %248, %234, %cst_103 {dimension_numbers = #tpu.dot_dimension_numbers<[2], [1], [1], [2], [0, 0, 0, 1, 1, 2], [0], [0]>} : vector<4x48x48xbf16>, vector<4x48x32xbf16>, vector<4x48x32xf32> -> vector<4x48x32xf32>
    "tpu.trace_stop"() : () -> ()
    %250 = vector.extract_strided_slice %249 {offsets = [0, 0, 0], sizes = [1, 48, 32], strides = [1, 1, 1]} : vector<4x48x32xf32> to vector<1x48x32xf32>
    %251 = vector.shape_cast %250 : vector<1x48x32xf32> to vector<48x32xf32>
    %252 = vector.extract_strided_slice %249 {offsets = [1, 0, 0], sizes = [1, 48, 32], strides = [1, 1, 1]} : vector<4x48x32xf32> to vector<1x48x32xf32>
    %253 = vector.shape_cast %252 : vector<1x48x32xf32> to vector<48x32xf32>
    %254 = vector.extract_strided_slice %249 {offsets = [2, 0, 0], sizes = [1, 48, 32], strides = [1, 1, 1]} : vector<4x48x32xf32> to vector<1x48x32xf32>
    %255 = vector.shape_cast %254 : vector<1x48x32xf32> to vector<48x32xf32>
    %256 = vector.extract_strided_slice %249 {offsets = [3, 0, 0], sizes = [1, 48, 32], strides = [1, 1, 1]} : vector<4x48x32xf32> to vector<1x48x32xf32>
    %257 = vector.shape_cast %256 : vector<1x48x32xf32> to vector<48x32xf32>
    %258 = tpu.concatenate %251, %253, %255, %257 in 1 : vector<48x32xf32>, vector<48x32xf32>, vector<48x32xf32>, vector<48x32xf32> -> vector<48x128xf32>
    %259 = arith.truncf %258 : vector<48x128xf32> to vector<48x128xbf16>
    %c1_104 = arith.constant 1 : index
    %c0_105 = arith.constant 0 : index
    %c0_106 = arith.constant 0 : index
    %260 = vector.load %arg10[%c1_104, %c0_105, %c0_106] : memref<2x128x128xbf16, #tpu.memory_space<vmem>>, vector<1x128x128xbf16>
    %261 = vector.shape_cast %260 : vector<1x128x128xbf16> to vector<128x128xbf16>
    %cst_107 = arith.constant dense<0.000000e+00> : vector<48x128xf32>
    %262 = tpu.matmul %259, %261, %cst_107 {dimension_numbers = #tpu.dot_dimension_numbers<[1], [0], [0], [1], [0, 0, 1, 1], [], []>} : vector<48x128xbf16>, vector<128x128xbf16>, vector<48x128xf32> -> vector<48x128xf32>
    %263 = arith.addf %172, %262 : vector<48x128xf32>
    %c1_108 = arith.constant 1 : index
    %c0_109 = arith.constant 0 : index
    %c0_110 = arith.constant 0 : index
    %264 = vector.load %arg11[%c1_108, %c0_109, %c0_110] : memref<2x1x128xf32, #tpu.memory_space<vmem>>, vector<1x1x128xf32>
    %265 = vector.shape_cast %264 : vector<1x1x128xf32> to vector<1x128xf32>
    %266 = vector.broadcast %265 : vector<1x128xf32> to vector<48x128xf32>
    %267 = arith.addf %263, %266 : vector<48x128xf32>
    %c1_111 = arith.constant 1 : index
    %c0_112 = arith.constant 0 : index
    %c0_113 = arith.constant 0 : index
    %268 = vector.load %arg12[%c1_111, %c0_112, %c0_113] : memref<2x1x128xf32, #tpu.memory_space<vmem>>, vector<1x1x128xf32>
    %269 = vector.shape_cast %268 : vector<1x1x128xf32> to vector<1x128xf32>
    %c1_114 = arith.constant 1 : index
    %c0_115 = arith.constant 0 : index
    %c0_116 = arith.constant 0 : index
    %270 = vector.load %arg13[%c1_114, %c0_115, %c0_116] : memref<2x1x128xf32, #tpu.memory_space<vmem>>, vector<1x1x128xf32>
    %271 = vector.shape_cast %270 : vector<1x1x128xf32> to vector<1x128xf32>
    %cst_117 = arith.constant dense<0.000000e+00> : vector<48xf32>
    %272 = vector.multi_reduction <add>, %267, %cst_117 [1] : vector<48x128xf32> to vector<48xf32>
    %273 = vector.shape_cast %272 : vector<48xf32> to vector<48x1xf32>
    %cst_118 = arith.constant 1.280000e+02 : f32
    %274 = vector.broadcast %cst_118 : f32 to vector<48x1xf32>
    %275 = arith.divf %273, %274 : vector<48x1xf32>
    %276 = vector.broadcast %275 : vector<48x1xf32> to vector<48x128xf32>
    %277 = arith.subf %267, %276 : vector<48x128xf32>
    %278 = arith.mulf %277, %277 : vector<48x128xf32>
    %cst_119 = arith.constant dense<0.000000e+00> : vector<48xf32>
    %279 = vector.multi_reduction <add>, %278, %cst_119 [1] : vector<48x128xf32> to vector<48xf32>
    %280 = vector.shape_cast %279 : vector<48xf32> to vector<48x1xf32>
    %cst_120 = arith.constant 1.280000e+02 : f32
    %281 = vector.broadcast %cst_120 : f32 to vector<48x1xf32>
    %282 = arith.divf %280, %281 : vector<48x1xf32>
    %283 = vector.broadcast %275 : vector<48x1xf32> to vector<48x128xf32>
    %284 = arith.subf %267, %283 : vector<48x128xf32>
    %cst_121 = arith.constant 9.99999997E-7 : f32
    %285 = vector.broadcast %cst_121 : f32 to vector<48x1xf32>
    %286 = arith.addf %282, %285 : vector<48x1xf32>
    %287 = math.rsqrt %286 : vector<48x1xf32>
    %288 = vector.broadcast %287 : vector<48x1xf32> to vector<48x128xf32>
    %289 = arith.mulf %284, %288 : vector<48x128xf32>
    %290 = vector.broadcast %269 : vector<1x128xf32> to vector<48x128xf32>
    %291 = arith.mulf %289, %290 : vector<48x128xf32>
    %292 = vector.broadcast %271 : vector<1x128xf32> to vector<48x128xf32>
    %293 = arith.addf %291, %292 : vector<48x128xf32>
    %294 = arith.truncf %293 : vector<48x128xf32> to vector<48x128xbf16>
    %c1_122 = arith.constant 1 : index
    %c0_123 = arith.constant 0 : index
    %c0_124 = arith.constant 0 : index
    %295 = vector.load %arg14[%c1_122, %c0_123, %c0_124] : memref<2x128x512xbf16, #tpu.memory_space<vmem>>, vector<1x128x512xbf16>
    %296 = vector.shape_cast %295 : vector<1x128x512xbf16> to vector<128x512xbf16>
    %cst_125 = arith.constant dense<0.000000e+00> : vector<48x512xf32>
    %297 = tpu.matmul %294, %296, %cst_125 {dimension_numbers = #tpu.dot_dimension_numbers<[1], [0], [0], [1], [0, 0, 1, 1], [], []>} : vector<48x128xbf16>, vector<128x512xbf16>, vector<48x512xf32> -> vector<48x512xf32>
    %c1_126 = arith.constant 1 : index
    %c0_127 = arith.constant 0 : index
    %c0_128 = arith.constant 0 : index
    %298 = vector.load %arg15[%c1_126, %c0_127, %c0_128] : memref<2x1x512xf32, #tpu.memory_space<vmem>>, vector<1x1x512xf32>
    %299 = vector.shape_cast %298 : vector<1x1x512xf32> to vector<1x512xf32>
    %300 = vector.broadcast %299 : vector<1x512xf32> to vector<48x512xf32>
    %301 = arith.addf %297, %300 : vector<48x512xf32>
    %302 = arith.mulf %301, %301 : vector<48x512xf32>
    %303 = arith.mulf %301, %302 : vector<48x512xf32>
    %cst_129 = arith.constant 4.471500e-02 : f32
    %304 = vector.broadcast %cst_129 : f32 to vector<48x512xf32>
    %305 = arith.mulf %304, %303 : vector<48x512xf32>
    %306 = arith.addf %301, %305 : vector<48x512xf32>
    %cst_130 = arith.constant 0.797884583 : f32
    %307 = vector.broadcast %cst_130 : f32 to vector<48x512xf32>
    %308 = arith.mulf %307, %306 : vector<48x512xf32>
    %309 = math.tanh %308 : vector<48x512xf32>
    %cst_131 = arith.constant 1.000000e+00 : f32
    %310 = vector.broadcast %cst_131 : f32 to vector<48x512xf32>
    %311 = arith.addf %310, %309 : vector<48x512xf32>
    %cst_132 = arith.constant 5.000000e-01 : f32
    %312 = vector.broadcast %cst_132 : f32 to vector<48x512xf32>
    %313 = arith.mulf %312, %311 : vector<48x512xf32>
    %314 = arith.mulf %301, %313 : vector<48x512xf32>
    %315 = arith.truncf %314 : vector<48x512xf32> to vector<48x512xbf16>
    %c1_133 = arith.constant 1 : index
    %c0_134 = arith.constant 0 : index
    %c0_135 = arith.constant 0 : index
    %316 = vector.load %arg16[%c1_133, %c0_134, %c0_135] : memref<2x512x128xbf16, #tpu.memory_space<vmem>>, vector<1x512x128xbf16>
    %317 = vector.shape_cast %316 : vector<1x512x128xbf16> to vector<512x128xbf16>
    %cst_136 = arith.constant dense<0.000000e+00> : vector<48x128xf32>
    %318 = tpu.matmul %315, %317, %cst_136 {dimension_numbers = #tpu.dot_dimension_numbers<[1], [0], [0], [1], [0, 0, 1, 1], [], []>} : vector<48x512xbf16>, vector<512x128xbf16>, vector<48x128xf32> -> vector<48x128xf32>
    %c1_137 = arith.constant 1 : index
    %c0_138 = arith.constant 0 : index
    %c0_139 = arith.constant 0 : index
    %319 = vector.load %arg17[%c1_137, %c0_138, %c0_139] : memref<2x1x128xf32, #tpu.memory_space<vmem>>, vector<1x1x128xf32>
    %320 = vector.shape_cast %319 : vector<1x1x128xf32> to vector<1x128xf32>
    %321 = vector.broadcast %320 : vector<1x128xf32> to vector<48x128xf32>
    %322 = arith.addf %318, %321 : vector<48x128xf32>
    %323 = arith.addf %267, %322 : vector<48x128xf32>
    %c0_140 = arith.constant 0 : index
    %c0_141 = arith.constant 0 : index
    %324 = vector.load %arg18[%c0_140, %c0_141] : memref<1x128xf32, #tpu.memory_space<vmem>>, vector<1x128xf32>
    %c0_142 = arith.constant 0 : index
    %c0_143 = arith.constant 0 : index
    %325 = vector.load %arg19[%c0_142, %c0_143] : memref<1x128xf32, #tpu.memory_space<vmem>>, vector<1x128xf32>
    %cst_144 = arith.constant dense<0.000000e+00> : vector<48xf32>
    %326 = vector.multi_reduction <add>, %323, %cst_144 [1] : vector<48x128xf32> to vector<48xf32>
    %327 = vector.shape_cast %326 : vector<48xf32> to vector<48x1xf32>
    %cst_145 = arith.constant 1.280000e+02 : f32
    %328 = vector.broadcast %cst_145 : f32 to vector<48x1xf32>
    %329 = arith.divf %327, %328 : vector<48x1xf32>
    %330 = vector.broadcast %329 : vector<48x1xf32> to vector<48x128xf32>
    %331 = arith.subf %323, %330 : vector<48x128xf32>
    %332 = arith.mulf %331, %331 : vector<48x128xf32>
    %cst_146 = arith.constant dense<0.000000e+00> : vector<48xf32>
    %333 = vector.multi_reduction <add>, %332, %cst_146 [1] : vector<48x128xf32> to vector<48xf32>
    %334 = vector.shape_cast %333 : vector<48xf32> to vector<48x1xf32>
    %cst_147 = arith.constant 1.280000e+02 : f32
    %335 = vector.broadcast %cst_147 : f32 to vector<48x1xf32>
    %336 = arith.divf %334, %335 : vector<48x1xf32>
    %337 = vector.broadcast %329 : vector<48x1xf32> to vector<48x128xf32>
    %338 = arith.subf %323, %337 : vector<48x128xf32>
    %cst_148 = arith.constant 9.99999997E-7 : f32
    %339 = vector.broadcast %cst_148 : f32 to vector<48x1xf32>
    %340 = arith.addf %336, %339 : vector<48x1xf32>
    %341 = math.rsqrt %340 : vector<48x1xf32>
    %342 = vector.broadcast %341 : vector<48x1xf32> to vector<48x128xf32>
    %343 = arith.mulf %338, %342 : vector<48x128xf32>
    %344 = vector.broadcast %324 : vector<1x128xf32> to vector<48x128xf32>
    %345 = arith.mulf %343, %344 : vector<48x128xf32>
    %346 = vector.broadcast %325 : vector<1x128xf32> to vector<48x128xf32>
    %347 = arith.addf %345, %346 : vector<48x128xf32>
    %348 = vector.extract_strided_slice %347 {offsets = [0, 0], sizes = [17, 128], strides = [1, 1]} : vector<48x128xf32> to vector<17x128xf32>
    %cst_149 = arith.constant dense<0.000000e+00> : vector<128xf32>
    %349 = vector.multi_reduction <add>, %348, %cst_149 [0] : vector<17x128xf32> to vector<128xf32>
    %350 = vector.shape_cast %349 : vector<128xf32> to vector<1x128xf32>
    %351 = vector.extract_strided_slice %347 {offsets = [24, 0], sizes = [17, 128], strides = [1, 1]} : vector<48x128xf32> to vector<17x128xf32>
    %cst_150 = arith.constant dense<0.000000e+00> : vector<128xf32>
    %352 = vector.multi_reduction <add>, %351, %cst_150 [0] : vector<17x128xf32> to vector<128xf32>
    %353 = vector.shape_cast %352 : vector<128xf32> to vector<1x128xf32>
    %354 = tpu.concatenate %350, %353 in 0 : vector<1x128xf32>, vector<1x128xf32> -> vector<2x128xf32>
    %cst_151 = arith.constant 0.0588235296 : f32
    %355 = vector.broadcast %cst_151 : f32 to vector<2x128xf32>
    %356 = arith.mulf %354, %355 : vector<2x128xf32>
    %357 = arith.truncf %356 : vector<2x128xf32> to vector<2x128xbf16>
    %c0_152 = arith.constant 0 : index
    %c0_153 = arith.constant 0 : index
    %358 = vector.load %arg20[%c0_152, %c0_153] : memref<128x8xbf16, #tpu.memory_space<vmem>>, vector<128x8xbf16>
    %cst_154 = arith.constant dense<0.000000e+00> : vector<2x8xf32>
    %359 = tpu.matmul %357, %358, %cst_154 {dimension_numbers = #tpu.dot_dimension_numbers<[1], [0], [0], [1], [0, 0, 1, 1], [], []>} : vector<2x128xbf16>, vector<128x8xbf16>, vector<2x8xf32> -> vector<2x8xf32>
    %c0_155 = arith.constant 0 : index
    %c0_156 = arith.constant 0 : index
    %360 = vector.load %arg21[%c0_155, %c0_156] : memref<1x8xf32, #tpu.memory_space<vmem>>, vector<1x8xf32>
    %361 = vector.broadcast %360 : vector<1x8xf32> to vector<2x8xf32>
    %362 = arith.addf %359, %361 : vector<2x8xf32>
    %c0_157 = arith.constant 0 : index
    %c0_158 = arith.constant 0 : index
    %363 = vector.load %arg22[%c0_157, %c0_158] : memref<2x8xf32, #tpu.memory_space<vmem>>, vector<2x8xf32>
    tpu.vector_store %arg22[%c0_157, %c0_158], %362 {strides = array<i32>} : memref<2x8xf32, #tpu.memory_space<vmem>>, vector<2x8xf32>,
    return
  }
}

</mosaic_0001>

<llo_original>
// kernel: tpu_custom_call.1
$region0: #{tpu_custom_call.1}
  #allocation0 [shape = 'u32[]', space=smem, size = 0x4, offset = 0x4, fixed_abs, tag = 'smem constant byte address 0x4 - core index']
  #allocation1 [shape = 'u32[72,128]{1,0:T(1,128)}', space=vmem, size = 0x9000, scoped, tag = 'internal scratch']
  #allocation2 [shape = 'f32[48,128]{1,0:T(8,128)}', space=vmem, size = 0x6000, scoped, tag = 'scratch operand']
  %s0 = inlined_call_operand.vmem [shape: bf16[32,48], index: 0, kind: input, shape index: {}]
  %s1 = inlined_call_operand.hbm [shape: bf16[48,128], index: 1, kind: input, shape index: {}]
  %s2 = inlined_call_operand.hbm [shape: f32[1,128], index: 2, kind: input, shape index: {}]
  %s3 = inlined_call_operand.hbm [shape: f32[1,128], index: 3, kind: input, shape index: {}]
  %s4 = inlined_call_operand.hbm [shape: f32[17,128], index: 4, kind: input, shape index: {}]
  %s5 = inlined_call_operand.vmem [shape: f32[1,48,48], index: 5, kind: input, shape index: {}]
  %s6 = inlined_call_operand.vmem [shape: f32[2,1,128], index: 6, kind: input, shape index: {}]
  %s7 = inlined_call_operand.vmem [shape: f32[2,1,128], index: 7, kind: input, shape index: {}]
  %s8 = inlined_call_operand.hbm [shape: bf16[2,128,384], index: 8, kind: input, shape index: {}]
  %s9 = inlined_call_operand.hbm [shape: f32[2,1,384], index: 9, kind: input, shape index: {}]
  %s10 = inlined_call_operand.hbm [shape: bf16[2,128,128], index: 10, kind: input, shape index: {}]
  %s11 = inlined_call_operand.hbm [shape: f32[2,1,128], index: 11, kind: input, shape index: {}]
  %s12 = inlined_call_operand.hbm [shape: f32[2,1,128], index: 12, kind: input, shape index: {}]
  %s13 = inlined_call_operand.hbm [shape: f32[2,1,128], index: 13, kind: input, shape index: {}]
  %s14 = inlined_call_operand.hbm [shape: bf16[2,128,512], index: 14, kind: input, shape index: {}]
  %s15 = inlined_call_operand.vmem [shape: f32[2,1,512], index: 15, kind: input, shape index: {}]
  %s16 = inlined_call_operand.hbm [shape: bf16[2,512,128], index: 16, kind: input, shape index: {}]
  %s17 = inlined_call_operand.vmem [shape: f32[2,1,128], index: 17, kind: input, shape index: {}]
  %s18 = inlined_call_operand.vmem [shape: f32[1,128], index: 18, kind: input, shape index: {}]
  %s19 = inlined_call_operand.vmem [shape: f32[1,128], index: 19, kind: input, shape index: {}]
  %s20 = inlined_call_operand.vmem [shape: bf16[128,8], index: 20, kind: input, shape index: {}]
  %s21 = inlined_call_operand.vmem [shape: f32[1,8], index: 21, kind: input, shape index: {}]
  %s22 = inlined_call_operand.hbm [shape: f32[2,8], index: 22, kind: output, shape index: {}]
  %s23 = sld [smem:[#allocation0]]
  $region146: #{tpu_custom_call.1} parent=0
    _
  %s25 = ssub.s32 1, %s23
  %s26 = scalar_select 0, %s25, %s23
  $region1: #{tpu_custom_call.1} parent=0
    #allocation3 [shape = 'u8[12288]{0}', space=vmem, size = 0x3000, scoped, tag = 'input window, operand 1, single buffered']
    #allocation4 [shape = 's32[1]{0}', space=sflag, size = 0x4, scoped, tag = 'scoped memory for tpu_custom_call.1']
    #allocation5 [shape = 's32[1]{0}', space=sflag, size = 0x4, scoped, tag = 'scoped memory for tpu_custom_call.1']
    #allocation6 [shape = 'u8[512]{0}', space=vmem, size = 0x400, scoped, tag = 'input window, operand 2, single buffered']
    #allocation7 [shape = 's32[1]{0}', space=sflag, size = 0x4, scoped, tag = 'scoped memory for tpu_custom_call.1']
    #allocation8 [shape = 'u8[512]{0}', space=vmem, size = 0x400, scoped, tag = 'input window, operand 3, single buffered']
    #allocation9 [shape = 'u8[12288]{0}', space=vmem, size = 0x3000, scoped, tag = 'input window, operand 4, single buffered']
    #allocation10 [shape = 's32[1]{0}', space=sflag, size = 0x4, scoped, tag = 'scoped memory for tpu_custom_call.1']
    #allocation11 [shape = 'u8[196608]{0}', space=vmem, size = 0x30000, scoped, tag = 'input window, operand 8, single buffered']
    #allocation12 [shape = 'u8[3072]{0}', space=vmem, size = 0xc00, scoped, tag = 'input window, operand 9, single buffered']
    #allocation13 [shape = 's32[1]{0}', space=sflag, size = 0x4, scoped, tag = 'scoped memory for tpu_custom_call.1']
    #allocation14 [shape = 'u8[65536]{0}', space=vmem, size = 0x10000, scoped, tag = 'input window, operand 10, single buffered']
    #allocation15 [shape = 'u8[1024]{0}', space=vmem, size = 0x400, scoped, tag = 'input window, operand 11, single buffered']
    #allocation16 [shape = 's32[1]{0}', space=sflag, size = 0x4, scoped, tag = 'scoped memory for tpu_custom_call.1']
    #allocation17 [shape = 'u8[1024]{0}', space=vmem, size = 0x400, scoped, tag = 'input window, operand 12, single buffered']
    #allocation18 [shape = 'u8[1024]{0}', space=vmem, size = 0x400, scoped, tag = 'input window, operand 13, single buffered']
    #allocation19 [shape = 's32[1]{0}', space=sflag, size = 0x4, scoped, tag = 'scoped memory for tpu_custom_call.1']
    #allocation20 [shape = 'u8[262144]{0}', space=vmem, size = 0x40000, scoped, tag = 'input window, operand 14, single buffered']
    #allocation21 [shape = 'u8[262144]{0}', space=vmem, size = 0x40000, scoped, tag = 'input window, operand 16, single buffered']
    #allocation22 [shape = 's32[1]{0}', space=sflag, size = 0x4, scoped, tag = 'scoped memory for tpu_custom_call.1']
    #allocation23 [shape = 'u8[1024]{0}', space=vmem, size = 0x400, scoped, tag = 'output window, operand 0, single buffered']
    %27 = vsyncpa [#allocation4], 0
    %28 = vsyncpa [#allocation7], 0
    %29 = vsyncpa [#allocation10], 0
    %30 = vsyncpa [#allocation13], 0
    %31 = vsyncpa [#allocation16], 0
    %32 = vsyncpa [#allocation19], 0
    %33 = vsyncpa [#allocation22], 0
    %34 = vsyncpa [#allocation5], 0
    // Predicated region
    $region2: #{tpu_custom_call.1} parent=1 // pred_check
      _
    $region3: #{tpu_custom_call.1} parent=1 // pred_check_branch
      %36 = sbr.rel (0) target = $region5
    $region4: #{tpu_custom_call.1} parent=1 // pred_region
      _
    $region5: #{tpu_custom_call.1} parent=1 // pred_fallthru
      _
    // Predicated region
    $region6: #{tpu_custom_call.1} parent=1 // pred_check
      _
    $region7: #{tpu_custom_call.1} parent=1 // pred_check_branch
      %38 = sbr.rel (0) target = $region9
    $region8: #{tpu_custom_call.1} parent=1 // pred_region
      %40 = vsyncadd [#allocation4], 0
      %s41 = sshll.u32 %s1, 4
      %s42 = int_to_ptr.hbm [resolvable:$true] %s41
      %s43 = sshll.u32 [#allocation3], 4
      %s44 = int_to_ptr.vmem [resolvable:$true] %s43
      %49 = dma.hbm_to_vmem [thread:$0]  %s42, 384, %s44, [#allocation4], 64, 64, 4
    $region9: #{tpu_custom_call.1} parent=1 // pred_fallthru
      _
    // Predicated region
    $region10: #{tpu_custom_call.1} parent=1 // pred_check
      _
    $region11: #{tpu_custom_call.1} parent=1 // pred_check_branch
      %51 = sbr.rel (0) target = $region13
    $region12: #{tpu_custom_call.1} parent=1 // pred_region
      %53 = vsyncadd [#allocation7], 0
      %s55 = sshll.u32 %s2, 4
      %s56 = int_to_ptr.hbm [resolvable:$true] %s55
      %s57 = sshll.u32 [#allocation6], 4
      %s58 = int_to_ptr.vmem [resolvable:$true] %s57
      %60 = dma.hbm_to_vmem [thread:$0]  %s56, 16, %s58, [#allocation7]
    $region13: #{tpu_custom_call.1} parent=1 // pred_fallthru
      _
    // Predicated region
    $region14: #{tpu_custom_call.1} parent=1 // pred_check
      _
    $region15: #{tpu_custom_call.1} parent=1 // pred_check_branch
      %62 = sbr.rel (0) target = $region17
    $region16: #{tpu_custom_call.1} parent=1 // pred_region
      %64 = vsyncadd [#allocation7], 0
      %s66 = sshll.u32 %s3, 4
      %s67 = int_to_ptr.hbm [resolvable:$true] %s66
      %s68 = sshll.u32 [#allocation8], 4
      %s69 = int_to_ptr.vmem [resolvable:$true] %s68
      %71 = dma.hbm_to_vmem [thread:$0]  %s67, 16, %s69, [#allocation7]
    $region17: #{tpu_custom_call.1} parent=1 // pred_fallthru
      _
    // Predicated region
    $region18: #{tpu_custom_call.1} parent=1 // pred_check
      _
    $region19: #{tpu_custom_call.1} parent=1 // pred_check_branch
      %73 = sbr.rel (0) target = $region21
    $region20: #{tpu_custom_call.1} parent=1 // pred_region
      %75 = vsyncadd [#allocation10], 0
      %s76 = sshll.u32 %s4, 4
      %s77 = int_to_ptr.hbm [resolvable:$true] %s76
      %s78 = sshll.u32 [#allocation9], 4
      %s79 = int_to_ptr.vmem [resolvable:$true] %s78
      %84 = dma.hbm_to_vmem [thread:$0]  %s77, 384, %s79, [#allocation10], 128, 128, 8
    $region21: #{tpu_custom_call.1} parent=1 // pred_fallthru
      _
    // Predicated region
    $region22: #{tpu_custom_call.1} parent=1 // pred_check
      _
    $region23: #{tpu_custom_call.1} parent=1 // pred_check_branch
      %86 = sbr.rel (0) target = $region25
    $region24: #{tpu_custom_call.1} parent=1 // pred_region
      _
    $region25: #{tpu_custom_call.1} parent=1 // pred_fallthru
      _
    // Predicated region
    $region26: #{tpu_custom_call.1} parent=1 // pred_check
      _
    $region27: #{tpu_custom_call.1} parent=1 // pred_check_branch
      %88 = sbr.rel (0) target = $region29
    $region28: #{tpu_custom_call.1} parent=1 // pred_region
      _
    $region29: #{tpu_custom_call.1} parent=1 // pred_fallthru
      _
    // Predicated region
    $region30: #{tpu_custom_call.1} parent=1 // pred_check
      _
    $region31: #{tpu_custom_call.1} parent=1 // pred_check_branch
      %90 = sbr.rel (0) target = $region33
    $region32: #{tpu_custom_call.1} parent=1 // pred_region
      _
    $region33: #{tpu_custom_call.1} parent=1 // pred_fallthru
      _
    // Predicated region
    $region34: #{tpu_custom_call.1} parent=1 // pred_check
      _
    $region35: #{tpu_custom_call.1} parent=1 // pred_check_branch
      %92 = sbr.rel (0) target = $region37
    $region36: #{tpu_custom_call.1} parent=1 // pred_region
      %94 = vsyncadd [#allocation10], 0
      %s95 = sshll.u32 %s8, 4
      %s96 = int_to_ptr.hbm [resolvable:$true] %s95
      %s97 = sshll.u32 [#allocation11], 4
      %s98 = int_to_ptr.vmem [resolvable:$true] %s97
      %103 = dma.hbm_to_vmem [thread:$0]  %s96, 6144, %s98, [#allocation10], 192, 192, 12
    $region37: #{tpu_custom_call.1} parent=1 // pred_fallthru
      _
    // Predicated region
    $region38: #{tpu_custom_call.1} parent=1 // pred_check
      _
    $region39: #{tpu_custom_call.1} parent=1 // pred_check_branch
      %105 = sbr.rel (0) target = $region41
    $region40: #{tpu_custom_call.1} parent=1 // pred_region
      %107 = vsyncadd [#allocation13], 0
      %s108 = sshll.u32 %s9, 4
      %s109 = int_to_ptr.hbm [resolvable:$true] %s108
      %s110 = sshll.u32 [#allocation12], 4
      %s111 = int_to_ptr.vmem [resolvable:$true] %s110
      %116 = dma.hbm_to_vmem [thread:$0]  %s109, 96, %s111, [#allocation13], 48, 48, 3
    $region41: #{tpu_custom_call.1} parent=1 // pred_fallthru
      _
    // Predicated region
    $region42: #{tpu_custom_call.1} parent=1 // pred_check
      _
    $region43: #{tpu_custom_call.1} parent=1 // pred_check_branch
      %118 = sbr.rel (0) target = $region45
    $region44: #{tpu_custom_call.1} parent=1 // pred_region
      %120 = vsyncadd [#allocation13], 0
      %s121 = sshll.u32 %s10, 4
      %s122 = int_to_ptr.hbm [resolvable:$true] %s121
      %s123 = sshll.u32 [#allocation14], 4
      %s124 = int_to_ptr.vmem [resolvable:$true] %s123
      %129 = dma.hbm_to_vmem [thread:$0]  %s122, 2048, %s124, [#allocation13], 64, 64, 4
    $region45: #{tpu_custom_call.1} parent=1 // pred_fallthru
      _
    // Predicated region
    $region46: #{tpu_custom_call.1} parent=1 // pred_check
      _
    $region47: #{tpu_custom_call.1} parent=1 // pred_check_branch
      %131 = sbr.rel (0) target = $region49
    $region48: #{tpu_custom_call.1} parent=1 // pred_region
      %133 = vsyncadd [#allocation16], 0
      %s134 = sshll.u32 %s11, 4
      %s135 = int_to_ptr.hbm [resolvable:$true] %s134
      %s136 = sshll.u32 [#allocation15], 4
      %s137 = int_to_ptr.vmem [resolvable:$true] %s136
      %142 = dma.hbm_to_vmem [thread:$0]  %s135, 32, %s137, [#allocation16], 16, 16, 1
    $region49: #{tpu_custom_call.1} parent=1 // pred_fallthru
      _
    // Predicated region
    $region50: #{tpu_custom_call.1} parent=1 // pred_check
      _
    $region51: #{tpu_custom_call.1} parent=1 // pred_check_branch
      %144 = sbr.rel (0) target = $region53
    $region52: #{tpu_custom_call.1} parent=1 // pred_region
      %146 = vsyncadd [#allocation16], 0
      %s147 = sshll.u32 %s12, 4
      %s148 = int_to_ptr.hbm [resolvable:$true] %s147
      %s149 = sshll.u32 [#allocation17], 4
      %s150 = int_to_ptr.vmem [resolvable:$true] %s149
      %155 = dma.hbm_to_vmem [thread:$0]  %s148, 32, %s150, [#allocation16], 16, 16, 1
    $region53: #{tpu_custom_call.1} parent=1 // pred_fallthru
      _
    // Predicated region
    $region54: #{tpu_custom_call.1} parent=1 // pred_check
      _
    $region55: #{tpu_custom_call.1} parent=1 // pred_check_branch
      %157 = sbr.rel (0) target = $region57
    $region56: #{tpu_custom_call.1} parent=1 // pred_region
      %159 = vsyncadd [#allocation19], 0
      %s160 = sshll.u32 %s13, 4
      %s161 = int_to_ptr.hbm [resolvable:$true] %s160
      %s162 = sshll.u32 [#allocation18], 4
      %s163 = int_to_ptr.vmem [resolvable:$true] %s162
      %168 = dma.hbm_to_vmem [thread:$0]  %s161, 32, %s163, [#allocation19], 16, 16, 1
    $region57: #{tpu_custom_call.1} parent=1 // pred_fallthru
      _
    // Predicated region
    $region58: #{tpu_custom_call.1} parent=1 // pred_check
      _
    $region59: #{tpu_custom_call.1} parent=1 // pred_check_branch
      %170 = sbr.rel (0) target = $region61
    $region60: #{tpu_custom_call.1} parent=1 // pred_region
      %172 = vsyncadd [#allocation19], 0
      %s173 = sshll.u32 %s14, 4
      %s174 = int_to_ptr.hbm [resolvable:$true] %s173
      %s175 = sshll.u32 [#allocation20], 4
      %s176 = int_to_ptr.vmem [resolvable:$true] %s175
      %181 = dma.hbm_to_vmem [thread:$0]  %s174, 8192, %s176, [#allocation19], 256, 256, 16
    $region61: #{tpu_custom_call.1} parent=1 // pred_fallthru
      _
    // Predicated region
    $region62: #{tpu_custom_call.1} parent=1 // pred_check
      _
    $region63: #{tpu_custom_call.1} parent=1 // pred_check_branch
      %183 = sbr.rel (0) target = $region65
    $region64: #{tpu_custom_call.1} parent=1 // pred_region
      _
    $region65: #{tpu_custom_call.1} parent=1 // pred_fallthru
      _
    // Predicated region
    $region66: #{tpu_custom_call.1} parent=1 // pred_check
      _
    $region67: #{tpu_custom_call.1} parent=1 // pred_check_branch
      %185 = sbr.rel (0) target = $region69
    $region68: #{tpu_custom_call.1} parent=1 // pred_region
      %187 = vsyncadd [#allocation22], 0
      %s188 = sshll.u32 %s16, 4
      %s189 = int_to_ptr.hbm [resolvable:$true] %s188
      %s190 = sshll.u32 [#allocation21], 4
      %s191 = int_to_ptr.vmem [resolvable:$true] %s190
      %196 = dma.hbm_to_vmem [thread:$0]  %s189, 8192, %s191, [#allocation22], 64, 64, 4
    $region69: #{tpu_custom_call.1} parent=1 // pred_fallthru
      _
    // Predicated region
    $region70: #{tpu_custom_call.1} parent=1 // pred_check
      _
    $region71: #{tpu_custom_call.1} parent=1 // pred_check_branch
      %198 = sbr.rel (0) target = $region73
    $region72: #{tpu_custom_call.1} parent=1 // pred_region
      _
    $region73: #{tpu_custom_call.1} parent=1 // pred_fallthru
      _
    // Predicated region
    $region74: #{tpu_custom_call.1} parent=1 // pred_check
      _
    $region75: #{tpu_custom_call.1} parent=1 // pred_check_branch
      %200 = sbr.rel (0) target = $region77
    $region76: #{tpu_custom_call.1} parent=1 // pred_region
      _
    $region77: #{tpu_custom_call.1} parent=1 // pred_fallthru
      _
    // Predicated region
    $region78: #{tpu_custom_call.1} parent=1 // pred_check
      _
    $region79: #{tpu_custom_call.1} parent=1 // pred_check_branch
      %202 = sbr.rel (0) target = $region81
    $region80: #{tpu_custom_call.1} parent=1 // pred_region
      _
    $region81: #{tpu_custom_call.1} parent=1 // pred_fallthru
      _
    // Predicated region
    $region82: #{tpu_custom_call.1} parent=1 // pred_check
      _
    $region83: #{tpu_custom_call.1} parent=1 // pred_check_branch
      %204 = sbr.rel (0) target = $region85
    $region84: #{tpu_custom_call.1} parent=1 // pred_region
      _
    $region85: #{tpu_custom_call.1} parent=1 // pred_fallthru
      _
    // Predicated region
    $region86: #{tpu_custom_call.1} parent=1 // pred_check
      _
    $region87: #{tpu_custom_call.1} parent=1 // pred_check_branch
      %206 = sbr.rel (0) target = $region89
    $region88: #{tpu_custom_call.1} parent=1 // pred_region
      _
    $region89: #{tpu_custom_call.1} parent=1 // pred_fallthru
      _
    // Predicated region
    $region90: #{tpu_custom_call.1} parent=1 // pred_check
      _
    $region91: #{tpu_custom_call.1} parent=1 // pred_check_branch
      %208 = sbr.rel (0) target = $region93
    $region92: #{tpu_custom_call.1} parent=1 // pred_region
      %210 = dma.done [#allocation4], 384
    $region93: #{tpu_custom_call.1} parent=1 // pred_fallthru
      _
    // Predicated region
    $region94: #{tpu_custom_call.1} parent=1 // pred_check
      _
    $region95: #{tpu_custom_call.1} parent=1 // pred_check_branch
      %212 = sbr.rel (0) target = $region97
    $region96: #{tpu_custom_call.1} parent=1 // pred_region
      %214 = dma.done [#allocation7], 16
    $region97: #{tpu_custom_call.1} parent=1 // pred_fallthru
      _
    // Predicated region
    $region98: #{tpu_custom_call.1} parent=1 // pred_check
      _
    $region99: #{tpu_custom_call.1} parent=1 // pred_check_branch
      %216 = sbr.rel (0) target = $region101
    $region100: #{tpu_custom_call.1} parent=1 // pred_region
      %218 = dma.done [#allocation7], 16
    $region101: #{tpu_custom_call.1} parent=1 // pred_fallthru
      _
    // Predicated region
    $region102: #{tpu_custom_call.1} parent=1 // pred_check
      _
    $region103: #{tpu_custom_call.1} parent=1 // pred_check_branch
      %220 = sbr.rel (0) target = $region105
    $region104: #{tpu_custom_call.1} parent=1 // pred_region
      %222 = dma.done [#allocation10], 384
    $region105: #{tpu_custom_call.1} parent=1 // pred_fallthru
      _
    // Predicated region
    $region106: #{tpu_custom_call.1} parent=1 // pred_check
      _
    $region107: #{tpu_custom_call.1} parent=1 // pred_check_branch
      %224 = sbr.rel (0) target = $region109
    $region108: #{tpu_custom_call.1} parent=1 // pred_region
      %226 = dma.done [#allocation10], 6144
    $region109: #{tpu_custom_call.1} parent=1 // pred_fallthru
      _
    // Predicated region
    $region110: #{tpu_custom_call.1} parent=1 // pred_check
      _
    $region111: #{tpu_custom_call.1} parent=1 // pred_check_branch
      %228 = sbr.rel (0) target = $region113
    $region112: #{tpu_custom_call.1} parent=1 // pred_region
      %230 = dma.done [#allocation13], 96
    $region113: #{tpu_custom_call.1} parent=1 // pred_fallthru
      _
    // Predicated region
    $region114: #{tpu_custom_call.1} parent=1 // pred_check
      _
    $region115: #{tpu_custom_call.1} parent=1 // pred_check_branch
      %232 = sbr.rel (0) target = $region117
    $region116: #{tpu_custom_call.1} parent=1 // pred_region
      %234 = dma.done [#allocation13], 2048
    $region117: #{tpu_custom_call.1} parent=1 // pred_fallthru
      _
    // Predicated region
    $region118: #{tpu_custom_call.1} parent=1 // pred_check
      _
    $region119: #{tpu_custom_call.1} parent=1 // pred_check_branch
      %236 = sbr.rel (0) target = $region121
    $region120: #{tpu_custom_call.1} parent=1 // pred_region
      %238 = dma.done [#allocation16], 32
    $region121: #{tpu_custom_call.1} parent=1 // pred_fallthru
      _
    // Predicated region
    $region122: #{tpu_custom_call.1} parent=1 // pred_check
      _
    $region123: #{tpu_custom_call.1} parent=1 // pred_check_branch
      %240 = sbr.rel (0) target = $region125
    $region124: #{tpu_custom_call.1} parent=1 // pred_region
      %242 = dma.done [#allocation16], 32
    $region125: #{tpu_custom_call.1} parent=1 // pred_fallthru
      _
    // Predicated region
    $region126: #{tpu_custom_call.1} parent=1 // pred_check
      _
    $region127: #{tpu_custom_call.1} parent=1 // pred_check_branch
      %244 = sbr.rel (0) target = $region129
    $region128: #{tpu_custom_call.1} parent=1 // pred_region
      %246 = dma.done [#allocation19], 32
    $region129: #{tpu_custom_call.1} parent=1 // pred_fallthru
      _
    // Predicated region
    $region130: #{tpu_custom_call.1} parent=1 // pred_check
      _
    $region131: #{tpu_custom_call.1} parent=1 // pred_check_branch
      %248 = sbr.rel (0) target = $region133
    $region132: #{tpu_custom_call.1} parent=1 // pred_region
      %250 = dma.done [#allocation19], 8192
    $region133: #{tpu_custom_call.1} parent=1 // pred_fallthru
      _
    // Predicated region
    $region134: #{tpu_custom_call.1} parent=1 // pred_check
      _
    $region135: #{tpu_custom_call.1} parent=1 // pred_check_branch
      %252 = sbr.rel (0) target = $region137
    $region136: #{tpu_custom_call.1} parent=1 // pred_region
      %254 = dma.done [#allocation22], 8192
    $region137: #{tpu_custom_call.1} parent=1 // pred_fallthru
      _
    %v256 = vld [vmem:[%s0] sm:$0xf]
    %v257 = vld [vmem:[%s0 + $0x4] sm:$0xf]
    %v258 = vld [vmem:[%s0 + $0x8] sm:$0xf]
    %v259 = vld [vmem:[%s0 + $0xc] sm:$0xf]
    %v260 = vld [vmem:[#allocation3] sm:$0xf]
    %v261 = vld [vmem:[#allocation3 + $0x4] sm:$0xf]
    %v262 = vld [vmem:[#allocation3 + $0x8] sm:$0xf]
    %v263 = vld [vmem:[#allocation3 + $0xc] sm:$0xf]
    %v264 = vld [vmem:[#allocation3 + $0x10] sm:$0xf]
    %v265 = vld [vmem:[#allocation3 + $0x14] sm:$0xf]
    %v266 = vld [vmem:[#allocation6] sm:$0x1]
    %v268 = vperm.slane %v266, 0
    %v274 = vunpack.c.l.b16 %v256
    %v275 = vunpack.c.l.b16 %v257
    %v276 = vunpack.c.l.b16 %v258
    %v277 = vunpack.c.l.b16 %v259
    %v278 = vpack.c.b16 %v275, %v274
    %v279 = vpack.c.b16 %v277, %v276
    %v286 = vunpack.c.l.b16 %v260
    %v287 = vunpack.c.l.b16 %v261
    %v288 = vunpack.c.l.b16 %v262
    %v289 = vunpack.c.l.b16 %v263
    %v290 = vunpack.c.l.b16 %v264
    %v291 = vunpack.c.l.b16 %v265
    %v292 = vpack.c.b16 %v287, %v286
    %v293 = vpack.c.b16 %v289, %v288
    %v294 = vpack.c.b16 %v291, %v290
    %vm298 = vcmask 392192
    %v300 = vsel %vm298, %v278, 0
    %v303 = vsel %vm298, %v279, 0
    %305 = vmatpush.bf16.msra.mxu0 0
    %306 = vmatpush.bf16.msra.mxu0 0
    %307 = vmatpush.bf16.msra.mxu0 0
    %308 = vmatpush.bf16.msra.mxu0 0
    %309 = vmatpush.bf16.msra.mxu0 0
    %310 = vmatpush.bf16.msra.mxu0 %v294
    %311 = vmatpush.bf16.msra.mxu0 %v293
    %312 = vmatpush.bf16.msra.mxu0 %v292
    %313 = vmatmul.bf16.gmra.mxu0 %v300
    %v314 = vpop.f32.mrf.mxu0
    %v315 = vadd.f32 %v268, %v314
    %v316 = vpop.f32.mrf.mxu0
    %v317 = vadd.f32 %v268, %v316
    %318 = vmatmul.bf16.gmra.mxu0 %v303
    %v319 = vpop.f32.mrf.mxu0
    %v320 = vadd.f32 %v268, %v319
    %v321 = vpop.f32.mrf.mxu0
    %v322 = vadd.f32 %v268, %v321
    %323 = vdwg.mxu0
    %v324 = vld [vmem:[#allocation8] sm:$0x1]
    %v325 = vld [vmem:[#allocation9] sm:$0x1]
    %v326 = vadd.f32 %v324, %v325
    %v327 = vld [vmem:[#allocation9 + $0x1] sm:$0xff]
    %v328 = vld [vmem:[#allocation9 + $0x9] sm:$0xff]
    %329 = vst [vmem:[#allocation2] sm:$0xff] 0.0
    %330 = vst [vmem:[#allocation2 + $0x8] sm:$0xff] 0.0
    %331 = vst [vmem:[#allocation2 + $0x10] sm:$0xff] 0.0
    %332 = vst [vmem:[#allocation2 + $0x18] sm:$0xff] 0.0
    %333 = vst [vmem:[#allocation2 + $0x20] sm:$0xff] 0.0
    %334 = vst [vmem:[#allocation2 + $0x28] sm:$0xff] 0.0
    %335 = vst [vmem:[#allocation2] sm:$0x1] %v326
    %v336 = vadd.f32 %v315, %v327
    %v337 = vadd.f32 %v317, %v328
    %338 = vst [vmem:[#allocation2 + $0x1] sm:$0xff] %v336
    %339 = vst [vmem:[#allocation2 + $0x9] sm:$0xff] %v337
    %340 = vst [vmem:[#allocation2 + $0x18] sm:$0x1] %v326
    %v341 = vadd.f32 %v320, %v327
    %v342 = vadd.f32 %v322, %v328
    %343 = vst [vmem:[#allocation2 + $0x19] sm:$0xff] %v341
    %344 = vst [vmem:[#allocation2 + $0x21] sm:$0xff] %v342
    %v345 = vld [vmem:[#allocation2] sm:$0xff]
    %v346 = vld [vmem:[#allocation2 + $0x8] sm:$0xff]
    %v347 = vld [vmem:[#allocation2 + $0x10] sm:$0xff]
    %v348 = vld [vmem:[#allocation2 + $0x18] sm:$0xff]
    %v349 = vld [vmem:[#allocation2 + $0x20] sm:$0xff]
    %v350 = vld [vmem:[#allocation2 + $0x28] sm:$0xff]
    %v351 = vld [vmem:[%s5] sm:$0xff]
    %v352 = vld [vmem:[%s5 + $0x8] sm:$0xff]
    %v353 = vld [vmem:[%s5 + $0x10] sm:$0xff]
    %v354 = vld [vmem:[%s5 + $0x18] sm:$0xff]
    %v355 = vld [vmem:[%s5 + $0x20] sm:$0xff]
    %v356 = vld [vmem:[%s5 + $0x28] sm:$0xff]
    %v357 = vld [vmem:[%s6] sm:$0x1]
    %v358 = vld [vmem:[%s7] sm:$0x1]
    %359 = vadd.xlane.f32.xlu0 %v345
    %v360 = vpop.xlane.xlu0 %359
    %361 = vadd.xlane.f32.xlu0 %v346
    %v362 = vpop.xlane.xlu0 %361
    %363 = vadd.xlane.f32.xlu0 %v347
    %v364 = vpop.xlane.xlu0 %363
    %365 = vadd.xlane.f32.xlu0 %v348
    %v366 = vpop.xlane.xlu0 %365
    %367 = vadd.xlane.f32.xlu0 %v349
    %v368 = vpop.xlane.xlu0 %367
    %369 = vadd.xlane.f32.xlu0 %v350
    %v370 = vpop.xlane.xlu0 %369
    %v371 = vrcp.pop 128.0
    %v372 = vmul.f32 128.0, %v371
    %v373 = vsub.f32 1.0, %v372
    %v374 = vmul.f32 %v371, %v373
    %v375 = vadd.f32 %v371, %v374
    %vm376 = vweird.f32 %v371
    %v377 = vsel %vm376, %v371, %v375
    %v378 = vmul.f32 %v360, %v377
    %v379 = vmul.f32 %v362, %v377
    %v380 = vmul.f32 %v364, %v377
    %v381 = vmul.f32 %v366, %v377
    %v382 = vmul.f32 %v368, %v377
    %v383 = vmul.f32 %v370, %v377
    %v384 = vsub.f32 %v345, %v378
    %v385 = vsub.f32 %v346, %v379
    %v386 = vsub.f32 %v347, %v380
    %v387 = vsub.f32 %v348, %v381
    %v388 = vsub.f32 %v349, %v382
    %v389 = vsub.f32 %v350, %v383
    %v390 = vmul.f32 %v384, %v384
    %v391 = vmul.f32 %v385, %v385
    %v392 = vmul.f32 %v386, %v386
    %v393 = vmul.f32 %v387, %v387
    %v394 = vmul.f32 %v388, %v388
    %v395 = vmul.f32 %v389, %v389
    %396 = vadd.xlane.f32.xlu0 %v390
    %v397 = vpop.xlane.xlu0 %396
    %398 = vadd.xlane.f32.xlu0 %v391
    %v399 = vpop.xlane.xlu0 %398
    %400 = vadd.xlane.f32.xlu0 %v392
    %v401 = vpop.xlane.xlu0 %400
    %402 = vadd.xlane.f32.xlu0 %v393
    %v403 = vpop.xlane.xlu0 %402
    %404 = vadd.xlane.f32.xlu0 %v394
    %v405 = vpop.xlane.xlu0 %404
    %406 = vadd.xlane.f32.xlu0 %v395
    %v407 = vpop.xlane.xlu0 %406
    %v408 = vmul.f32 %v397, %v377
    %v409 = vmul.f32 %v399, %v377
    %v410 = vmul.f32 %v401, %v377
    %v411 = vmul.f32 %v403, %v377
    %v412 = vmul.f32 %v405, %v377
    %v413 = vmul.f32 %v407, %v377
    %v414 = vadd.f32 %v408, 1e-06
    %v415 = vadd.f32 %v409, 1e-06
    %v416 = vadd.f32 %v410, 1e-06
    %v417 = vadd.f32 %v411, 1e-06
    %v418 = vadd.f32 %v412, 1e-06
    %v419 = vadd.f32 %v413, 1e-06
    %v420 = vrsqrt.pop %v414
    %v421 = vmul.f32 %v420, %v414
    %v422 = vmul.f32 %v421, %v420
    %v423 = vmul.f32 0.5, %v422
    %v424 = vsub.f32 1.5, %v423
    %v425 = vmul.f32 %v420, %v424
    %vm426 = vweird.f32 %v414
    %vm427 = vweird.f32 %v420
    %vm428 = vmor %vm426, %vm427
    %v429 = vsel %vm428, %v420, %v425
    %v430 = vrsqrt.pop %v415
    %v431 = vmul.f32 %v430, %v415
    %v432 = vmul.f32 %v431, %v430
    %v433 = vmul.f32 0.5, %v432
    %v434 = vsub.f32 1.5, %v433
    %v435 = vmul.f32 %v430, %v434
    %vm436 = vweird.f32 %v415
    %vm437 = vweird.f32 %v430
    %vm438 = vmor %vm436, %vm437
    %v439 = vsel %vm438, %v430, %v435
    %v440 = vrsqrt.pop %v416
    %v441 = vmul.f32 %v440, %v416
    %v442 = vmul.f32 %v441, %v440
    %v443 = vmul.f32 0.5, %v442
    %v444 = vsub.f32 1.5, %v443
    %v445 = vmul.f32 %v440, %v444
    %vm446 = vweird.f32 %v416
    %vm447 = vweird.f32 %v440
    %vm448 = vmor %vm446, %vm447
    %v449 = vsel %vm448, %v440, %v445
    %v450 = vrsqrt.pop %v417
    %v451 = vmul.f32 %v450, %v417
    %v452 = vmul.f32 %v451, %v450
    %v453 = vmul.f32 0.5, %v452
    %v454 = vsub.f32 1.5, %v453
    %v455 = vmul.f32 %v450, %v454
    %vm456 = vweird.f32 %v417
    %vm457 = vweird.f32 %v450
    %vm458 = vmor %vm456, %vm457
    %v459 = vsel %vm458, %v450, %v455
    %v460 = vrsqrt.pop %v418
    %v461 = vmul.f32 %v460, %v418
    %v462 = vmul.f32 %v461, %v460
    %v463 = vmul.f32 0.5, %v462
    %v464 = vsub.f32 1.5, %v463
    %v465 = vmul.f32 %v460, %v464
    %vm466 = vweird.f32 %v418
    %vm467 = vweird.f32 %v460
    %vm468 = vmor %vm466, %vm467
    %v469 = vsel %vm468, %v460, %v465
    %v470 = vrsqrt.pop %v419
    %v471 = vmul.f32 %v470, %v419
    %v472 = vmul.f32 %v471, %v470
    %v473 = vmul.f32 0.5, %v472
    %v474 = vsub.f32 1.5, %v473
    %v475 = vmul.f32 %v470, %v474
    %vm476 = vweird.f32 %v419
    %vm477 = vweird.f32 %v470
    %vm478 = vmor %vm476, %vm477
    %v479 = vsel %vm478, %v470, %v475
    %v480 = vmul.f32 %v384, %v429
    %v481 = vmul.f32 %v385, %v439
    %v482 = vmul.f32 %v386, %v449
    %v483 = vmul.f32 %v387, %v459
    %v484 = vmul.f32 %v388, %v469
    %v485 = vmul.f32 %v389, %v479
    %v487 = vperm.slane %v357, 0
    %v489 = vmul.f32 %v480, %v487
    %v490 = vmul.f32 %v481, %v487
    %v491 = vmul.f32 %v482, %v487
    %v492 = vmul.f32 %v483, %v487
    %v493 = vmul.f32 %v484, %v487
    %v494 = vmul.f32 %v485, %v487
    %v496 = vperm.slane %v358, 0
    %v498 = vadd.f32 %v489, %v496
    %v499 = vadd.f32 %v490, %v496
    %v500 = vadd.f32 %v491, %v496
    %v501 = vadd.f32 %v492, %v496
    %v502 = vadd.f32 %v493, %v496
    %v503 = vadd.f32 %v494, %v496
    %v504 = vpack.c.bf16 %v499, %v498
    %v505 = vpack.c.bf16 %v501, %v500
    %v506 = vpack.c.bf16 %v503, %v502
    %v507 = vld [vmem:[#allocation11] sm:$0xff]
    %v508 = vld [vmem:[#allocation11 + $0x8] sm:$0xf]
    %v509 = vld [vmem:[#allocation11 + $0xc] sm:$0xff]
    %v510 = vld [vmem:[#allocation11 + $0x14] sm:$0xf]
    %v511 = vld [vmem:[#allocation11 + $0x18] sm:$0xff]
    %v512 = vld [vmem:[#allocation11 + $0x20] sm:$0xf]
    %v513 = vld [vmem:[#allocation11 + $0x24] sm:$0xff]
    %v514 = vld [vmem:[#allocation11 + $0x2c] sm:$0xf]
    %v515 = vld [vmem:[#allocation11 + $0x30] sm:$0xff]
    %v516 = vld [vmem:[#allocation11 + $0x38] sm:$0xf]
    %v517 = vld [vmem:[#allocation11 + $0x3c] sm:$0xff]
    %v518 = vld [vmem:[#allocation11 + $0x44] sm:$0xf]
    %v519 = vld [vmem:[#allocation11 + $0x48] sm:$0xff]
    %v520 = vld [vmem:[#allocation11 + $0x50] sm:$0xf]
    %v521 = vld [vmem:[#allocation11 + $0x54] sm:$0xff]
    %v522 = vld [vmem:[#allocation11 + $0x5c] sm:$0xf]
    %v523 = vld [vmem:[#allocation11 + $0x60] sm:$0xff]
    %v524 = vld [vmem:[#allocation11 + $0x68] sm:$0xf]
    %v525 = vld [vmem:[#allocation11 + $0x6c] sm:$0xff]
    %v526 = vld [vmem:[#allocation11 + $0x74] sm:$0xf]
    %v527 = vld [vmem:[#allocation11 + $0x78] sm:$0xff]
    %v528 = vld [vmem:[#allocation11 + $0x80] sm:$0xf]
    %v529 = vld [vmem:[#allocation11 + $0x84] sm:$0xff]
    %v530 = vld [vmem:[#allocation11 + $0x8c] sm:$0xf]
    %v531 = vld [vmem:[#allocation11 + $0x90] sm:$0xff]
    %v532 = vld [vmem:[#allocation11 + $0x98] sm:$0xf]
    %v533 = vld [vmem:[#allocation11 + $0x9c] sm:$0xff]
    %v534 = vld [vmem:[#allocation11 + $0xa4] sm:$0xf]
    %v535 = vld [vmem:[#allocation11 + $0xa8] sm:$0xff]
    %v536 = vld [vmem:[#allocation11 + $0xb0] sm:$0xf]
    %v537 = vld [vmem:[#allocation11 + $0xb4] sm:$0xff]
    %v538 = vld [vmem:[#allocation11 + $0xbc] sm:$0xf]
    %v539 = vld [vmem:[#allocation12] sm:$0x7]
    %v541 = vperm.slane %v539, 0
    %v542 = vperm.slane %v539, 1
    %v543 = vperm.slane %v539, 2
    %v579 = vunpack.c.l.b16 %v507
    %v580 = vunpack.c.h.b16 %v507
    %v581 = vunpack.c.l.b16 %v508
    %v582 = vunpack.c.l.b16 %v509
    %v583 = vunpack.c.h.b16 %v509
    %v584 = vunpack.c.l.b16 %v510
    %v585 = vunpack.c.l.b16 %v511
    %v586 = vunpack.c.h.b16 %v511
    %v587 = vunpack.c.l.b16 %v512
    %v588 = vunpack.c.l.b16 %v513
    %v589 = vunpack.c.h.b16 %v513
    %v590 = vunpack.c.l.b16 %v514
    %v591 = vunpack.c.l.b16 %v515
    %v592 = vunpack.c.h.b16 %v515
    %v593 = vunpack.c.l.b16 %v516
    %v594 = vunpack.c.l.b16 %v517
    %v595 = vunpack.c.h.b16 %v517
    %v596 = vunpack.c.l.b16 %v518
    %v597 = vunpack.c.l.b16 %v519
    %v598 = vunpack.c.h.b16 %v519
    %v599 = vunpack.c.l.b16 %v520
    %v600 = vunpack.c.l.b16 %v521
    %v601 = vunpack.c.h.b16 %v521
    %v602 = vunpack.c.l.b16 %v522
    %v603 = vunpack.c.l.b16 %v523
    %v604 = vunpack.c.h.b16 %v523
    %v605 = vunpack.c.l.b16 %v524
    %v606 = vunpack.c.l.b16 %v525
    %v607 = vunpack.c.h.b16 %v525
    %v608 = vunpack.c.l.b16 %v526
    %v609 = vunpack.c.l.b16 %v527
    %v610 = vunpack.c.h.b16 %v527
    %v611 = vunpack.c.l.b16 %v528
    %v612 = vunpack.c.l.b16 %v529
    %v613 = vunpack.c.h.b16 %v529
    %v614 = vunpack.c.l.b16 %v530
    %v615 = vunpack.c.l.b16 %v531
    %v616 = vunpack.c.h.b16 %v531
    %v617 = vunpack.c.l.b16 %v532
    %v618 = vunpack.c.l.b16 %v533
    %v619 = vunpack.c.h.b16 %v533
    %v620 = vunpack.c.l.b16 %v534
    %v621 = vunpack.c.l.b16 %v535
    %v622 = vunpack.c.h.b16 %v535
    %v623 = vunpack.c.l.b16 %v536
    %v624 = vunpack.c.l.b16 %v537
    %v625 = vunpack.c.h.b16 %v537
    %v626 = vunpack.c.l.b16 %v538
    %v627 = vpack.c.b16 %v582, %v579
    %v628 = vpack.c.b16 %v583, %v580
    %v629 = vpack.c.b16 %v584, %v581
    %v630 = vpack.c.b16 %v588, %v585
    %v631 = vpack.c.b16 %v589, %v586
    %v632 = vpack.c.b16 %v590, %v587
    %v633 = vpack.c.b16 %v594, %v591
    %v634 = vpack.c.b16 %v595, %v592
    %v635 = vpack.c.b16 %v596, %v593
    %v636 = vpack.c.b16 %v600, %v597
    %v637 = vpack.c.b16 %v601, %v598
    %v638 = vpack.c.b16 %v602, %v599
    %v639 = vpack.c.b16 %v606, %v603
    %v640 = vpack.c.b16 %v607, %v604
    %v641 = vpack.c.b16 %v608, %v605
    %v642 = vpack.c.b16 %v612, %v609
    %v643 = vpack.c.b16 %v613, %v610
    %v644 = vpack.c.b16 %v614, %v611
    %v645 = vpack.c.b16 %v618, %v615
    %v646 = vpack.c.b16 %v619, %v616
    %v647 = vpack.c.b16 %v620, %v617
    %v648 = vpack.c.b16 %v624, %v621
    %v649 = vpack.c.b16 %v625, %v622
    %v650 = vpack.c.b16 %v626, %v623
    %675 = vmatpush.bf16.msra.mxu0 %v648
    %676 = vmatpush.bf16.msra.mxu0 %v645
    %677 = vmatpush.bf16.msra.mxu0 %v642
    %678 = vmatpush.bf16.msra.mxu0 %v639
    %679 = vmatpush.bf16.msra.mxu0 %v636
    %680 = vmatpush.bf16.msra.mxu0 %v633
    %681 = vmatpush.bf16.msra.mxu0 %v630
    %682 = vmatpush.bf16.msra.mxu0 %v627
    %683 = vmatmul.bf16.gmra.mxu0 %v504
    %v684 = vpop.f32.mrf.mxu0
    %v685 = vadd.f32 %v541, %v684
    %v686 = vpop.f32.mrf.mxu0
    %v687 = vadd.f32 %v541, %v686
    %688 = vmatmul.bf16.gmra.mxu0 %v505
    %v689 = vpop.f32.mrf.mxu0
    %v690 = vadd.f32 %v541, %v689
    %v691 = vpop.f32.mrf.mxu0
    %v692 = vadd.f32 %v541, %v691
    %693 = vmatmul.bf16.gmra.mxu0 %v506
    %v694 = vpop.f32.mrf.mxu0
    %v695 = vadd.f32 %v541, %v694
    %v696 = vpop.f32.mrf.mxu0
    %v697 = vadd.f32 %v541, %v696
    %698 = vdwg.mxu0
    %699 = vmatpush.bf16.msra.mxu0 %v649
    %700 = vmatpush.bf16.msra.mxu0 %v646
    %701 = vmatpush.bf16.msra.mxu0 %v643
    %702 = vmatpush.bf16.msra.mxu0 %v640
    %703 = vmatpush.bf16.msra.mxu0 %v637
    %704 = vmatpush.bf16.msra.mxu0 %v634
    %705 = vmatpush.bf16.msra.mxu0 %v631
    %706 = vmatpush.bf16.msra.mxu0 %v628
    %707 = vmatmul.bf16.gmra.mxu0 %v504
    %v708 = vpop.f32.mrf.mxu0
    %v709 = vadd.f32 %v542, %v708
    %v710 = vpop.f32.mrf.mxu0
    %v711 = vadd.f32 %v542, %v710
    %712 = vmatmul.bf16.gmra.mxu0 %v505
    %v713 = vpop.f32.mrf.mxu0
    %v714 = vadd.f32 %v542, %v713
    %v715 = vpop.f32.mrf.mxu0
    %v716 = vadd.f32 %v542, %v715
    %717 = vmatmul.bf16.gmra.mxu0 %v506
    %v718 = vpop.f32.mrf.mxu0
    %v719 = vadd.f32 %v542, %v718
    %v720 = vpop.f32.mrf.mxu0
    %v721 = vadd.f32 %v542, %v720
    %722 = vdwg.mxu0
    %723 = vmatpush.bf16.msra.mxu0 %v650
    %724 = vmatpush.bf16.msra.mxu0 %v647
    %725 = vmatpush.bf16.msra.mxu0 %v644
    %726 = vmatpush.bf16.msra.mxu0 %v641
    %727 = vmatpush.bf16.msra.mxu0 %v638
    %728 = vmatpush.bf16.msra.mxu0 %v635
    %729 = vmatpush.bf16.msra.mxu0 %v632
    %730 = vmatpush.bf16.msra.mxu0 %v629
    %731 = vmatmul.bf16.gmra.mxu0 %v504
    %v732 = vpop.f32.mrf.mxu0
    %v733 = vadd.f32 %v543, %v732
    %v734 = vpop.f32.mrf.mxu0
    %v735 = vadd.f32 %v543, %v734
    %736 = vmatmul.bf16.gmra.mxu0 %v505
    %v737 = vpop.f32.mrf.mxu0
    %v738 = vadd.f32 %v543, %v737
    %v739 = vpop.f32.mrf.mxu0
    %v740 = vadd.f32 %v543, %v739
    %741 = vmatmul.bf16.gmra.mxu0 %v506
    %v742 = vpop.f32.mrf.mxu0
    %v743 = vadd.f32 %v543, %v742
    %v744 = vpop.f32.mrf.mxu0
    %v745 = vadd.f32 %v543, %v744
    %746 = vdwg.mxu0
    %v747 = vpack.c.bf16 %v709, %v685
    %v748 = vpack.c.bf16 %v733, %v733
    %v749 = vpack.c.bf16 %v711, %v687
    %v750 = vpack.c.bf16 %v735, %v735
    %v751 = vpack.c.bf16 %v714, %v690
    %v752 = vpack.c.bf16 %v738, %v738
    %v753 = vpack.c.bf16 %v716, %v692
    %v754 = vpack.c.bf16 %v740, %v740
    %v755 = vpack.c.bf16 %v719, %v695
    %v756 = vpack.c.bf16 %v743, %v743
    %v757 = vpack.c.bf16 %v721, %v697
    %v758 = vpack.c.bf16 %v745, %v745
    %765 = vrot.lane.b32.xlu0 %v747, 96
    %v766 = vpop.permute.xlu0 %765
    %767 = vrot.lane.b32.xlu0 %v749, 96
    %v768 = vpop.permute.xlu0 %767
    %769 = vrot.lane.b32.xlu0 %v751, 96
    %v770 = vpop.permute.xlu0 %769
    %771 = vrot.lane.b32.xlu0 %v753, 96
    %v772 = vpop.permute.xlu0 %771
    %773 = vrot.lane.b32.xlu0 %v755, 96
    %v774 = vpop.permute.xlu0 %773
    %775 = vrot.lane.b32.xlu0 %v757, 96
    %v776 = vpop.permute.xlu0 %775
    %777 = vrot.lane.b32.xlu0 %v747, 64
    %v778 = vpop.permute.xlu0 %777
    %779 = vrot.lane.b32.xlu0 %v749, 64
    %v780 = vpop.permute.xlu0 %779
    %781 = vrot.lane.b32.xlu0 %v751, 64
    %v782 = vpop.permute.xlu0 %781
    %783 = vrot.lane.b32.xlu0 %v753, 64
    %v784 = vpop.permute.xlu0 %783
    %785 = vrot.lane.b32.xlu0 %v755, 64
    %v786 = vpop.permute.xlu0 %785
    %787 = vrot.lane.b32.xlu0 %v757, 64
    %v788 = vpop.permute.xlu0 %787
    %789 = vrot.lane.b32.xlu0 %v747, 32
    %v790 = vpop.permute.xlu0 %789
    %791 = vrot.lane.b32.xlu0 %v749, 32
    %v792 = vpop.permute.xlu0 %791
    %793 = vrot.lane.b32.xlu0 %v751, 32
    %v794 = vpop.permute.xlu0 %793
    %795 = vrot.lane.b32.xlu0 %v753, 32
    %v796 = vpop.permute.xlu0 %795
    %797 = vrot.lane.b32.xlu0 %v755, 32
    %v798 = vpop.permute.xlu0 %797
    %799 = vrot.lane.b32.xlu0 %v757, 32
    %v800 = vpop.permute.xlu0 %799
    %v801 = vrot.slane %v747, 4
    %v802 = vrot.slane %v749, 4
    %v803 = vrot.slane %v751, 4
    %v804 = vrot.slane %v753, 4
    %v805 = vrot.slane %v755, 4
    %v806 = vrot.slane %v757, 4
    %v807 = vrot.slane %v766, 4
    %v808 = vrot.slane %v768, 4
    %v809 = vrot.slane %v770, 4
    %v810 = vrot.slane %v772, 4
    %v811 = vrot.slane %v774, 4
    %v812 = vrot.slane %v776, 4
    %v813 = vrot.slane %v778, 4
    %v814 = vrot.slane %v780, 4
    %v815 = vrot.slane %v782, 4
    %v816 = vrot.slane %v784, 4
    %v817 = vrot.slane %v786, 4
    %v818 = vrot.slane %v788, 4
    %v819 = vrot.slane %v790, 4
    %v820 = vrot.slane %v792, 4
    %v821 = vrot.slane %v794, 4
    %v822 = vrot.slane %v796, 4
    %v823 = vrot.slane %v798, 4
    %v824 = vrot.slane %v800, 4
    %831 = vrot.lane.b32.xlu0 %v748, 96
    %v832 = vpop.permute.xlu0 %831
    %833 = vrot.lane.b32.xlu0 %v750, 96
    %v834 = vpop.permute.xlu0 %833
    %835 = vrot.lane.b32.xlu0 %v752, 96
    %v836 = vpop.permute.xlu0 %835
    %837 = vrot.lane.b32.xlu0 %v754, 96
    %v838 = vpop.permute.xlu0 %837
    %839 = vrot.lane.b32.xlu0 %v756, 96
    %v840 = vpop.permute.xlu0 %839
    %841 = vrot.lane.b32.xlu0 %v758, 96
    %v842 = vpop.permute.xlu0 %841
    %843 = vrot.lane.b32.xlu0 %v748, 64
    %v844 = vpop.permute.xlu0 %843
    %845 = vrot.lane.b32.xlu0 %v750, 64
    %v846 = vpop.permute.xlu0 %845
    %847 = vrot.lane.b32.xlu0 %v752, 64
    %v848 = vpop.permute.xlu0 %847
    %849 = vrot.lane.b32.xlu0 %v754, 64
    %v850 = vpop.permute.xlu0 %849
    %851 = vrot.lane.b32.xlu0 %v756, 64
    %v852 = vpop.permute.xlu0 %851
    %853 = vrot.lane.b32.xlu0 %v758, 64
    %v854 = vpop.permute.xlu0 %853
    %855 = vrot.lane.b32.xlu0 %v748, 32
    %v856 = vpop.permute.xlu0 %855
    %857 = vrot.lane.b32.xlu0 %v750, 32
    %v858 = vpop.permute.xlu0 %857
    %859 = vrot.lane.b32.xlu0 %v752, 32
    %v860 = vpop.permute.xlu0 %859
    %861 = vrot.lane.b32.xlu0 %v754, 32
    %v862 = vpop.permute.xlu0 %861
    %863 = vrot.lane.b32.xlu0 %v756, 32
    %v864 = vpop.permute.xlu0 %863
    %865 = vrot.lane.b32.xlu0 %v758, 32
    %v866 = vpop.permute.xlu0 %865
    %v867 = vunpack.c.l.b16 %v747
    %v868 = vunpack.c.l.b16 %v749
    %v869 = vunpack.c.l.b16 %v751
    %v870 = vunpack.c.l.b16 %v753
    %v871 = vunpack.c.l.b16 %v755
    %v872 = vunpack.c.l.b16 %v757
    %v873 = vpack.c.b16 %v868, %v867
    %v874 = vpack.c.b16 %v870, %v869
    %v875 = vpack.c.b16 %v872, %v871
    %v876 = vunpack.c.l.b16 %v801
    %v877 = vunpack.c.l.b16 %v802
    %v878 = vunpack.c.l.b16 %v803
    %v879 = vunpack.c.l.b16 %v804
    %v880 = vunpack.c.l.b16 %v805
    %v881 = vunpack.c.l.b16 %v806
    %v882 = vpack.c.b16 %v877, %v876
    %v883 = vpack.c.b16 %v879, %v878
    %v884 = vpack.c.b16 %v881, %v880
    %vm885 = vcmask 261120
    %v887 = vsel %vm885, %v873, 0
    %v890 = vsel %vm885, %v874, 0
    %v893 = vsel %vm885, %v875, 0
    %v896 = vsel %vm885, %v882, 0
    %v899 = vsel %vm885, %v883, 0
    %v902 = vsel %vm885, %v884, 0
    %904 = vmatpush.bf16.xpose.msra.mxu0 0
    %905 = vmatpush.bf16.xpose.msra.mxu0 0
    %906 = vmatpush.bf16.xpose.msra.mxu0 0
    %907 = vmatpush.bf16.xpose.msra.mxu0 0
    %908 = vmatpush.bf16.xpose.msra.mxu0 0
    %909 = vmatpush.bf16.xpose.msra.mxu0 %v902
    %910 = vmatpush.bf16.xpose.msra.mxu0 %v899
    %911 = vmatpush.bf16.xpose.msra.mxu0 %v896
    %912 = vmatmul.bf16.gmra.mxu0 %v887
    %v913 = vpop.f32.mrf.mxu0
    %v914 = vadd.f32 %v351, %v913
    %v915 = vpop.f32.mrf.mxu0
    %v916 = vadd.f32 %v352, %v915
    %917 = vmatmul.bf16.gmra.mxu0 %v890
    %v918 = vpop.f32.mrf.mxu0
    %v919 = vadd.f32 %v353, %v918
    %v920 = vpop.f32.mrf.mxu0
    %v921 = vadd.f32 %v354, %v920
    %922 = vmatmul.bf16.gmra.mxu0 %v893
    %v923 = vpop.f32.mrf.mxu0
    %v924 = vadd.f32 %v355, %v923
    %v925 = vpop.f32.mrf.mxu0
    %v926 = vadd.f32 %v356, %v925
    %927 = vdwg.mxu0
    %v928 = vunpack.c.l.b16 %v766
    %v929 = vunpack.c.l.b16 %v768
    %v930 = vunpack.c.l.b16 %v770
    %v931 = vunpack.c.l.b16 %v772
    %v932 = vunpack.c.l.b16 %v774
    %v933 = vunpack.c.l.b16 %v776
    %v934 = vpack.c.b16 %v929, %v928
    %v935 = vpack.c.b16 %v931, %v930
    %v936 = vpack.c.b16 %v933, %v932
    %v937 = vunpack.c.l.b16 %v807
    %v938 = vunpack.c.l.b16 %v808
    %v939 = vunpack.c.l.b16 %v809
    %v940 = vunpack.c.l.b16 %v810
    %v941 = vunpack.c.l.b16 %v811
    %v942 = vunpack.c.l.b16 %v812
    %v943 = vpack.c.b16 %v938, %v937
    %v944 = vpack.c.b16 %v940, %v939
    %v945 = vpack.c.b16 %v942, %v941
    %v947 = vsel %vm885, %v934, 0
    %v950 = vsel %vm885, %v935, 0
    %v953 = vsel %vm885, %v936, 0
    %v956 = vsel %vm885, %v943, 0
    %v959 = vsel %vm885, %v944, 0
    %v962 = vsel %vm885, %v945, 0
    %964 = vmatpush.bf16.xpose.msra.mxu0 0
    %965 = vmatpush.bf16.xpose.msra.mxu0 0
    %966 = vmatpush.bf16.xpose.msra.mxu0 0
    %967 = vmatpush.bf16.xpose.msra.mxu0 0
    %968 = vmatpush.bf16.xpose.msra.mxu0 0
    %969 = vmatpush.bf16.xpose.msra.mxu0 %v962
    %970 = vmatpush.bf16.xpose.msra.mxu0 %v959
    %971 = vmatpush.bf16.xpose.msra.mxu0 %v956
    %972 = vmatmul.bf16.gmra.mxu0 %v947
    %v973 = vpop.f32.mrf.mxu0
    %v974 = vadd.f32 %v351, %v973
    %v975 = vpop.f32.mrf.mxu0
    %v976 = vadd.f32 %v352, %v975
    %977 = vmatmul.bf16.gmra.mxu0 %v950
    %v978 = vpop.f32.mrf.mxu0
    %v979 = vadd.f32 %v353, %v978
    %v980 = vpop.f32.mrf.mxu0
    %v981 = vadd.f32 %v354, %v980
    %982 = vmatmul.bf16.gmra.mxu0 %v953
    %v983 = vpop.f32.mrf.mxu0
    %v984 = vadd.f32 %v355, %v983
    %v985 = vpop.f32.mrf.mxu0
    %v986 = vadd.f32 %v356, %v985
    %987 = vdwg.mxu0
    %v988 = vunpack.c.l.b16 %v778
    %v989 = vunpack.c.l.b16 %v780
    %v990 = vunpack.c.l.b16 %v782
    %v991 = vunpack.c.l.b16 %v784
    %v992 = vunpack.c.l.b16 %v786
    %v993 = vunpack.c.l.b16 %v788
    %v994 = vpack.c.b16 %v989, %v988
    %v995 = vpack.c.b16 %v991, %v990
    %v996 = vpack.c.b16 %v993, %v992
    %v997 = vunpack.c.l.b16 %v813
    %v998 = vunpack.c.l.b16 %v814
    %v999 = vunpack.c.l.b16 %v815
    %v1000 = vunpack.c.l.b16 %v816
    %v1001 = vunpack.c.l.b16 %v817
    %v1002 = vunpack.c.l.b16 %v818
    %v1003 = vpack.c.b16 %v998, %v997
    %v1004 = vpack.c.b16 %v1000, %v999
    %v1005 = vpack.c.b16 %v1002, %v1001
    %v1007 = vsel %vm885, %v994, 0
    %v1010 = vsel %vm885, %v995, 0
    %v1013 = vsel %vm885, %v996, 0
    %v1016 = vsel %vm885, %v1003, 0
    %v1019 = vsel %vm885, %v1004, 0
    %v1022 = vsel %vm885, %v1005, 0
    %1024 = vmatpush.bf16.xpose.msra.mxu0 0
    %1025 = vmatpush.bf16.xpose.msra.mxu0 0
    %1026 = vmatpush.bf16.xpose.msra.mxu0 0
    %1027 = vmatpush.bf16.xpose.msra.mxu0 0
    %1028 = vmatpush.bf16.xpose.msra.mxu0 0
    %1029 = vmatpush.bf16.xpose.msra.mxu0 %v1022
    %1030 = vmatpush.bf16.xpose.msra.mxu0 %v1019
    %1031 = vmatpush.bf16.xpose.msra.mxu0 %v1016
    %1032 = vmatmul.bf16.gmra.mxu0 %v1007
    %v1033 = vpop.f32.mrf.mxu0
    %v1034 = vadd.f32 %v351, %v1033
    %v1035 = vpop.f32.mrf.mxu0
    %v1036 = vadd.f32 %v352, %v1035
    %1037 = vmatmul.bf16.gmra.mxu0 %v1010
    %v1038 = vpop.f32.mrf.mxu0
    %v1039 = vadd.f32 %v353, %v1038
    %v1040 = vpop.f32.mrf.mxu0
    %v1041 = vadd.f32 %v354, %v1040
    %1042 = vmatmul.bf16.gmra.mxu0 %v1013
    %v1043 = vpop.f32.mrf.mxu0
    %v1044 = vadd.f32 %v355, %v1043
    %v1045 = vpop.f32.mrf.mxu0
    %v1046 = vadd.f32 %v356, %v1045
    %1047 = vdwg.mxu0
    %v1048 = vunpack.c.l.b16 %v790
    %v1049 = vunpack.c.l.b16 %v792
    %v1050 = vunpack.c.l.b16 %v794
    %v1051 = vunpack.c.l.b16 %v796
    %v1052 = vunpack.c.l.b16 %v798
    %v1053 = vunpack.c.l.b16 %v800
    %v1054 = vpack.c.b16 %v1049, %v1048
    %v1055 = vpack.c.b16 %v1051, %v1050
    %v1056 = vpack.c.b16 %v1053, %v1052
    %v1057 = vunpack.c.l.b16 %v819
    %v1058 = vunpack.c.l.b16 %v820
    %v1059 = vunpack.c.l.b16 %v821
    %v1060 = vunpack.c.l.b16 %v822
    %v1061 = vunpack.c.l.b16 %v823
    %v1062 = vunpack.c.l.b16 %v824
    %v1063 = vpack.c.b16 %v1058, %v1057
    %v1064 = vpack.c.b16 %v1060, %v1059
    %v1065 = vpack.c.b16 %v1062, %v1061
    %v1067 = vsel %vm885, %v1054, 0
    %v1070 = vsel %vm885, %v1055, 0
    %v1073 = vsel %vm885, %v1056, 0
    %v1076 = vsel %vm885, %v1063, 0
    %v1079 = vsel %vm885, %v1064, 0
    %v1082 = vsel %vm885, %v1065, 0
    %1084 = vmatpush.bf16.xpose.msra.mxu0 0
    %1085 = vmatpush.bf16.xpose.msra.mxu0 0
    %1086 = vmatpush.bf16.xpose.msra.mxu0 0
    %1087 = vmatpush.bf16.xpose.msra.mxu0 0
    %1088 = vmatpush.bf16.xpose.msra.mxu0 0
    %1089 = vmatpush.bf16.xpose.msra.mxu0 %v1082
    %1090 = vmatpush.bf16.xpose.msra.mxu0 %v1079
    %1091 = vmatpush.bf16.xpose.msra.mxu0 %v1076
    %1092 = vmatmul.bf16.gmra.mxu0 %v1067
    %v1093 = vpop.f32.mrf.mxu0
    %v1094 = vadd.f32 %v351, %v1093
    %v1095 = vpop.f32.mrf.mxu0
    %v1096 = vadd.f32 %v352, %v1095
    %1097 = vmatmul.bf16.gmra.mxu0 %v1070
    %v1098 = vpop.f32.mrf.mxu0
    %v1099 = vadd.f32 %v353, %v1098
    %v1100 = vpop.f32.mrf.mxu0
    %v1101 = vadd.f32 %v354, %v1100
    %1102 = vmatmul.bf16.gmra.mxu0 %v1073
    %v1103 = vpop.f32.mrf.mxu0
    %v1104 = vadd.f32 %v355, %v1103
    %v1105 = vpop.f32.mrf.mxu0
    %v1106 = vadd.f32 %v356, %v1105
    %1107 = vdwg.mxu0
    %v1108 = vsel %vm298, %v914, -inf
    %1109 = vmax.xlane.f32.xlu0 %v1108
    %v1110 = vpop.xlane.xlu0 %1109
    %v1111 = vsel %vm298, %v916, -inf
    %1112 = vmax.xlane.f32.xlu0 %v1111
    %v1113 = vpop.xlane.xlu0 %1112
    %v1114 = vsel %vm298, %v919, -inf
    %1115 = vmax.xlane.f32.xlu0 %v1114
    %v1116 = vpop.xlane.xlu0 %1115
    %v1117 = vsel %vm298, %v921, -inf
    %1118 = vmax.xlane.f32.xlu0 %v1117
    %v1119 = vpop.xlane.xlu0 %1118
    %v1120 = vsel %vm298, %v924, -inf
    %1121 = vmax.xlane.f32.xlu0 %v1120
    %v1122 = vpop.xlane.xlu0 %1121
    %v1123 = vsel %vm298, %v926, -inf
    %1124 = vmax.xlane.f32.xlu0 %v1123
    %v1125 = vpop.xlane.xlu0 %1124
    %v1126 = vsel %vm298, %v974, -inf
    %1127 = vmax.xlane.f32.xlu0 %v1126
    %v1128 = vpop.xlane.xlu0 %1127
    %v1129 = vsel %vm298, %v976, -inf
    %1130 = vmax.xlane.f32.xlu0 %v1129
    %v1131 = vpop.xlane.xlu0 %1130
    %v1132 = vsel %vm298, %v979, -inf
    %1133 = vmax.xlane.f32.xlu0 %v1132
    %v1134 = vpop.xlane.xlu0 %1133
    %v1135 = vsel %vm298, %v981, -inf
    %1136 = vmax.xlane.f32.xlu0 %v1135
    %v1137 = vpop.xlane.xlu0 %1136
    %v1138 = vsel %vm298, %v984, -inf
    %1139 = vmax.xlane.f32.xlu0 %v1138
    %v1140 = vpop.xlane.xlu0 %1139
    %v1141 = vsel %vm298, %v986, -inf
    %1142 = vmax.xlane.f32.xlu0 %v1141
    %v1143 = vpop.xlane.xlu0 %1142
    %v1144 = vsel %vm298, %v1034, -inf
    %1145 = vmax.xlane.f32.xlu0 %v1144
    %v1146 = vpop.xlane.xlu0 %1145
    %v1147 = vsel %vm298, %v1036, -inf
    %1148 = vmax.xlane.f32.xlu0 %v1147
    %v1149 = vpop.xlane.xlu0 %1148
    %v1150 = vsel %vm298, %v1039, -inf
    %1151 = vmax.xlane.f32.xlu0 %v1150
    %v1152 = vpop.xlane.xlu0 %1151
    %v1153 = vsel %vm298, %v1041, -inf
    %1154 = vmax.xlane.f32.xlu0 %v1153
    %v1155 = vpop.xlane.xlu0 %1154
    %v1156 = vsel %vm298, %v1044, -inf
    %1157 = vmax.xlane.f32.xlu0 %v1156
    %v1158 = vpop.xlane.xlu0 %1157
    %v1159 = vsel %vm298, %v1046, -inf
    %1160 = vmax.xlane.f32.xlu0 %v1159
    %v1161 = vpop.xlane.xlu0 %1160
    %v1162 = vsel %vm298, %v1094, -inf
    %1163 = vmax.xlane.f32.xlu0 %v1162
    %v1164 = vpop.xlane.xlu0 %1163
    %v1165 = vsel %vm298, %v1096, -inf
    %1166 = vmax.xlane.f32.xlu0 %v1165
    %v1167 = vpop.xlane.xlu0 %1166
    %v1168 = vsel %vm298, %v1099, -inf
    %1169 = vmax.xlane.f32.xlu0 %v1168
    %v1170 = vpop.xlane.xlu0 %1169
    %v1171 = vsel %vm298, %v1101, -inf
    %1172 = vmax.xlane.f32.xlu0 %v1171
    %v1173 = vpop.xlane.xlu0 %1172
    %v1174 = vsel %vm298, %v1104, -inf
    %1175 = vmax.xlane.f32.xlu0 %v1174
    %v1176 = vpop.xlane.xlu0 %1175
    %v1177 = vsel %vm298, %v1106, -inf
    %1178 = vmax.xlane.f32.xlu0 %v1177
    %v1179 = vpop.xlane.xlu0 %1178
    %v1180 = vsub.f32 %v914, %v1110
    %v1181 = vsub.f32 %v916, %v1113
    %v1182 = vsub.f32 %v919, %v1116
    %v1183 = vsub.f32 %v921, %v1119
    %v1184 = vsub.f32 %v924, %v1122
    %v1185 = vsub.f32 %v926, %v1125
    %v1186 = vsub.f32 %v974, %v1128
    %v1187 = vsub.f32 %v976, %v1131
    %v1188 = vsub.f32 %v979, %v1134
    %v1189 = vsub.f32 %v981, %v1137
    %v1190 = vsub.f32 %v984, %v1140
    %v1191 = vsub.f32 %v986, %v1143
    %v1192 = vsub.f32 %v1034, %v1146
    %v1193 = vsub.f32 %v1036, %v1149
    %v1194 = vsub.f32 %v1039, %v1152
    %v1195 = vsub.f32 %v1041, %v1155
    %v1196 = vsub.f32 %v1044, %v1158
    %v1197 = vsub.f32 %v1046, %v1161
    %v1198 = vsub.f32 %v1094, %v1164
    %v1199 = vsub.f32 %v1096, %v1167
    %v1200 = vsub.f32 %v1099, %v1170
    %v1201 = vsub.f32 %v1101, %v1173
    %v1202 = vsub.f32 %v1104, %v1176
    %v1203 = vsub.f32 %v1106, %v1179
    %v1204 = vmul.f32 %v1180, 1.442695
    %v1205 = vpow.pop %v1204
    %v1206 = vmul.f32 %v1181, 1.442695
    %v1207 = vpow.pop %v1206
    %v1208 = vmul.f32 %v1182, 1.442695
    %v1209 = vpow.pop %v1208
    %v1210 = vmul.f32 %v1183, 1.442695
    %v1211 = vpow.pop %v1210
    %v1212 = vmul.f32 %v1184, 1.442695
    %v1213 = vpow.pop %v1212
    %v1214 = vmul.f32 %v1185, 1.442695
    %v1215 = vpow.pop %v1214
    %v1216 = vmul.f32 %v1186, 1.442695
    %v1217 = vpow.pop %v1216
    %v1218 = vmul.f32 %v1187, 1.442695
    %v1219 = vpow.pop %v1218
    %v1220 = vmul.f32 %v1188, 1.442695
    %v1221 = vpow.pop %v1220
    %v1222 = vmul.f32 %v1189, 1.442695
    %v1223 = vpow.pop %v1222
    %v1224 = vmul.f32 %v1190, 1.442695
    %v1225 = vpow.pop %v1224
    %v1226 = vmul.f32 %v1191, 1.442695
    %v1227 = vpow.pop %v1226
    %v1228 = vmul.f32 %v1192, 1.442695
    %v1229 = vpow.pop %v1228
    %v1230 = vmul.f32 %v1193, 1.442695
    %v1231 = vpow.pop %v1230
    %v1232 = vmul.f32 %v1194, 1.442695
    %v1233 = vpow.pop %v1232
    %v1234 = vmul.f32 %v1195, 1.442695
    %v1235 = vpow.pop %v1234
    %v1236 = vmul.f32 %v1196, 1.442695
    %v1237 = vpow.pop %v1236
    %v1238 = vmul.f32 %v1197, 1.442695
    %v1239 = vpow.pop %v1238
    %v1240 = vmul.f32 %v1198, 1.442695
    %v1241 = vpow.pop %v1240
    %v1242 = vmul.f32 %v1199, 1.442695
    %v1243 = vpow.pop %v1242
    %v1244 = vmul.f32 %v1200, 1.442695
    %v1245 = vpow.pop %v1244
    %v1246 = vmul.f32 %v1201, 1.442695
    %v1247 = vpow.pop %v1246
    %v1248 = vmul.f32 %v1202, 1.442695
    %v1249 = vpow.pop %v1248
    %v1250 = vmul.f32 %v1203, 1.442695
    %v1251 = vpow.pop %v1250
    %v1252 = vsel %vm298, %v1205, 0.0
    %1253 = vadd.xlane.f32.xlu0 %v1252
    %v1254 = vpop.xlane.xlu0 %1253
    %v1255 = vsel %vm298, %v1207, 0.0
    %1256 = vadd.xlane.f32.xlu0 %v1255
    %v1257 = vpop.xlane.xlu0 %1256
    %v1258 = vsel %vm298, %v1209, 0.0
    %1259 = vadd.xlane.f32.xlu0 %v1258
    %v1260 = vpop.xlane.xlu0 %1259
    %v1261 = vsel %vm298, %v1211, 0.0
    %1262 = vadd.xlane.f32.xlu0 %v1261
    %v1263 = vpop.xlane.xlu0 %1262
    %v1264 = vsel %vm298, %v1213, 0.0
    %1265 = vadd.xlane.f32.xlu0 %v1264
    %v1266 = vpop.xlane.xlu0 %1265
    %v1267 = vsel %vm298, %v1215, 0.0
    %1268 = vadd.xlane.f32.xlu0 %v1267
    %v1269 = vpop.xlane.xlu0 %1268
    %v1270 = vsel %vm298, %v1217, 0.0
    %1271 = vadd.xlane.f32.xlu0 %v1270
    %v1272 = vpop.xlane.xlu0 %1271
    %v1273 = vsel %vm298, %v1219, 0.0
    %1274 = vadd.xlane.f32.xlu0 %v1273
    %v1275 = vpop.xlane.xlu0 %1274
    %v1276 = vsel %vm298, %v1221, 0.0
    %1277 = vadd.xlane.f32.xlu0 %v1276
    %v1278 = vpop.xlane.xlu0 %1277
    %v1279 = vsel %vm298, %v1223, 0.0
    %1280 = vadd.xlane.f32.xlu0 %v1279
    %v1281 = vpop.xlane.xlu0 %1280
    %v1282 = vsel %vm298, %v1225, 0.0
    %1283 = vadd.xlane.f32.xlu0 %v1282
    %v1284 = vpop.xlane.xlu0 %1283
    %v1285 = vsel %vm298, %v1227, 0.0
    %1286 = vadd.xlane.f32.xlu0 %v1285
    %v1287 = vpop.xlane.xlu0 %1286
    %v1288 = vsel %vm298, %v1229, 0.0
    %1289 = vadd.xlane.f32.xlu0 %v1288
    %v1290 = vpop.xlane.xlu0 %1289
    %v1291 = vsel %vm298, %v1231, 0.0
    %1292 = vadd.xlane.f32.xlu0 %v1291
    %v1293 = vpop.xlane.xlu0 %1292
    %v1294 = vsel %vm298, %v1233, 0.0
    %1295 = vadd.xlane.f32.xlu0 %v1294
    %v1296 = vpop.xlane.xlu0 %1295
    %v1297 = vsel %vm298, %v1235, 0.0
    %1298 = vadd.xlane.f32.xlu0 %v1297
    %v1299 = vpop.xlane.xlu0 %1298
    %v1300 = vsel %vm298, %v1237, 0.0
    %1301 = vadd.xlane.f32.xlu0 %v1300
    %v1302 = vpop.xlane.xlu0 %1301
    %v1303 = vsel %vm298, %v1239, 0.0
    %1304 = vadd.xlane.f32.xlu0 %v1303
    %v1305 = vpop.xlane.xlu0 %1304
    %v1306 = vsel %vm298, %v1241, 0.0
    %1307 = vadd.xlane.f32.xlu0 %v1306
    %v1308 = vpop.xlane.xlu0 %1307
    %v1309 = vsel %vm298, %v1243, 0.0
    %1310 = vadd.xlane.f32.xlu0 %v1309
    %v1311 = vpop.xlane.xlu0 %1310
    %v1312 = vsel %vm298, %v1245, 0.0
    %1313 = vadd.xlane.f32.xlu0 %v1312
    %v1314 = vpop.xlane.xlu0 %1313
    %v1315 = vsel %vm298, %v1247, 0.0
    %1316 = vadd.xlane.f32.xlu0 %v1315
    %v1317 = vpop.xlane.xlu0 %1316
    %v1318 = vsel %vm298, %v1249, 0.0
    %1319 = vadd.xlane.f32.xlu0 %v1318
    %v1320 = vpop.xlane.xlu0 %1319
    %v1321 = vsel %vm298, %v1251, 0.0
    %1322 = vadd.xlane.f32.xlu0 %v1321
    %v1323 = vpop.xlane.xlu0 %1322
    %v1324 = vrcp.pop %v1254
    %v1325 = vrcp.pop %v1257
    %v1326 = vrcp.pop %v1260
    %v1327 = vrcp.pop %v1263
    %v1328 = vrcp.pop %v1266
    %v1329 = vrcp.pop %v1269
    %v1330 = vrcp.pop %v1272
    %v1331 = vrcp.pop %v1275
    %v1332 = vrcp.pop %v1278
    %v1333 = vrcp.pop %v1281
    %v1334 = vrcp.pop %v1284
    %v1335 = vrcp.pop %v1287
    %v1336 = vrcp.pop %v1290
    %v1337 = vrcp.pop %v1293
    %v1338 = vrcp.pop %v1296
    %v1339 = vrcp.pop %v1299
    %v1340 = vrcp.pop %v1302
    %v1341 = vrcp.pop %v1305
    %v1342 = vrcp.pop %v1308
    %v1343 = vrcp.pop %v1311
    %v1344 = vrcp.pop %v1314
    %v1345 = vrcp.pop %v1317
    %v1346 = vrcp.pop %v1320
    %v1347 = vrcp.pop %v1323
    %v1348 = vmul.f32 %v1205, %v1324
    %v1349 = vmul.f32 %v1207, %v1325
    %v1350 = vmul.f32 %v1209, %v1326
    %v1351 = vmul.f32 %v1211, %v1327
    %v1352 = vmul.f32 %v1213, %v1328
    %v1353 = vmul.f32 %v1215, %v1329
    %v1354 = vmul.f32 %v1217, %v1330
    %v1355 = vmul.f32 %v1219, %v1331
    %v1356 = vmul.f32 %v1221, %v1332
    %v1357 = vmul.f32 %v1223, %v1333
    %v1358 = vmul.f32 %v1225, %v1334
    %v1359 = vmul.f32 %v1227, %v1335
    %v1360 = vmul.f32 %v1229, %v1336
    %v1361 = vmul.f32 %v1231, %v1337
    %v1362 = vmul.f32 %v1233, %v1338
    %v1363 = vmul.f32 %v1235, %v1339
    %v1364 = vmul.f32 %v1237, %v1340
    %v1365 = vmul.f32 %v1239, %v1341
    %v1366 = vmul.f32 %v1241, %v1342
    %v1367 = vmul.f32 %v1243, %v1343
    %v1368 = vmul.f32 %v1245, %v1344
    %v1369 = vmul.f32 %v1247, %v1345
    %v1370 = vmul.f32 %v1249, %v1346
    %v1371 = vmul.f32 %v1251, %v1347
    %v1372 = vpack.c.bf16 %v1348, %v1348
    %v1373 = vpack.c.bf16 %v1349, %v1349
    %v1374 = vpack.c.bf16 %v1350, %v1350
    %v1375 = vpack.c.bf16 %v1351, %v1351
    %v1376 = vpack.c.bf16 %v1352, %v1352
    %v1377 = vpack.c.bf16 %v1353, %v1353
    %v1378 = vpack.c.bf16 %v1354, %v1354
    %v1379 = vpack.c.bf16 %v1355, %v1355
    %v1380 = vpack.c.bf16 %v1356, %v1356
    %v1381 = vpack.c.bf16 %v1357, %v1357
    %v1382 = vpack.c.bf16 %v1358, %v1358
    %v1383 = vpack.c.bf16 %v1359, %v1359
    %v1384 = vpack.c.bf16 %v1360, %v1360
    %v1385 = vpack.c.bf16 %v1361, %v1361
    %v1386 = vpack.c.bf16 %v1362, %v1362
    %v1387 = vpack.c.bf16 %v1363, %v1363
    %v1388 = vpack.c.bf16 %v1364, %v1364
    %v1389 = vpack.c.bf16 %v1365, %v1365
    %v1390 = vpack.c.bf16 %v1366, %v1366
    %v1391 = vpack.c.bf16 %v1367, %v1367
    %v1392 = vpack.c.bf16 %v1368, %v1368
    %v1393 = vpack.c.bf16 %v1369, %v1369
    %v1394 = vpack.c.bf16 %v1370, %v1370
    %v1395 = vpack.c.bf16 %v1371, %v1371
    %v1402 = vunpack.c.l.b16 %v1372
    %v1403 = vunpack.c.l.b16 %v1373
    %v1404 = vunpack.c.l.b16 %v1374
    %v1405 = vunpack.c.l.b16 %v1375
    %v1406 = vunpack.c.l.b16 %v1376
    %v1407 = vunpack.c.l.b16 %v1377
    %v1408 = vpack.c.b16 %v1403, %v1402
    %v1409 = vpack.c.b16 %v1405, %v1404
    %v1410 = vpack.c.b16 %v1407, %v1406
    %v1411 = vunpack.c.l.b16 %v748
    %v1412 = vunpack.c.l.b16 %v750
    %v1413 = vunpack.c.l.b16 %v752
    %v1414 = vunpack.c.l.b16 %v754
    %v1415 = vunpack.c.l.b16 %v756
    %v1416 = vunpack.c.l.b16 %v758
    %v1417 = vpack.c.b16 %v1412, %v1411
    %v1418 = vpack.c.b16 %v1414, %v1413
    %v1419 = vpack.c.b16 %v1416, %v1415
    %v1424 = vsel %vm298, %v1408, 0
    %v1427 = vsel %vm298, %v1409, 0
    %v1430 = vsel %vm298, %v1410, 0
    %1432 = vmatpush.bf16.msra.mxu0 0
    %1433 = vmatpush.bf16.msra.mxu0 0
    %1434 = vmatpush.bf16.msra.mxu0 0
    %1435 = vmatpush.bf16.msra.mxu0 0
    %1436 = vmatpush.bf16.msra.mxu0 0
    %1437 = vmatpush.bf16.msra.mxu0 %v1419
    %1438 = vmatpush.bf16.msra.mxu0 %v1418
    %1439 = vmatpush.bf16.msra.mxu0 %v1417
    %1440 = vmatmul.bf16.gmra.mxu0 %v1424
    %v1441 = vpop.f32.mrf.mxu0
    %v1442 = vadd.f32 0.0, %v1441
    %v1443 = vpop.f32.mrf.mxu0
    %v1444 = vadd.f32 0.0, %v1443
    %1445 = vmatmul.bf16.gmra.mxu0 %v1427
    %v1446 = vpop.f32.mrf.mxu0
    %v1447 = vadd.f32 0.0, %v1446
    %v1448 = vpop.f32.mrf.mxu0
    %v1449 = vadd.f32 0.0, %v1448
    %1450 = vmatmul.bf16.gmra.mxu0 %v1430
    %v1451 = vpop.f32.mrf.mxu0
    %v1452 = vadd.f32 0.0, %v1451
    %v1453 = vpop.f32.mrf.mxu0
    %v1454 = vadd.f32 0.0, %v1453
    %1455 = vdwg.mxu0
    %v1462 = vunpack.c.l.b16 %v1378
    %v1463 = vunpack.c.l.b16 %v1379
    %v1464 = vunpack.c.l.b16 %v1380
    %v1465 = vunpack.c.l.b16 %v1381
    %v1466 = vunpack.c.l.b16 %v1382
    %v1467 = vunpack.c.l.b16 %v1383
    %v1468 = vpack.c.b16 %v1463, %v1462
    %v1469 = vpack.c.b16 %v1465, %v1464
    %v1470 = vpack.c.b16 %v1467, %v1466
    %v1471 = vunpack.c.l.b16 %v832
    %v1472 = vunpack.c.l.b16 %v834
    %v1473 = vunpack.c.l.b16 %v836
    %v1474 = vunpack.c.l.b16 %v838
    %v1475 = vunpack.c.l.b16 %v840
    %v1476 = vunpack.c.l.b16 %v842
    %v1477 = vpack.c.b16 %v1472, %v1471
    %v1478 = vpack.c.b16 %v1474, %v1473
    %v1479 = vpack.c.b16 %v1476, %v1475
    %v1484 = vsel %vm298, %v1468, 0
    %v1487 = vsel %vm298, %v1469, 0
    %v1490 = vsel %vm298, %v1470, 0
    %1492 = vmatpush.bf16.msra.mxu0 0
    %1493 = vmatpush.bf16.msra.mxu0 0
    %1494 = vmatpush.bf16.msra.mxu0 0
    %1495 = vmatpush.bf16.msra.mxu0 0
    %1496 = vmatpush.bf16.msra.mxu0 0
    %1497 = vmatpush.bf16.msra.mxu0 %v1479
    %1498 = vmatpush.bf16.msra.mxu0 %v1478
    %1499 = vmatpush.bf16.msra.mxu0 %v1477
    %1500 = vmatmul.bf16.gmra.mxu0 %v1484
    %v1501 = vpop.f32.mrf.mxu0
    %v1502 = vadd.f32 0.0, %v1501
    %v1503 = vpop.f32.mrf.mxu0
    %v1504 = vadd.f32 0.0, %v1503
    %1505 = vmatmul.bf16.gmra.mxu0 %v1487
    %v1506 = vpop.f32.mrf.mxu0
    %v1507 = vadd.f32 0.0, %v1506
    %v1508 = vpop.f32.mrf.mxu0
    %v1509 = vadd.f32 0.0, %v1508
    %1510 = vmatmul.bf16.gmra.mxu0 %v1490
    %v1511 = vpop.f32.mrf.mxu0
    %v1512 = vadd.f32 0.0, %v1511
    %v1513 = vpop.f32.mrf.mxu0
    %v1514 = vadd.f32 0.0, %v1513
    %1515 = vdwg.mxu0
    %v1522 = vunpack.c.l.b16 %v1384
    %v1523 = vunpack.c.l.b16 %v1385
    %v1524 = vunpack.c.l.b16 %v1386
    %v1525 = vunpack.c.l.b16 %v1387
    %v1526 = vunpack.c.l.b16 %v1388
    %v1527 = vunpack.c.l.b16 %v1389
    %v1528 = vpack.c.b16 %v1523, %v1522
    %v1529 = vpack.c.b16 %v1525, %v1524
    %v1530 = vpack.c.b16 %v1527, %v1526
    %v1531 = vunpack.c.l.b16 %v844
    %v1532 = vunpack.c.l.b16 %v846
    %v1533 = vunpack.c.l.b16 %v848
    %v1534 = vunpack.c.l.b16 %v850
    %v1535 = vunpack.c.l.b16 %v852
    %v1536 = vunpack.c.l.b16 %v854
    %v1537 = vpack.c.b16 %v1532, %v1531
    %v1538 = vpack.c.b16 %v1534, %v1533
    %v1539 = vpack.c.b16 %v1536, %v1535
    %v1544 = vsel %vm298, %v1528, 0
    %v1547 = vsel %vm298, %v1529, 0
    %v1550 = vsel %vm298, %v1530, 0
    %1552 = vmatpush.bf16.msra.mxu0 0
    %1553 = vmatpush.bf16.msra.mxu0 0
    %1554 = vmatpush.bf16.msra.mxu0 0
    %1555 = vmatpush.bf16.msra.mxu0 0
    %1556 = vmatpush.bf16.msra.mxu0 0
    %1557 = vmatpush.bf16.msra.mxu0 %v1539
    %1558 = vmatpush.bf16.msra.mxu0 %v1538
    %1559 = vmatpush.bf16.msra.mxu0 %v1537
    %1560 = vmatmul.bf16.gmra.mxu0 %v1544
    %v1561 = vpop.f32.mrf.mxu0
    %v1562 = vadd.f32 0.0, %v1561
    %v1563 = vpop.f32.mrf.mxu0
    %v1564 = vadd.f32 0.0, %v1563
    %1565 = vmatmul.bf16.gmra.mxu0 %v1547
    %v1566 = vpop.f32.mrf.mxu0
    %v1567 = vadd.f32 0.0, %v1566
    %v1568 = vpop.f32.mrf.mxu0
    %v1569 = vadd.f32 0.0, %v1568
    %1570 = vmatmul.bf16.gmra.mxu0 %v1550
    %v1571 = vpop.f32.mrf.mxu0
    %v1572 = vadd.f32 0.0, %v1571
    %v1573 = vpop.f32.mrf.mxu0
    %v1574 = vadd.f32 0.0, %v1573
    %1575 = vdwg.mxu0
    %v1582 = vunpack.c.l.b16 %v1390
    %v1583 = vunpack.c.l.b16 %v1391
    %v1584 = vunpack.c.l.b16 %v1392
    %v1585 = vunpack.c.l.b16 %v1393
    %v1586 = vunpack.c.l.b16 %v1394
    %v1587 = vunpack.c.l.b16 %v1395
    %v1588 = vpack.c.b16 %v1583, %v1582
    %v1589 = vpack.c.b16 %v1585, %v1584
    %v1590 = vpack.c.b16 %v1587, %v1586
    %v1591 = vunpack.c.l.b16 %v856
    %v1592 = vunpack.c.l.b16 %v858
    %v1593 = vunpack.c.l.b16 %v860
    %v1594 = vunpack.c.l.b16 %v862
    %v1595 = vunpack.c.l.b16 %v864
    %v1596 = vunpack.c.l.b16 %v866
    %v1597 = vpack.c.b16 %v1592, %v1591
    %v1598 = vpack.c.b16 %v1594, %v1593
    %v1599 = vpack.c.b16 %v1596, %v1595
    %v1604 = vsel %vm298, %v1588, 0
    %v1607 = vsel %vm298, %v1589, 0
    %v1610 = vsel %vm298, %v1590, 0
    %1612 = vmatpush.bf16.msra.mxu0 0
    %1613 = vmatpush.bf16.msra.mxu0 0
    %1614 = vmatpush.bf16.msra.mxu0 0
    %1615 = vmatpush.bf16.msra.mxu0 0
    %1616 = vmatpush.bf16.msra.mxu0 0
    %1617 = vmatpush.bf16.msra.mxu0 %v1599
    %1618 = vmatpush.bf16.msra.mxu0 %v1598
    %1619 = vmatpush.bf16.msra.mxu0 %v1597
    %1620 = vmatmul.bf16.gmra.mxu0 %v1604
    %v1621 = vpop.f32.mrf.mxu0
    %v1622 = vadd.f32 0.0, %v1621
    %v1623 = vpop.f32.mrf.mxu0
    %v1624 = vadd.f32 0.0, %v1623
    %1625 = vmatmul.bf16.gmra.mxu0 %v1607
    %v1626 = vpop.f32.mrf.mxu0
    %v1627 = vadd.f32 0.0, %v1626
    %v1628 = vpop.f32.mrf.mxu0
    %v1629 = vadd.f32 0.0, %v1628
    %1630 = vmatmul.bf16.gmra.mxu0 %v1610
    %v1631 = vpop.f32.mrf.mxu0
    %v1632 = vadd.f32 0.0, %v1631
    %v1633 = vpop.f32.mrf.mxu0
    %v1634 = vadd.f32 0.0, %v1633
    %1635 = vdwg.mxu0
    %1642 = vrot.lane.b32.xlu0 %v1502, 32
    %v1643 = vpop.permute.xlu0 %1642
    %1644 = vrot.lane.b32.xlu0 %v1504, 32
    %v1645 = vpop.permute.xlu0 %1644
    %1646 = vrot.lane.b32.xlu0 %v1507, 32
    %v1647 = vpop.permute.xlu0 %1646
    %1648 = vrot.lane.b32.xlu0 %v1509, 32
    %v1649 = vpop.permute.xlu0 %1648
    %1650 = vrot.lane.b32.xlu0 %v1512, 32
    %v1651 = vpop.permute.xlu0 %1650
    %1652 = vrot.lane.b32.xlu0 %v1514, 32
    %v1653 = vpop.permute.xlu0 %1652
    %1666 = vrot.lane.b32.xlu0 %v1562, 64
    %v1667 = vpop.permute.xlu0 %1666
    %1668 = vrot.lane.b32.xlu0 %v1564, 64
    %v1669 = vpop.permute.xlu0 %1668
    %1670 = vrot.lane.b32.xlu0 %v1567, 64
    %v1671 = vpop.permute.xlu0 %1670
    %1672 = vrot.lane.b32.xlu0 %v1569, 64
    %v1673 = vpop.permute.xlu0 %1672
    %1674 = vrot.lane.b32.xlu0 %v1572, 64
    %v1675 = vpop.permute.xlu0 %1674
    %1676 = vrot.lane.b32.xlu0 %v1574, 64
    %v1677 = vpop.permute.xlu0 %1676
    %1690 = vrot.lane.b32.xlu0 %v1622, 96
    %v1691 = vpop.permute.xlu0 %1690
    %1692 = vrot.lane.b32.xlu0 %v1624, 96
    %v1693 = vpop.permute.xlu0 %1692
    %1694 = vrot.lane.b32.xlu0 %v1627, 96
    %v1695 = vpop.permute.xlu0 %1694
    %1696 = vrot.lane.b32.xlu0 %v1629, 96
    %v1697 = vpop.permute.xlu0 %1696
    %1698 = vrot.lane.b32.xlu0 %v1632, 96
    %v1699 = vpop.permute.xlu0 %1698
    %1700 = vrot.lane.b32.xlu0 %v1634, 96
    %v1701 = vpop.permute.xlu0 %1700
    %v1708 = vsel %vm885, %v1442, %v1643
    %v1709 = vsel %vm885, %v1444, %v1645
    %v1710 = vsel %vm885, %v1447, %v1647
    %v1711 = vsel %vm885, %v1449, %v1649
    %v1712 = vsel %vm885, %v1452, %v1651
    %v1713 = vsel %vm885, %v1454, %v1653
    %vm1714 = vcmask 523264
    %v1715 = vsel %vm1714, %v1708, %v1667
    %v1716 = vsel %vm1714, %v1709, %v1669
    %v1717 = vsel %vm1714, %v1710, %v1671
    %v1718 = vsel %vm1714, %v1711, %v1673
    %v1719 = vsel %vm1714, %v1712, %v1675
    %v1720 = vsel %vm1714, %v1713, %v1677
    %vm1721 = vcmask 785408
    %v1722 = vsel %vm1721, %v1715, %v1691
    %v1723 = vsel %vm1721, %v1716, %v1693
    %v1724 = vsel %vm1721, %v1717, %v1695
    %v1725 = vsel %vm1721, %v1718, %v1697
    %v1726 = vsel %vm1721, %v1719, %v1699
    %v1727 = vsel %vm1721, %v1720, %v1701
    %v1728 = vpack.c.bf16 %v1723, %v1722
    %v1729 = vpack.c.bf16 %v1725, %v1724
    %v1730 = vpack.c.bf16 %v1727, %v1726
    %v1731 = vld [vmem:[#allocation14] sm:$0xf]
    %v1732 = vld [vmem:[#allocation14 + $0x4] sm:$0xf]
    %v1733 = vld [vmem:[#allocation14 + $0x8] sm:$0xf]
    %v1734 = vld [vmem:[#allocation14 + $0xc] sm:$0xf]
    %v1735 = vld [vmem:[#allocation14 + $0x10] sm:$0xf]
    %v1736 = vld [vmem:[#allocation14 + $0x14] sm:$0xf]
    %v1737 = vld [vmem:[#allocation14 + $0x18] sm:$0xf]
    %v1738 = vld [vmem:[#allocation14 + $0x1c] sm:$0xf]
    %v1739 = vld [vmem:[#allocation14 + $0x20] sm:$0xf]
    %v1740 = vld [vmem:[#allocation14 + $0x24] sm:$0xf]
    %v1741 = vld [vmem:[#allocation14 + $0x28] sm:$0xf]
    %v1742 = vld [vmem:[#allocation14 + $0x2c] sm:$0xf]
    %v1743 = vld [vmem:[#allocation14 + $0x30] sm:$0xf]
    %v1744 = vld [vmem:[#allocation14 + $0x34] sm:$0xf]
    %v1745 = vld [vmem:[#allocation14 + $0x38] sm:$0xf]
    %v1746 = vld [vmem:[#allocation14 + $0x3c] sm:$0xf]
    %v1763 = vunpack.c.l.b16 %v1731
    %v1764 = vunpack.c.l.b16 %v1732
    %v1765 = vunpack.c.l.b16 %v1733
    %v1766 = vunpack.c.l.b16 %v1734
    %v1767 = vunpack.c.l.b16 %v1735
    %v1768 = vunpack.c.l.b16 %v1736
    %v1769 = vunpack.c.l.b16 %v1737
    %v1770 = vunpack.c.l.b16 %v1738
    %v1771 = vunpack.c.l.b16 %v1739
    %v1772 = vunpack.c.l.b16 %v1740
    %v1773 = vunpack.c.l.b16 %v1741
    %v1774 = vunpack.c.l.b16 %v1742
    %v1775 = vunpack.c.l.b16 %v1743
    %v1776 = vunpack.c.l.b16 %v1744
    %v1777 = vunpack.c.l.b16 %v1745
    %v1778 = vunpack.c.l.b16 %v1746
    %v1779 = vpack.c.b16 %v1764, %v1763
    %v1780 = vpack.c.b16 %v1766, %v1765
    %v1781 = vpack.c.b16 %v1768, %v1767
    %v1782 = vpack.c.b16 %v1770, %v1769
    %v1783 = vpack.c.b16 %v1772, %v1771
    %v1784 = vpack.c.b16 %v1774, %v1773
    %v1785 = vpack.c.b16 %v1776, %v1775
    %v1786 = vpack.c.b16 %v1778, %v1777
    %1795 = vmatpush.bf16.msra.mxu0 %v1786
    %1796 = vmatpush.bf16.msra.mxu0 %v1785
    %1797 = vmatpush.bf16.msra.mxu0 %v1784
    %1798 = vmatpush.bf16.msra.mxu0 %v1783
    %1799 = vmatpush.bf16.msra.mxu0 %v1782
    %1800 = vmatpush.bf16.msra.mxu0 %v1781
    %1801 = vmatpush.bf16.msra.mxu0 %v1780
    %1802 = vmatpush.bf16.msra.mxu0 %v1779
    %1803 = vmatmul.bf16.gmra.mxu0 %v1728
    %v1804 = vpop.f32.mrf.mxu0
    %v1805 = vadd.f32 0.0, %v1804
    %v1806 = vpop.f32.mrf.mxu0
    %v1807 = vadd.f32 0.0, %v1806
    %1808 = vmatmul.bf16.gmra.mxu0 %v1729
    %v1809 = vpop.f32.mrf.mxu0
    %v1810 = vadd.f32 0.0, %v1809
    %v1811 = vpop.f32.mrf.mxu0
    %v1812 = vadd.f32 0.0, %v1811
    %1813 = vmatmul.bf16.gmra.mxu0 %v1730
    %v1814 = vpop.f32.mrf.mxu0
    %v1815 = vadd.f32 0.0, %v1814
    %v1816 = vpop.f32.mrf.mxu0
    %v1817 = vadd.f32 0.0, %v1816
    %1818 = vdwg.mxu0
    %v1819 = vadd.f32 %v345, %v1805
    %v1820 = vadd.f32 %v346, %v1807
    %v1821 = vadd.f32 %v347, %v1810
    %v1822 = vadd.f32 %v348, %v1812
    %v1823 = vadd.f32 %v349, %v1815
    %v1824 = vadd.f32 %v350, %v1817
    %v1825 = vld [vmem:[#allocation15] sm:$0x1]
    %v1827 = vperm.slane %v1825, 0
    %v1829 = vadd.f32 %v1819, %v1827
    %v1830 = vadd.f32 %v1820, %v1827
    %v1831 = vadd.f32 %v1821, %v1827
    %v1832 = vadd.f32 %v1822, %v1827
    %v1833 = vadd.f32 %v1823, %v1827
    %v1834 = vadd.f32 %v1824, %v1827
    %v1835 = vld [vmem:[#allocation17] sm:$0x1]
    %v1836 = vld [vmem:[#allocation18] sm:$0x1]
    %1837 = vadd.xlane.f32.xlu0 %v1829
    %v1838 = vpop.xlane.xlu0 %1837
    %1839 = vadd.xlane.f32.xlu0 %v1830
    %v1840 = vpop.xlane.xlu0 %1839
    %1841 = vadd.xlane.f32.xlu0 %v1831
    %v1842 = vpop.xlane.xlu0 %1841
    %1843 = vadd.xlane.f32.xlu0 %v1832
    %v1844 = vpop.xlane.xlu0 %1843
    %1845 = vadd.xlane.f32.xlu0 %v1833
    %v1846 = vpop.xlane.xlu0 %1845
    %1847 = vadd.xlane.f32.xlu0 %v1834
    %v1848 = vpop.xlane.xlu0 %1847
    %v1849 = vmul.f32 %v1838, %v377
    %v1850 = vmul.f32 %v1840, %v377
    %v1851 = vmul.f32 %v1842, %v377
    %v1852 = vmul.f32 %v1844, %v377
    %v1853 = vmul.f32 %v1846, %v377
    %v1854 = vmul.f32 %v1848, %v377
    %v1855 = vsub.f32 %v1829, %v1849
    %v1856 = vsub.f32 %v1830, %v1850
    %v1857 = vsub.f32 %v1831, %v1851
    %v1858 = vsub.f32 %v1832, %v1852
    %v1859 = vsub.f32 %v1833, %v1853
    %v1860 = vsub.f32 %v1834, %v1854
    %v1861 = vmul.f32 %v1855, %v1855
    %v1862 = vmul.f32 %v1856, %v1856
    %v1863 = vmul.f32 %v1857, %v1857
    %v1864 = vmul.f32 %v1858, %v1858
    %v1865 = vmul.f32 %v1859, %v1859
    %v1866 = vmul.f32 %v1860, %v1860
    %1867 = vadd.xlane.f32.xlu0 %v1861
    %v1868 = vpop.xlane.xlu0 %1867
    %1869 = vadd.xlane.f32.xlu0 %v1862
    %v1870 = vpop.xlane.xlu0 %1869
    %1871 = vadd.xlane.f32.xlu0 %v1863
    %v1872 = vpop.xlane.xlu0 %1871
    %1873 = vadd.xlane.f32.xlu0 %v1864
    %v1874 = vpop.xlane.xlu0 %1873
    %1875 = vadd.xlane.f32.xlu0 %v1865
    %v1876 = vpop.xlane.xlu0 %1875
    %1877 = vadd.xlane.f32.xlu0 %v1866
    %v1878 = vpop.xlane.xlu0 %1877
    %v1879 = vmul.f32 %v1868, %v377
    %v1880 = vmul.f32 %v1870, %v377
    %v1881 = vmul.f32 %v1872, %v377
    %v1882 = vmul.f32 %v1874, %v377
    %v1883 = vmul.f32 %v1876, %v377
    %v1884 = vmul.f32 %v1878, %v377
    %v1885 = vadd.f32 %v1879, 1e-06
    %v1886 = vadd.f32 %v1880, 1e-06
    %v1887 = vadd.f32 %v1881, 1e-06
    %v1888 = vadd.f32 %v1882, 1e-06
    %v1889 = vadd.f32 %v1883, 1e-06
    %v1890 = vadd.f32 %v1884, 1e-06
    %v1891 = vrsqrt.pop %v1885
    %v1892 = vmul.f32 %v1891, %v1885
    %v1893 = vmul.f32 %v1892, %v1891
    %v1894 = vmul.f32 0.5, %v1893
    %v1895 = vsub.f32 1.5, %v1894
    %v1896 = vmul.f32 %v1891, %v1895
    %vm1897 = vweird.f32 %v1885
    %vm1898 = vweird.f32 %v1891
    %vm1899 = vmor %vm1897, %vm1898
    %v1900 = vsel %vm1899, %v1891, %v1896
    %v1901 = vrsqrt.pop %v1886
    %v1902 = vmul.f32 %v1901, %v1886
    %v1903 = vmul.f32 %v1902, %v1901
    %v1904 = vmul.f32 0.5, %v1903
    %v1905 = vsub.f32 1.5, %v1904
    %v1906 = vmul.f32 %v1901, %v1905
    %vm1907 = vweird.f32 %v1886
    %vm1908 = vweird.f32 %v1901
    %vm1909 = vmor %vm1907, %vm1908
    %v1910 = vsel %vm1909, %v1901, %v1906
    %v1911 = vrsqrt.pop %v1887
    %v1912 = vmul.f32 %v1911, %v1887
    %v1913 = vmul.f32 %v1912, %v1911
    %v1914 = vmul.f32 0.5, %v1913
    %v1915 = vsub.f32 1.5, %v1914
    %v1916 = vmul.f32 %v1911, %v1915
    %vm1917 = vweird.f32 %v1887
    %vm1918 = vweird.f32 %v1911
    %vm1919 = vmor %vm1917, %vm1918
    %v1920 = vsel %vm1919, %v1911, %v1916
    %v1921 = vrsqrt.pop %v1888
    %v1922 = vmul.f32 %v1921, %v1888
    %v1923 = vmul.f32 %v1922, %v1921
    %v1924 = vmul.f32 0.5, %v1923
    %v1925 = vsub.f32 1.5, %v1924
    %v1926 = vmul.f32 %v1921, %v1925
    %vm1927 = vweird.f32 %v1888
    %vm1928 = vweird.f32 %v1921
    %vm1929 = vmor %vm1927, %vm1928
    %v1930 = vsel %vm1929, %v1921, %v1926
    %v1931 = vrsqrt.pop %v1889
    %v1932 = vmul.f32 %v1931, %v1889
    %v1933 = vmul.f32 %v1932, %v1931
    %v1934 = vmul.f32 0.5, %v1933
    %v1935 = vsub.f32 1.5, %v1934
    %v1936 = vmul.f32 %v1931, %v1935
    %vm1937 = vweird.f32 %v1889
    %vm1938 = vweird.f32 %v1931
    %vm1939 = vmor %vm1937, %vm1938
    %v1940 = vsel %vm1939, %v1931, %v1936
    %v1941 = vrsqrt.pop %v1890
    %v1942 = vmul.f32 %v1941, %v1890
    %v1943 = vmul.f32 %v1942, %v1941
    %v1944 = vmul.f32 0.5, %v1943
    %v1945 = vsub.f32 1.5, %v1944
    %v1946 = vmul.f32 %v1941, %v1945
    %vm1947 = vweird.f32 %v1890
    %vm1948 = vweird.f32 %v1941
    %vm1949 = vmor %vm1947, %vm1948
    %v1950 = vsel %vm1949, %v1941, %v1946
    %v1951 = vmul.f32 %v1855, %v1900
    %v1952 = vmul.f32 %v1856, %v1910
    %v1953 = vmul.f32 %v1857, %v1920
    %v1954 = vmul.f32 %v1858, %v1930
    %v1955 = vmul.f32 %v1859, %v1940
    %v1956 = vmul.f32 %v1860, %v1950
    %v1958 = vperm.slane %v1835, 0
    %v1960 = vmul.f32 %v1951, %v1958
    %v1961 = vmul.f32 %v1952, %v1958
    %v1962 = vmul.f32 %v1953, %v1958
    %v1963 = vmul.f32 %v1954, %v1958
    %v1964 = vmul.f32 %v1955, %v1958
    %v1965 = vmul.f32 %v1956, %v1958
    %v1967 = vperm.slane %v1836, 0
    %v1969 = vadd.f32 %v1960, %v1967
    %v1970 = vadd.f32 %v1961, %v1967
    %v1971 = vadd.f32 %v1962, %v1967
    %v1972 = vadd.f32 %v1963, %v1967
    %v1973 = vadd.f32 %v1964, %v1967
    %v1974 = vadd.f32 %v1965, %v1967
    %v1975 = vpack.c.bf16 %v1970, %v1969
    %v1976 = vpack.c.bf16 %v1972, %v1971
    %v1977 = vpack.c.bf16 %v1974, %v1973
    %v1978 = vld [vmem:[#allocation20] sm:$0xff]
    %v1979 = vld [vmem:[#allocation20 + $0x8] sm:$0xff]
    %v1980 = vld [vmem:[#allocation20 + $0x10] sm:$0xff]
    %v1981 = vld [vmem:[#allocation20 + $0x18] sm:$0xff]
    %v1982 = vld [vmem:[#allocation20 + $0x20] sm:$0xff]
    %v1983 = vld [vmem:[#allocation20 + $0x28] sm:$0xff]
    %v1984 = vld [vmem:[#allocation20 + $0x30] sm:$0xff]
    %v1985 = vld [vmem:[#allocation20 + $0x38] sm:$0xff]
    %v1986 = vld [vmem:[#allocation20 + $0x40] sm:$0xff]
    %v1987 = vld [vmem:[#allocation20 + $0x48] sm:$0xff]
    %v1988 = vld [vmem:[#allocation20 + $0x50] sm:$0xff]
    %v1989 = vld [vmem:[#allocation20 + $0x58] sm:$0xff]
    %v1990 = vld [vmem:[#allocation20 + $0x60] sm:$0xff]
    %v1991 = vld [vmem:[#allocation20 + $0x68] sm:$0xff]
    %v1992 = vld [vmem:[#allocation20 + $0x70] sm:$0xff]
    %v1993 = vld [vmem:[#allocation20 + $0x78] sm:$0xff]
    %v1994 = vld [vmem:[#allocation20 + $0x80] sm:$0xff]
    %v1995 = vld [vmem:[#allocation20 + $0x88] sm:$0xff]
    %v1996 = vld [vmem:[#allocation20 + $0x90] sm:$0xff]
    %v1997 = vld [vmem:[#allocation20 + $0x98] sm:$0xff]
    %v1998 = vld [vmem:[#allocation20 + $0xa0] sm:$0xff]
    %v1999 = vld [vmem:[#allocation20 + $0xa8] sm:$0xff]
    %v2000 = vld [vmem:[#allocation20 + $0xb0] sm:$0xff]
    %v2001 = vld [vmem:[#allocation20 + $0xb8] sm:$0xff]
    %v2002 = vld [vmem:[#allocation20 + $0xc0] sm:$0xff]
    %v2003 = vld [vmem:[#allocation20 + $0xc8] sm:$0xff]
    %v2004 = vld [vmem:[#allocation20 + $0xd0] sm:$0xff]
    %v2005 = vld [vmem:[#allocation20 + $0xd8] sm:$0xff]
    %v2006 = vld [vmem:[#allocation20 + $0xe0] sm:$0xff]
    %v2007 = vld [vmem:[#allocation20 + $0xe8] sm:$0xff]
    %v2008 = vld [vmem:[#allocation20 + $0xf0] sm:$0xff]
    %v2009 = vld [vmem:[#allocation20 + $0xf8] sm:$0xff]
    %v2010 = vld [vmem:[%s15] sm:$0xf]
    %v2012 = vperm.slane %v2010, 0
    %v2013 = vperm.slane %v2010, 1
    %v2014 = vperm.slane %v2010, 2
    %v2015 = vperm.slane %v2010, 3
    %v2052 = vunpack.c.l.b16 %v1978
    %v2053 = vunpack.c.h.b16 %v1978
    %v2054 = vunpack.c.l.b16 %v1979
    %v2055 = vunpack.c.h.b16 %v1979
    %v2056 = vunpack.c.l.b16 %v1980
    %v2057 = vunpack.c.h.b16 %v1980
    %v2058 = vunpack.c.l.b16 %v1981
    %v2059 = vunpack.c.h.b16 %v1981
    %v2060 = vunpack.c.l.b16 %v1982
    %v2061 = vunpack.c.h.b16 %v1982
    %v2062 = vunpack.c.l.b16 %v1983
    %v2063 = vunpack.c.h.b16 %v1983
    %v2064 = vunpack.c.l.b16 %v1984
    %v2065 = vunpack.c.h.b16 %v1984
    %v2066 = vunpack.c.l.b16 %v1985
    %v2067 = vunpack.c.h.b16 %v1985
    %v2068 = vunpack.c.l.b16 %v1986
    %v2069 = vunpack.c.h.b16 %v1986
    %v2070 = vunpack.c.l.b16 %v1987
    %v2071 = vunpack.c.h.b16 %v1987
    %v2072 = vunpack.c.l.b16 %v1988
    %v2073 = vunpack.c.h.b16 %v1988
    %v2074 = vunpack.c.l.b16 %v1989
    %v2075 = vunpack.c.h.b16 %v1989
    %v2076 = vunpack.c.l.b16 %v1990
    %v2077 = vunpack.c.h.b16 %v1990
    %v2078 = vunpack.c.l.b16 %v1991
    %v2079 = vunpack.c.h.b16 %v1991
    %v2080 = vunpack.c.l.b16 %v1992
    %v2081 = vunpack.c.h.b16 %v1992
    %v2082 = vunpack.c.l.b16 %v1993
    %v2083 = vunpack.c.h.b16 %v1993
    %v2084 = vunpack.c.l.b16 %v1994
    %v2085 = vunpack.c.h.b16 %v1994
    %v2086 = vunpack.c.l.b16 %v1995
    %v2087 = vunpack.c.h.b16 %v1995
    %v2088 = vunpack.c.l.b16 %v1996
    %v2089 = vunpack.c.h.b16 %v1996
    %v2090 = vunpack.c.l.b16 %v1997
    %v2091 = vunpack.c.h.b16 %v1997
    %v2092 = vunpack.c.l.b16 %v1998
    %v2093 = vunpack.c.h.b16 %v1998
    %v2094 = vunpack.c.l.b16 %v1999
    %v2095 = vunpack.c.h.b16 %v1999
    %v2096 = vunpack.c.l.b16 %v2000
    %v2097 = vunpack.c.h.b16 %v2000
    %v2098 = vunpack.c.l.b16 %v2001
    %v2099 = vunpack.c.h.b16 %v2001
    %v2100 = vunpack.c.l.b16 %v2002
    %v2101 = vunpack.c.h.b16 %v2002
    %v2102 = vunpack.c.l.b16 %v2003
    %v2103 = vunpack.c.h.b16 %v2003
    %v2104 = vunpack.c.l.b16 %v2004
    %v2105 = vunpack.c.h.b16 %v2004
    %v2106 = vunpack.c.l.b16 %v2005
    %v2107 = vunpack.c.h.b16 %v2005
    %v2108 = vunpack.c.l.b16 %v2006
    %v2109 = vunpack.c.h.b16 %v2006
    %v2110 = vunpack.c.l.b16 %v2007
    %v2111 = vunpack.c.h.b16 %v2007
    %v2112 = vunpack.c.l.b16 %v2008
    %v2113 = vunpack.c.h.b16 %v2008
    %v2114 = vunpack.c.l.b16 %v2009
    %v2115 = vunpack.c.h.b16 %v2009
    %v2116 = vpack.c.b16 %v2056, %v2052
    %v2117 = vpack.c.b16 %v2057, %v2053
    %v2118 = vpack.c.b16 %v2058, %v2054
    %v2119 = vpack.c.b16 %v2059, %v2055
    %v2120 = vpack.c.b16 %v2064, %v2060
    %v2121 = vpack.c.b16 %v2065, %v2061
    %v2122 = vpack.c.b16 %v2066, %v2062
    %v2123 = vpack.c.b16 %v2067, %v2063
    %v2124 = vpack.c.b16 %v2072, %v2068
    %v2125 = vpack.c.b16 %v2073, %v2069
    %v2126 = vpack.c.b16 %v2074, %v2070
    %v2127 = vpack.c.b16 %v2075, %v2071
    %v2128 = vpack.c.b16 %v2080, %v2076
    %v2129 = vpack.c.b16 %v2081, %v2077
    %v2130 = vpack.c.b16 %v2082, %v2078
    %v2131 = vpack.c.b16 %v2083, %v2079
    %v2132 = vpack.c.b16 %v2088, %v2084
    %v2133 = vpack.c.b16 %v2089, %v2085
    %v2134 = vpack.c.b16 %v2090, %v2086
    %v2135 = vpack.c.b16 %v2091, %v2087
    %v2136 = vpack.c.b16 %v2096, %v2092
    %v2137 = vpack.c.b16 %v2097, %v2093
    %v2138 = vpack.c.b16 %v2098, %v2094
    %v2139 = vpack.c.b16 %v2099, %v2095
    %v2140 = vpack.c.b16 %v2104, %v2100
    %v2141 = vpack.c.b16 %v2105, %v2101
    %v2142 = vpack.c.b16 %v2106, %v2102
    %v2143 = vpack.c.b16 %v2107, %v2103
    %v2144 = vpack.c.b16 %v2112, %v2108
    %v2145 = vpack.c.b16 %v2113, %v2109
    %v2146 = vpack.c.b16 %v2114, %v2110
    %v2147 = vpack.c.b16 %v2115, %v2111
    %2180 = vmatpush.bf16.msra.mxu0 %v2144
    %2181 = vmatpush.bf16.msra.mxu0 %v2140
    %2182 = vmatpush.bf16.msra.mxu0 %v2136
    %2183 = vmatpush.bf16.msra.mxu0 %v2132
    %2184 = vmatpush.bf16.msra.mxu0 %v2128
    %2185 = vmatpush.bf16.msra.mxu0 %v2124
    %2186 = vmatpush.bf16.msra.mxu0 %v2120
    %2187 = vmatpush.bf16.msra.mxu0 %v2116
    %2188 = vmatmul.bf16.gmra.mxu0 %v1975
    %v2189 = vpop.f32.mrf.mxu0
    %v2190 = vadd.f32 %v2012, %v2189
    %v2191 = vpop.f32.mrf.mxu0
    %v2192 = vadd.f32 %v2012, %v2191
    %2193 = vmatmul.bf16.gmra.mxu0 %v1976
    %v2194 = vpop.f32.mrf.mxu0
    %v2195 = vadd.f32 %v2012, %v2194
    %v2196 = vpop.f32.mrf.mxu0
    %v2197 = vadd.f32 %v2012, %v2196
    %2198 = vmatmul.bf16.gmra.mxu0 %v1977
    %v2199 = vpop.f32.mrf.mxu0
    %v2200 = vadd.f32 %v2012, %v2199
    %v2201 = vpop.f32.mrf.mxu0
    %v2202 = vadd.f32 %v2012, %v2201
    %2203 = vdwg.mxu0
    %2204 = vmatpush.bf16.msra.mxu0 %v2145
    %2205 = vmatpush.bf16.msra.mxu0 %v2141
    %2206 = vmatpush.bf16.msra.mxu0 %v2137
    %2207 = vmatpush.bf16.msra.mxu0 %v2133
    %2208 = vmatpush.bf16.msra.mxu0 %v2129
    %2209 = vmatpush.bf16.msra.mxu0 %v2125
    %2210 = vmatpush.bf16.msra.mxu0 %v2121
    %2211 = vmatpush.bf16.msra.mxu0 %v2117
    %2212 = vmatmul.bf16.gmra.mxu0 %v1975
    %v2213 = vpop.f32.mrf.mxu0
    %v2214 = vadd.f32 %v2013, %v2213
    %v2215 = vpop.f32.mrf.mxu0
    %v2216 = vadd.f32 %v2013, %v2215
    %2217 = vmatmul.bf16.gmra.mxu0 %v1976
    %v2218 = vpop.f32.mrf.mxu0
    %v2219 = vadd.f32 %v2013, %v2218
    %v2220 = vpop.f32.mrf.mxu0
    %v2221 = vadd.f32 %v2013, %v2220
    %2222 = vmatmul.bf16.gmra.mxu0 %v1977
    %v2223 = vpop.f32.mrf.mxu0
    %v2224 = vadd.f32 %v2013, %v2223
    %v2225 = vpop.f32.mrf.mxu0
    %v2226 = vadd.f32 %v2013, %v2225
    %2227 = vdwg.mxu0
    %2228 = vmatpush.bf16.msra.mxu0 %v2146
    %2229 = vmatpush.bf16.msra.mxu0 %v2142
    %2230 = vmatpush.bf16.msra.mxu0 %v2138
    %2231 = vmatpush.bf16.msra.mxu0 %v2134
    %2232 = vmatpush.bf16.msra.mxu0 %v2130
    %2233 = vmatpush.bf16.msra.mxu0 %v2126
    %2234 = vmatpush.bf16.msra.mxu0 %v2122
    %2235 = vmatpush.bf16.msra.mxu0 %v2118
    %2236 = vmatmul.bf16.gmra.mxu0 %v1975
    %v2237 = vpop.f32.mrf.mxu0
    %v2238 = vadd.f32 %v2014, %v2237
    %v2239 = vpop.f32.mrf.mxu0
    %v2240 = vadd.f32 %v2014, %v2239
    %2241 = vmatmul.bf16.gmra.mxu0 %v1976
    %v2242 = vpop.f32.mrf.mxu0
    %v2243 = vadd.f32 %v2014, %v2242
    %v2244 = vpop.f32.mrf.mxu0
    %v2245 = vadd.f32 %v2014, %v2244
    %2246 = vmatmul.bf16.gmra.mxu0 %v1977
    %v2247 = vpop.f32.mrf.mxu0
    %v2248 = vadd.f32 %v2014, %v2247
    %v2249 = vpop.f32.mrf.mxu0
    %v2250 = vadd.f32 %v2014, %v2249
    %2251 = vdwg.mxu0
    %2252 = vmatpush.bf16.msra.mxu0 %v2147
    %2253 = vmatpush.bf16.msra.mxu0 %v2143
    %2254 = vmatpush.bf16.msra.mxu0 %v2139
    %2255 = vmatpush.bf16.msra.mxu0 %v2135
    %2256 = vmatpush.bf16.msra.mxu0 %v2131
    %2257 = vmatpush.bf16.msra.mxu0 %v2127
    %2258 = vmatpush.bf16.msra.mxu0 %v2123
    %2259 = vmatpush.bf16.msra.mxu0 %v2119
    %2260 = vmatmul.bf16.gmra.mxu0 %v1975
    %v2261 = vpop.f32.mrf.mxu0
    %v2262 = vadd.f32 %v2015, %v2261
    %v2263 = vpop.f32.mrf.mxu0
    %v2264 = vadd.f32 %v2015, %v2263
    %2265 = vmatmul.bf16.gmra.mxu0 %v1976
    %v2266 = vpop.f32.mrf.mxu0
    %v2267 = vadd.f32 %v2015, %v2266
    %v2268 = vpop.f32.mrf.mxu0
    %v2269 = vadd.f32 %v2015, %v2268
    %2270 = vmatmul.bf16.gmra.mxu0 %v1977
    %v2271 = vpop.f32.mrf.mxu0
    %v2272 = vadd.f32 %v2015, %v2271
    %v2273 = vpop.f32.mrf.mxu0
    %v2274 = vadd.f32 %v2015, %v2273
    %2275 = vdwg.mxu0
    %v2276 = vmul.f32 %v2190, %v2190
    %v2277 = vmul.f32 %v2214, %v2214
    %v2278 = vmul.f32 %v2238, %v2238
    %v2279 = vmul.f32 %v2262, %v2262
    %v2280 = vmul.f32 %v2192, %v2192
    %v2281 = vmul.f32 %v2216, %v2216
    %v2282 = vmul.f32 %v2240, %v2240
    %v2283 = vmul.f32 %v2264, %v2264
    %v2284 = vmul.f32 %v2195, %v2195
    %v2285 = vmul.f32 %v2219, %v2219
    %v2286 = vmul.f32 %v2243, %v2243
    %v2287 = vmul.f32 %v2267, %v2267
    %v2288 = vmul.f32 %v2197, %v2197
    %v2289 = vmul.f32 %v2221, %v2221
    %v2290 = vmul.f32 %v2245, %v2245
    %v2291 = vmul.f32 %v2269, %v2269
    %v2292 = vmul.f32 %v2200, %v2200
    %v2293 = vmul.f32 %v2224, %v2224
    %v2294 = vmul.f32 %v2248, %v2248
    %v2295 = vmul.f32 %v2272, %v2272
    %v2296 = vmul.f32 %v2202, %v2202
    %v2297 = vmul.f32 %v2226, %v2226
    %v2298 = vmul.f32 %v2250, %v2250
    %v2299 = vmul.f32 %v2274, %v2274
    %v2300 = vmul.f32 %v2190, %v2276
    %v2301 = vmul.f32 %v2214, %v2277
    %v2302 = vmul.f32 %v2238, %v2278
    %v2303 = vmul.f32 %v2262, %v2279
    %v2304 = vmul.f32 %v2192, %v2280
    %v2305 = vmul.f32 %v2216, %v2281
    %v2306 = vmul.f32 %v2240, %v2282
    %v2307 = vmul.f32 %v2264, %v2283
    %v2308 = vmul.f32 %v2195, %v2284
    %v2309 = vmul.f32 %v2219, %v2285
    %v2310 = vmul.f32 %v2243, %v2286
    %v2311 = vmul.f32 %v2267, %v2287
    %v2312 = vmul.f32 %v2197, %v2288
    %v2313 = vmul.f32 %v2221, %v2289
    %v2314 = vmul.f32 %v2245, %v2290
    %v2315 = vmul.f32 %v2269, %v2291
    %v2316 = vmul.f32 %v2200, %v2292
    %v2317 = vmul.f32 %v2224, %v2293
    %v2318 = vmul.f32 %v2248, %v2294
    %v2319 = vmul.f32 %v2272, %v2295
    %v2320 = vmul.f32 %v2202, %v2296
    %v2321 = vmul.f32 %v2226, %v2297
    %v2322 = vmul.f32 %v2250, %v2298
    %v2323 = vmul.f32 %v2274, %v2299
    %v2324 = vmul.f32 %v2300, 0.044715
    %v2325 = vmul.f32 %v2301, 0.044715
    %v2326 = vmul.f32 %v2302, 0.044715
    %v2327 = vmul.f32 %v2303, 0.044715
    %v2328 = vmul.f32 %v2304, 0.044715
    %v2329 = vmul.f32 %v2305, 0.044715
    %v2330 = vmul.f32 %v2306, 0.044715
    %v2331 = vmul.f32 %v2307, 0.044715
    %v2332 = vmul.f32 %v2308, 0.044715
    %v2333 = vmul.f32 %v2309, 0.044715
    %v2334 = vmul.f32 %v2310, 0.044715
    %v2335 = vmul.f32 %v2311, 0.044715
    %v2336 = vmul.f32 %v2312, 0.044715
    %v2337 = vmul.f32 %v2313, 0.044715
    %v2338 = vmul.f32 %v2314, 0.044715
    %v2339 = vmul.f32 %v2315, 0.044715
    %v2340 = vmul.f32 %v2316, 0.044715
    %v2341 = vmul.f32 %v2317, 0.044715
    %v2342 = vmul.f32 %v2318, 0.044715
    %v2343 = vmul.f32 %v2319, 0.044715
    %v2344 = vmul.f32 %v2320, 0.044715
    %v2345 = vmul.f32 %v2321, 0.044715
    %v2346 = vmul.f32 %v2322, 0.044715
    %v2347 = vmul.f32 %v2323, 0.044715
    %v2348 = vadd.f32 %v2190, %v2324
    %v2349 = vadd.f32 %v2214, %v2325
    %v2350 = vadd.f32 %v2238, %v2326
    %v2351 = vadd.f32 %v2262, %v2327
    %v2352 = vadd.f32 %v2192, %v2328
    %v2353 = vadd.f32 %v2216, %v2329
    %v2354 = vadd.f32 %v2240, %v2330
    %v2355 = vadd.f32 %v2264, %v2331
    %v2356 = vadd.f32 %v2195, %v2332
    %v2357 = vadd.f32 %v2219, %v2333
    %v2358 = vadd.f32 %v2243, %v2334
    %v2359 = vadd.f32 %v2267, %v2335
    %v2360 = vadd.f32 %v2197, %v2336
    %v2361 = vadd.f32 %v2221, %v2337
    %v2362 = vadd.f32 %v2245, %v2338
    %v2363 = vadd.f32 %v2269, %v2339
    %v2364 = vadd.f32 %v2200, %v2340
    %v2365 = vadd.f32 %v2224, %v2341
    %v2366 = vadd.f32 %v2248, %v2342
    %v2367 = vadd.f32 %v2272, %v2343
    %v2368 = vadd.f32 %v2202, %v2344
    %v2369 = vadd.f32 %v2226, %v2345
    %v2370 = vadd.f32 %v2250, %v2346
    %v2371 = vadd.f32 %v2274, %v2347
    %v2372 = vmul.f32 %v2348, 0.7978846
    %v2373 = vmul.f32 %v2349, 0.7978846
    %v2374 = vmul.f32 %v2350, 0.7978846
    %v2375 = vmul.f32 %v2351, 0.7978846
    %v2376 = vmul.f32 %v2352, 0.7978846
    %v2377 = vmul.f32 %v2353, 0.7978846
    %v2378 = vmul.f32 %v2354, 0.7978846
    %v2379 = vmul.f32 %v2355, 0.7978846
    %v2380 = vmul.f32 %v2356, 0.7978846
    %v2381 = vmul.f32 %v2357, 0.7978846
    %v2382 = vmul.f32 %v2358, 0.7978846
    %v2383 = vmul.f32 %v2359, 0.7978846
    %v2384 = vmul.f32 %v2360, 0.7978846
    %v2385 = vmul.f32 %v2361, 0.7978846
    %v2386 = vmul.f32 %v2362, 0.7978846
    %v2387 = vmul.f32 %v2363, 0.7978846
    %v2388 = vmul.f32 %v2364, 0.7978846
    %v2389 = vmul.f32 %v2365, 0.7978846
    %v2390 = vmul.f32 %v2366, 0.7978846
    %v2391 = vmul.f32 %v2367, 0.7978846
    %v2392 = vmul.f32 %v2368, 0.7978846
    %v2393 = vmul.f32 %v2369, 0.7978846
    %v2394 = vmul.f32 %v2370, 0.7978846
    %v2395 = vmul.f32 %v2371, 0.7978846
    %v2396 = vtanh.pop %v2372
    %v2397 = vtanh.pop %v2373
    %v2398 = vtanh.pop %v2374
    %v2399 = vtanh.pop %v2375
    %v2400 = vtanh.pop %v2376
    %v2401 = vtanh.pop %v2377
    %v2402 = vtanh.pop %v2378
    %v2403 = vtanh.pop %v2379
    %v2404 = vtanh.pop %v2380
    %v2405 = vtanh.pop %v2381
    %v2406 = vtanh.pop %v2382
    %v2407 = vtanh.pop %v2383
    %v2408 = vtanh.pop %v2384
    %v2409 = vtanh.pop %v2385
    %v2410 = vtanh.pop %v2386
    %v2411 = vtanh.pop %v2387
    %v2412 = vtanh.pop %v2388
    %v2413 = vtanh.pop %v2389
    %v2414 = vtanh.pop %v2390
    %v2415 = vtanh.pop %v2391
    %v2416 = vtanh.pop %v2392
    %v2417 = vtanh.pop %v2393
    %v2418 = vtanh.pop %v2394
    %v2419 = vtanh.pop %v2395
    %v2420 = vadd.f32 %v2396, 1.0
    %v2421 = vadd.f32 %v2397, 1.0
    %v2422 = vadd.f32 %v2398, 1.0
    %v2423 = vadd.f32 %v2399, 1.0
    %v2424 = vadd.f32 %v2400, 1.0
    %v2425 = vadd.f32 %v2401, 1.0
    %v2426 = vadd.f32 %v2402, 1.0
    %v2427 = vadd.f32 %v2403, 1.0
    %v2428 = vadd.f32 %v2404, 1.0
    %v2429 = vadd.f32 %v2405, 1.0
    %v2430 = vadd.f32 %v2406, 1.0
    %v2431 = vadd.f32 %v2407, 1.0
    %v2432 = vadd.f32 %v2408, 1.0
    %v2433 = vadd.f32 %v2409, 1.0
    %v2434 = vadd.f32 %v2410, 1.0
    %v2435 = vadd.f32 %v2411, 1.0
    %v2436 = vadd.f32 %v2412, 1.0
    %v2437 = vadd.f32 %v2413, 1.0
    %v2438 = vadd.f32 %v2414, 1.0
    %v2439 = vadd.f32 %v2415, 1.0
    %v2440 = vadd.f32 %v2416, 1.0
    %v2441 = vadd.f32 %v2417, 1.0
    %v2442 = vadd.f32 %v2418, 1.0
    %v2443 = vadd.f32 %v2419, 1.0
    %v2444 = vmul.f32 %v2420, 0.5
    %v2445 = vmul.f32 %v2421, 0.5
    %v2446 = vmul.f32 %v2422, 0.5
    %v2447 = vmul.f32 %v2423, 0.5
    %v2448 = vmul.f32 %v2424, 0.5
    %v2449 = vmul.f32 %v2425, 0.5
    %v2450 = vmul.f32 %v2426, 0.5
    %v2451 = vmul.f32 %v2427, 0.5
    %v2452 = vmul.f32 %v2428, 0.5
    %v2453 = vmul.f32 %v2429, 0.5
    %v2454 = vmul.f32 %v2430, 0.5
    %v2455 = vmul.f32 %v2431, 0.5
    %v2456 = vmul.f32 %v2432, 0.5
    %v2457 = vmul.f32 %v2433, 0.5
    %v2458 = vmul.f32 %v2434, 0.5
    %v2459 = vmul.f32 %v2435, 0.5
    %v2460 = vmul.f32 %v2436, 0.5
    %v2461 = vmul.f32 %v2437, 0.5
    %v2462 = vmul.f32 %v2438, 0.5
    %v2463 = vmul.f32 %v2439, 0.5
    %v2464 = vmul.f32 %v2440, 0.5
    %v2465 = vmul.f32 %v2441, 0.5
    %v2466 = vmul.f32 %v2442, 0.5
    %v2467 = vmul.f32 %v2443, 0.5
    %v2468 = vmul.f32 %v2190, %v2444
    %v2469 = vmul.f32 %v2214, %v2445
    %v2470 = vmul.f32 %v2238, %v2446
    %v2471 = vmul.f32 %v2262, %v2447
    %v2472 = vmul.f32 %v2192, %v2448
    %v2473 = vmul.f32 %v2216, %v2449
    %v2474 = vmul.f32 %v2240, %v2450
    %v2475 = vmul.f32 %v2264, %v2451
    %v2476 = vmul.f32 %v2195, %v2452
    %v2477 = vmul.f32 %v2219, %v2453
    %v2478 = vmul.f32 %v2243, %v2454
    %v2479 = vmul.f32 %v2267, %v2455
    %v2480 = vmul.f32 %v2197, %v2456
    %v2481 = vmul.f32 %v2221, %v2457
    %v2482 = vmul.f32 %v2245, %v2458
    %v2483 = vmul.f32 %v2269, %v2459
    %v2484 = vmul.f32 %v2200, %v2460
    %v2485 = vmul.f32 %v2224, %v2461
    %v2486 = vmul.f32 %v2248, %v2462
    %v2487 = vmul.f32 %v2272, %v2463
    %v2488 = vmul.f32 %v2202, %v2464
    %v2489 = vmul.f32 %v2226, %v2465
    %v2490 = vmul.f32 %v2250, %v2466
    %v2491 = vmul.f32 %v2274, %v2467
    %v2492 = vpack.c.bf16 %v2472, %v2468
    %v2493 = vpack.c.bf16 %v2473, %v2469
    %v2494 = vpack.c.bf16 %v2474, %v2470
    %v2495 = vpack.c.bf16 %v2475, %v2471
    %v2496 = vpack.c.bf16 %v2480, %v2476
    %v2497 = vpack.c.bf16 %v2481, %v2477
    %v2498 = vpack.c.bf16 %v2482, %v2478
    %v2499 = vpack.c.bf16 %v2483, %v2479
    %v2500 = vpack.c.bf16 %v2488, %v2484
    %v2501 = vpack.c.bf16 %v2489, %v2485
    %v2502 = vpack.c.bf16 %v2490, %v2486
    %v2503 = vpack.c.bf16 %v2491, %v2487
    %v2504 = vld [vmem:[#allocation21] sm:$0xf]
    %v2505 = vld [vmem:[#allocation21 + $0x4] sm:$0xf]
    %v2506 = vld [vmem:[#allocation21 + $0x8] sm:$0xf]
    %v2507 = vld [vmem:[#allocation21 + $0xc] sm:$0xf]
    %v2508 = vld [vmem:[#allocation21 + $0x10] sm:$0xf]
    %v2509 = vld [vmem:[#allocation21 + $0x14] sm:$0xf]
    %v2510 = vld [vmem:[#allocation21 + $0x18] sm:$0xf]
    %v2511 = vld [vmem:[#allocation21 + $0x1c] sm:$0xf]
    %v2512 = vld [vmem:[#allocation21 + $0x20] sm:$0xf]
    %v2513 = vld [vmem:[#allocation21 + $0x24] sm:$0xf]
    %v2514 = vld [vmem:[#allocation21 + $0x28] sm:$0xf]
    %v2515 = vld [vmem:[#allocation21 + $0x2c] sm:$0xf]
    %v2516 = vld [vmem:[#allocation21 + $0x30] sm:$0xf]
    %v2517 = vld [vmem:[#allocation21 + $0x34] sm:$0xf]
    %v2518 = vld [vmem:[#allocation21 + $0x38] sm:$0xf]
    %v2519 = vld [vmem:[#allocation21 + $0x3c] sm:$0xf]
    %v2520 = vld [vmem:[#allocation21 + $0x40] sm:$0xf]
    %v2521 = vld [vmem:[#allocation21 + $0x44] sm:$0xf]
    %v2522 = vld [vmem:[#allocation21 + $0x48] sm:$0xf]
    %v2523 = vld [vmem:[#allocation21 + $0x4c] sm:$0xf]
    %v2524 = vld [vmem:[#allocation21 + $0x50] sm:$0xf]
    %v2525 = vld [vmem:[#allocation21 + $0x54] sm:$0xf]
    %v2526 = vld [vmem:[#allocation21 + $0x58] sm:$0xf]
    %v2527 = vld [vmem:[#allocation21 + $0x5c] sm:$0xf]
    %v2528 = vld [vmem:[#allocation21 + $0x60] sm:$0xf]
    %v2529 = vld [vmem:[#allocation21 + $0x64] sm:$0xf]
    %v2530 = vld [vmem:[#allocation21 + $0x68] sm:$0xf]
    %v2531 = vld [vmem:[#allocation21 + $0x6c] sm:$0xf]
    %v2532 = vld [vmem:[#allocation21 + $0x70] sm:$0xf]
    %v2533 = vld [vmem:[#allocation21 + $0x74] sm:$0xf]
    %v2534 = vld [vmem:[#allocation21 + $0x78] sm:$0xf]
    %v2535 = vld [vmem:[#allocation21 + $0x7c] sm:$0xf]
    %v2536 = vld [vmem:[#allocation21 + $0x80] sm:$0xf]
    %v2537 = vld [vmem:[#allocation21 + $0x84] sm:$0xf]
    %v2538 = vld [vmem:[#allocation21 + $0x88] sm:$0xf]
    %v2539 = vld [vmem:[#allocation21 + $0x8c] sm:$0xf]
    %v2540 = vld [vmem:[#allocation21 + $0x90] sm:$0xf]
    %v2541 = vld [vmem:[#allocation21 + $0x94] sm:$0xf]
    %v2542 = vld [vmem:[#allocation21 + $0x98] sm:$0xf]
    %v2543 = vld [vmem:[#allocation21 + $0x9c] sm:$0xf]
    %v2544 = vld [vmem:[#allocation21 + $0xa0] sm:$0xf]
    %v2545 = vld [vmem:[#allocation21 + $0xa4] sm:$0xf]
    %v2546 = vld [vmem:[#allocation21 + $0xa8] sm:$0xf]
    %v2547 = vld [vmem:[#allocation21 + $0xac] sm:$0xf]
    %v2548 = vld [vmem:[#allocation21 + $0xb0] sm:$0xf]
    %v2549 = vld [vmem:[#allocation21 + $0xb4] sm:$0xf]
    %v2550 = vld [vmem:[#allocation21 + $0xb8] sm:$0xf]
    %v2551 = vld [vmem:[#allocation21 + $0xbc] sm:$0xf]
    %v2552 = vld [vmem:[#allocation21 + $0xc0] sm:$0xf]
    %v2553 = vld [vmem:[#allocation21 + $0xc4] sm:$0xf]
    %v2554 = vld [vmem:[#allocation21 + $0xc8] sm:$0xf]
    %v2555 = vld [vmem:[#allocation21 + $0xcc] sm:$0xf]
    %v2556 = vld [vmem:[#allocation21 + $0xd0] sm:$0xf]
    %v2557 = vld [vmem:[#allocation21 + $0xd4] sm:$0xf]
    %v2558 = vld [vmem:[#allocation21 + $0xd8] sm:$0xf]
    %v2559 = vld [vmem:[#allocation21 + $0xdc] sm:$0xf]
    %v2560 = vld [vmem:[#allocation21 + $0xe0] sm:$0xf]
    %v2561 = vld [vmem:[#allocation21 + $0xe4] sm:$0xf]
    %v2562 = vld [vmem:[#allocation21 + $0xe8] sm:$0xf]
    %v2563 = vld [vmem:[#allocation21 + $0xec] sm:$0xf]
    %v2564 = vld [vmem:[#allocation21 + $0xf0] sm:$0xf]
    %v2565 = vld [vmem:[#allocation21 + $0xf4] sm:$0xf]
    %v2566 = vld [vmem:[#allocation21 + $0xf8] sm:$0xf]
    %v2567 = vld [vmem:[#allocation21 + $0xfc] sm:$0xf]
    %v2568 = vld [vmem:[%s17] sm:$0x1]
    %v2570 = vperm.slane %v2568, 0
    %v2636 = vunpack.c.l.b16 %v2504
    %v2637 = vunpack.c.l.b16 %v2505
    %v2638 = vunpack.c.l.b16 %v2506
    %v2639 = vunpack.c.l.b16 %v2507
    %v2640 = vunpack.c.l.b16 %v2508
    %v2641 = vunpack.c.l.b16 %v2509
    %v2642 = vunpack.c.l.b16 %v2510
    %v2643 = vunpack.c.l.b16 %v2511
    %v2644 = vunpack.c.l.b16 %v2512
    %v2645 = vunpack.c.l.b16 %v2513
    %v2646 = vunpack.c.l.b16 %v2514
    %v2647 = vunpack.c.l.b16 %v2515
    %v2648 = vunpack.c.l.b16 %v2516
    %v2649 = vunpack.c.l.b16 %v2517
    %v2650 = vunpack.c.l.b16 %v2518
    %v2651 = vunpack.c.l.b16 %v2519
    %v2652 = vunpack.c.l.b16 %v2520
    %v2653 = vunpack.c.l.b16 %v2521
    %v2654 = vunpack.c.l.b16 %v2522
    %v2655 = vunpack.c.l.b16 %v2523
    %v2656 = vunpack.c.l.b16 %v2524
    %v2657 = vunpack.c.l.b16 %v2525
    %v2658 = vunpack.c.l.b16 %v2526
    %v2659 = vunpack.c.l.b16 %v2527
    %v2660 = vunpack.c.l.b16 %v2528
    %v2661 = vunpack.c.l.b16 %v2529
    %v2662 = vunpack.c.l.b16 %v2530
    %v2663 = vunpack.c.l.b16 %v2531
    %v2664 = vunpack.c.l.b16 %v2532
    %v2665 = vunpack.c.l.b16 %v2533
    %v2666 = vunpack.c.l.b16 %v2534
    %v2667 = vunpack.c.l.b16 %v2535
    %v2668 = vunpack.c.l.b16 %v2536
    %v2669 = vunpack.c.l.b16 %v2537
    %v2670 = vunpack.c.l.b16 %v2538
    %v2671 = vunpack.c.l.b16 %v2539
    %v2672 = vunpack.c.l.b16 %v2540
    %v2673 = vunpack.c.l.b16 %v2541
    %v2674 = vunpack.c.l.b16 %v2542
    %v2675 = vunpack.c.l.b16 %v2543
    %v2676 = vunpack.c.l.b16 %v2544
    %v2677 = vunpack.c.l.b16 %v2545
    %v2678 = vunpack.c.l.b16 %v2546
    %v2679 = vunpack.c.l.b16 %v2547
    %v2680 = vunpack.c.l.b16 %v2548
    %v2681 = vunpack.c.l.b16 %v2549
    %v2682 = vunpack.c.l.b16 %v2550
    %v2683 = vunpack.c.l.b16 %v2551
    %v2684 = vunpack.c.l.b16 %v2552
    %v2685 = vunpack.c.l.b16 %v2553
    %v2686 = vunpack.c.l.b16 %v2554
    %v2687 = vunpack.c.l.b16 %v2555
    %v2688 = vunpack.c.l.b16 %v2556
    %v2689 = vunpack.c.l.b16 %v2557
    %v2690 = vunpack.c.l.b16 %v2558
    %v2691 = vunpack.c.l.b16 %v2559
    %v2692 = vunpack.c.l.b16 %v2560
    %v2693 = vunpack.c.l.b16 %v2561
    %v2694 = vunpack.c.l.b16 %v2562
    %v2695 = vunpack.c.l.b16 %v2563
    %v2696 = vunpack.c.l.b16 %v2564
    %v2697 = vunpack.c.l.b16 %v2565
    %v2698 = vunpack.c.l.b16 %v2566
    %v2699 = vunpack.c.l.b16 %v2567
    %v2700 = vpack.c.b16 %v2637, %v2636
    %v2701 = vpack.c.b16 %v2639, %v2638
    %v2702 = vpack.c.b16 %v2641, %v2640
    %v2703 = vpack.c.b16 %v2643, %v2642
    %v2704 = vpack.c.b16 %v2645, %v2644
    %v2705 = vpack.c.b16 %v2647, %v2646
    %v2706 = vpack.c.b16 %v2649, %v2648
    %v2707 = vpack.c.b16 %v2651, %v2650
    %v2708 = vpack.c.b16 %v2653, %v2652
    %v2709 = vpack.c.b16 %v2655, %v2654
    %v2710 = vpack.c.b16 %v2657, %v2656
    %v2711 = vpack.c.b16 %v2659, %v2658
    %v2712 = vpack.c.b16 %v2661, %v2660
    %v2713 = vpack.c.b16 %v2663, %v2662
    %v2714 = vpack.c.b16 %v2665, %v2664
    %v2715 = vpack.c.b16 %v2667, %v2666
    %v2716 = vpack.c.b16 %v2669, %v2668
    %v2717 = vpack.c.b16 %v2671, %v2670
    %v2718 = vpack.c.b16 %v2673, %v2672
    %v2719 = vpack.c.b16 %v2675, %v2674
    %v2720 = vpack.c.b16 %v2677, %v2676
    %v2721 = vpack.c.b16 %v2679, %v2678
    %v2722 = vpack.c.b16 %v2681, %v2680
    %v2723 = vpack.c.b16 %v2683, %v2682
    %v2724 = vpack.c.b16 %v2685, %v2684
    %v2725 = vpack.c.b16 %v2687, %v2686
    %v2726 = vpack.c.b16 %v2689, %v2688
    %v2727 = vpack.c.b16 %v2691, %v2690
    %v2728 = vpack.c.b16 %v2693, %v2692
    %v2729 = vpack.c.b16 %v2695, %v2694
    %v2730 = vpack.c.b16 %v2697, %v2696
    %v2731 = vpack.c.b16 %v2699, %v2698
    %2764 = vmatpush.bf16.msra.mxu0 %v2707
    %2765 = vmatpush.bf16.msra.mxu0 %v2706
    %2766 = vmatpush.bf16.msra.mxu0 %v2705
    %2767 = vmatpush.bf16.msra.mxu0 %v2704
    %2768 = vmatpush.bf16.msra.mxu0 %v2703
    %2769 = vmatpush.bf16.msra.mxu0 %v2702
    %2770 = vmatpush.bf16.msra.mxu0 %v2701
    %2771 = vmatpush.bf16.msra.mxu0 %v2700
    %2772 = vmatmul.bf16.gmra.mxu0 %v2492
    %v2773 = vpop.f32.mrf.mxu0
    %v2774 = vadd.f32 %v2570, %v2773
    %v2775 = vpop.f32.mrf.mxu0
    %v2776 = vadd.f32 %v2570, %v2775
    %2777 = vmatmul.bf16.gmra.mxu0 %v2496
    %v2778 = vpop.f32.mrf.mxu0
    %v2779 = vadd.f32 %v2570, %v2778
    %v2780 = vpop.f32.mrf.mxu0
    %v2781 = vadd.f32 %v2570, %v2780
    %2782 = vmatmul.bf16.gmra.mxu0 %v2500
    %v2783 = vpop.f32.mrf.mxu0
    %v2784 = vadd.f32 %v2570, %v2783
    %v2785 = vpop.f32.mrf.mxu0
    %v2786 = vadd.f32 %v2570, %v2785
    %2787 = vdwg.mxu0
    %2788 = vmatpush.bf16.msra.mxu0 %v2715
    %2789 = vmatpush.bf16.msra.mxu0 %v2714
    %2790 = vmatpush.bf16.msra.mxu0 %v2713
    %2791 = vmatpush.bf16.msra.mxu0 %v2712
    %2792 = vmatpush.bf16.msra.mxu0 %v2711
    %2793 = vmatpush.bf16.msra.mxu0 %v2710
    %2794 = vmatpush.bf16.msra.mxu0 %v2709
    %2795 = vmatpush.bf16.msra.mxu0 %v2708
    %2796 = vmatmul.bf16.gmra.mxu0 %v2493
    %v2797 = vpop.f32.mrf.mxu0
    %v2798 = vadd.f32 %v2774, %v2797
    %v2799 = vpop.f32.mrf.mxu0
    %v2800 = vadd.f32 %v2776, %v2799
    %2801 = vmatmul.bf16.gmra.mxu0 %v2497
    %v2802 = vpop.f32.mrf.mxu0
    %v2803 = vadd.f32 %v2779, %v2802
    %v2804 = vpop.f32.mrf.mxu0
    %v2805 = vadd.f32 %v2781, %v2804
    %2806 = vmatmul.bf16.gmra.mxu0 %v2501
    %v2807 = vpop.f32.mrf.mxu0
    %v2808 = vadd.f32 %v2784, %v2807
    %v2809 = vpop.f32.mrf.mxu0
    %v2810 = vadd.f32 %v2786, %v2809
    %2811 = vdwg.mxu0
    %2812 = vmatpush.bf16.msra.mxu0 %v2723
    %2813 = vmatpush.bf16.msra.mxu0 %v2722
    %2814 = vmatpush.bf16.msra.mxu0 %v2721
    %2815 = vmatpush.bf16.msra.mxu0 %v2720
    %2816 = vmatpush.bf16.msra.mxu0 %v2719
    %2817 = vmatpush.bf16.msra.mxu0 %v2718
    %2818 = vmatpush.bf16.msra.mxu0 %v2717
    %2819 = vmatpush.bf16.msra.mxu0 %v2716
    %2820 = vmatmul.bf16.gmra.mxu0 %v2494
    %v2821 = vpop.f32.mrf.mxu0
    %v2822 = vadd.f32 %v2798, %v2821
    %v2823 = vpop.f32.mrf.mxu0
    %v2824 = vadd.f32 %v2800, %v2823
    %2825 = vmatmul.bf16.gmra.mxu0 %v2498
    %v2826 = vpop.f32.mrf.mxu0
    %v2827 = vadd.f32 %v2803, %v2826
    %v2828 = vpop.f32.mrf.mxu0
    %v2829 = vadd.f32 %v2805, %v2828
    %2830 = vmatmul.bf16.gmra.mxu0 %v2502
    %v2831 = vpop.f32.mrf.mxu0
    %v2832 = vadd.f32 %v2808, %v2831
    %v2833 = vpop.f32.mrf.mxu0
    %v2834 = vadd.f32 %v2810, %v2833
    %2835 = vdwg.mxu0
    %2836 = vmatpush.bf16.msra.mxu0 %v2731
    %2837 = vmatpush.bf16.msra.mxu0 %v2730
    %2838 = vmatpush.bf16.msra.mxu0 %v2729
    %2839 = vmatpush.bf16.msra.mxu0 %v2728
    %2840 = vmatpush.bf16.msra.mxu0 %v2727
    %2841 = vmatpush.bf16.msra.mxu0 %v2726
    %2842 = vmatpush.bf16.msra.mxu0 %v2725
    %2843 = vmatpush.bf16.msra.mxu0 %v2724
    %2844 = vmatmul.bf16.gmra.mxu0 %v2495
    %v2845 = vpop.f32.mrf.mxu0
    %v2846 = vadd.f32 %v2822, %v2845
    %v2847 = vpop.f32.mrf.mxu0
    %v2848 = vadd.f32 %v2824, %v2847
    %2849 = vmatmul.bf16.gmra.mxu0 %v2499
    %v2850 = vpop.f32.mrf.mxu0
    %v2851 = vadd.f32 %v2827, %v2850
    %v2852 = vpop.f32.mrf.mxu0
    %v2853 = vadd.f32 %v2829, %v2852
    %2854 = vmatmul.bf16.gmra.mxu0 %v2503
    %v2855 = vpop.f32.mrf.mxu0
    %v2856 = vadd.f32 %v2832, %v2855
    %v2857 = vpop.f32.mrf.mxu0
    %v2858 = vadd.f32 %v2834, %v2857
    %2859 = vdwg.mxu0
    %v2860 = vadd.f32 %v1829, %v2846
    %v2861 = vadd.f32 %v1830, %v2848
    %v2862 = vadd.f32 %v1831, %v2851
    %v2863 = vadd.f32 %v1832, %v2853
    %v2864 = vadd.f32 %v1833, %v2856
    %v2865 = vadd.f32 %v1834, %v2858
    %s2866 = scalar_lea.vmem %s6, 1
    %v2867 = vld [vmem:[%s2866] sm:$0x1]
    %s2868 = scalar_lea.vmem %s7, 1
    %v2869 = vld [vmem:[%s2868] sm:$0x1]
    %2870 = vadd.xlane.f32.xlu0 %v2860
    %v2871 = vpop.xlane.xlu0 %2870
    %2872 = vadd.xlane.f32.xlu0 %v2861
    %v2873 = vpop.xlane.xlu0 %2872
    %2874 = vadd.xlane.f32.xlu0 %v2862
    %v2875 = vpop.xlane.xlu0 %2874
    %2876 = vadd.xlane.f32.xlu0 %v2863
    %v2877 = vpop.xlane.xlu0 %2876
    %2878 = vadd.xlane.f32.xlu0 %v2864
    %v2879 = vpop.xlane.xlu0 %2878
    %2880 = vadd.xlane.f32.xlu0 %v2865
    %v2881 = vpop.xlane.xlu0 %2880
    %v2882 = vmul.f32 %v2871, %v377
    %v2883 = vmul.f32 %v2873, %v377
    %v2884 = vmul.f32 %v2875, %v377
    %v2885 = vmul.f32 %v2877, %v377
    %v2886 = vmul.f32 %v2879, %v377
    %v2887 = vmul.f32 %v2881, %v377
    %v2888 = vsub.f32 %v2860, %v2882
    %v2889 = vsub.f32 %v2861, %v2883
    %v2890 = vsub.f32 %v2862, %v2884
    %v2891 = vsub.f32 %v2863, %v2885
    %v2892 = vsub.f32 %v2864, %v2886
    %v2893 = vsub.f32 %v2865, %v2887
    %v2894 = vmul.f32 %v2888, %v2888
    %v2895 = vmul.f32 %v2889, %v2889
    %v2896 = vmul.f32 %v2890, %v2890
    %v2897 = vmul.f32 %v2891, %v2891
    %v2898 = vmul.f32 %v2892, %v2892
    %v2899 = vmul.f32 %v2893, %v2893
    %2900 = vadd.xlane.f32.xlu0 %v2894
    %v2901 = vpop.xlane.xlu0 %2900
    %2902 = vadd.xlane.f32.xlu0 %v2895
    %v2903 = vpop.xlane.xlu0 %2902
    %2904 = vadd.xlane.f32.xlu0 %v2896
    %v2905 = vpop.xlane.xlu0 %2904
    %2906 = vadd.xlane.f32.xlu0 %v2897
    %v2907 = vpop.xlane.xlu0 %2906
    %2908 = vadd.xlane.f32.xlu0 %v2898
    %v2909 = vpop.xlane.xlu0 %2908
    %2910 = vadd.xlane.f32.xlu0 %v2899
    %v2911 = vpop.xlane.xlu0 %2910
    %v2912 = vmul.f32 %v2901, %v377
    %v2913 = vmul.f32 %v2903, %v377
    %v2914 = vmul.f32 %v2905, %v377
    %v2915 = vmul.f32 %v2907, %v377
    %v2916 = vmul.f32 %v2909, %v377
    %v2917 = vmul.f32 %v2911, %v377
    %v2918 = vadd.f32 %v2912, 1e-06
    %v2919 = vadd.f32 %v2913, 1e-06
    %v2920 = vadd.f32 %v2914, 1e-06
    %v2921 = vadd.f32 %v2915, 1e-06
    %v2922 = vadd.f32 %v2916, 1e-06
    %v2923 = vadd.f32 %v2917, 1e-06
    %v2924 = vrsqrt.pop %v2918
    %v2925 = vmul.f32 %v2924, %v2918
    %v2926 = vmul.f32 %v2925, %v2924
    %v2927 = vmul.f32 0.5, %v2926
    %v2928 = vsub.f32 1.5, %v2927
    %v2929 = vmul.f32 %v2924, %v2928
    %vm2930 = vweird.f32 %v2918
    %vm2931 = vweird.f32 %v2924
    %vm2932 = vmor %vm2930, %vm2931
    %v2933 = vsel %vm2932, %v2924, %v2929
    %v2934 = vrsqrt.pop %v2919
    %v2935 = vmul.f32 %v2934, %v2919
    %v2936 = vmul.f32 %v2935, %v2934
    %v2937 = vmul.f32 0.5, %v2936
    %v2938 = vsub.f32 1.5, %v2937
    %v2939 = vmul.f32 %v2934, %v2938
    %vm2940 = vweird.f32 %v2919
    %vm2941 = vweird.f32 %v2934
    %vm2942 = vmor %vm2940, %vm2941
    %v2943 = vsel %vm2942, %v2934, %v2939
    %v2944 = vrsqrt.pop %v2920
    %v2945 = vmul.f32 %v2944, %v2920
    %v2946 = vmul.f32 %v2945, %v2944
    %v2947 = vmul.f32 0.5, %v2946
    %v2948 = vsub.f32 1.5, %v2947
    %v2949 = vmul.f32 %v2944, %v2948
    %vm2950 = vweird.f32 %v2920
    %vm2951 = vweird.f32 %v2944
    %vm2952 = vmor %vm2950, %vm2951
    %v2953 = vsel %vm2952, %v2944, %v2949
    %v2954 = vrsqrt.pop %v2921
    %v2955 = vmul.f32 %v2954, %v2921
    %v2956 = vmul.f32 %v2955, %v2954
    %v2957 = vmul.f32 0.5, %v2956
    %v2958 = vsub.f32 1.5, %v2957
    %v2959 = vmul.f32 %v2954, %v2958
    %vm2960 = vweird.f32 %v2921
    %vm2961 = vweird.f32 %v2954
    %vm2962 = vmor %vm2960, %vm2961
    %v2963 = vsel %vm2962, %v2954, %v2959
    %v2964 = vrsqrt.pop %v2922
    %v2965 = vmul.f32 %v2964, %v2922
    %v2966 = vmul.f32 %v2965, %v2964
    %v2967 = vmul.f32 0.5, %v2966
    %v2968 = vsub.f32 1.5, %v2967
    %v2969 = vmul.f32 %v2964, %v2968
    %vm2970 = vweird.f32 %v2922
    %vm2971 = vweird.f32 %v2964
    %vm2972 = vmor %vm2970, %vm2971
    %v2973 = vsel %vm2972, %v2964, %v2969
    %v2974 = vrsqrt.pop %v2923
    %v2975 = vmul.f32 %v2974, %v2923
    %v2976 = vmul.f32 %v2975, %v2974
    %v2977 = vmul.f32 0.5, %v2976
    %v2978 = vsub.f32 1.5, %v2977
    %v2979 = vmul.f32 %v2974, %v2978
    %vm2980 = vweird.f32 %v2923
    %vm2981 = vweird.f32 %v2974
    %vm2982 = vmor %vm2980, %vm2981
    %v2983 = vsel %vm2982, %v2974, %v2979
    %v2984 = vmul.f32 %v2888, %v2933
    %v2985 = vmul.f32 %v2889, %v2943
    %v2986 = vmul.f32 %v2890, %v2953
    %v2987 = vmul.f32 %v2891, %v2963
    %v2988 = vmul.f32 %v2892, %v2973
    %v2989 = vmul.f32 %v2893, %v2983
    %v2991 = vperm.slane %v2867, 0
    %v2993 = vmul.f32 %v2984, %v2991
    %v2994 = vmul.f32 %v2985, %v2991
    %v2995 = vmul.f32 %v2986, %v2991
    %v2996 = vmul.f32 %v2987, %v2991
    %v2997 = vmul.f32 %v2988, %v2991
    %v2998 = vmul.f32 %v2989, %v2991
    %v3000 = vperm.slane %v2869, 0
    %v3002 = vadd.f32 %v2993, %v3000
    %v3003 = vadd.f32 %v2994, %v3000
    %v3004 = vadd.f32 %v2995, %v3000
    %v3005 = vadd.f32 %v2996, %v3000
    %v3006 = vadd.f32 %v2997, %v3000
    %v3007 = vadd.f32 %v2998, %v3000
    %v3008 = vpack.c.bf16 %v3003, %v3002
    %v3009 = vpack.c.bf16 %v3005, %v3004
    %v3010 = vpack.c.bf16 %v3007, %v3006
    %s3011 = scalar_lea.vmem [#allocation11], 192
    %v3012 = vld [vmem:[%s3011] sm:$0xff]
    %v3013 = vld [vmem:[%s3011 + $0x8] sm:$0xf]
    %v3014 = vld [vmem:[%s3011 + $0xc] sm:$0xff]
    %v3015 = vld [vmem:[%s3011 + $0x14] sm:$0xf]
    %v3016 = vld [vmem:[%s3011 + $0x18] sm:$0xff]
    %v3017 = vld [vmem:[%s3011 + $0x20] sm:$0xf]
    %v3018 = vld [vmem:[%s3011 + $0x24] sm:$0xff]
    %v3019 = vld [vmem:[%s3011 + $0x2c] sm:$0xf]
    %v3020 = vld [vmem:[%s3011 + $0x30] sm:$0xff]
    %v3021 = vld [vmem:[%s3011 + $0x38] sm:$0xf]
    %v3022 = vld [vmem:[%s3011 + $0x3c] sm:$0xff]
    %v3023 = vld [vmem:[%s3011 + $0x44] sm:$0xf]
    %v3024 = vld [vmem:[%s3011 + $0x48] sm:$0xff]
    %v3025 = vld [vmem:[%s3011 + $0x50] sm:$0xf]
    %v3026 = vld [vmem:[%s3011 + $0x54] sm:$0xff]
    %v3027 = vld [vmem:[%s3011 + $0x5c] sm:$0xf]
    %v3028 = vld [vmem:[%s3011 + $0x60] sm:$0xff]
    %v3029 = vld [vmem:[%s3011 + $0x68] sm:$0xf]
    %v3030 = vld [vmem:[%s3011 + $0x6c] sm:$0xff]
    %v3031 = vld [vmem:[%s3011 + $0x74] sm:$0xf]
    %v3032 = vld [vmem:[%s3011 + $0x78] sm:$0xff]
    %v3033 = vld [vmem:[%s3011 + $0x80] sm:$0xf]
    %v3034 = vld [vmem:[%s3011 + $0x84] sm:$0xff]
    %v3035 = vld [vmem:[%s3011 + $0x8c] sm:$0xf]
    %v3036 = vld [vmem:[%s3011 + $0x90] sm:$0xff]
    %v3037 = vld [vmem:[%s3011 + $0x98] sm:$0xf]
    %v3038 = vld [vmem:[%s3011 + $0x9c] sm:$0xff]
    %v3039 = vld [vmem:[%s3011 + $0xa4] sm:$0xf]
    %v3040 = vld [vmem:[%s3011 + $0xa8] sm:$0xff]
    %v3041 = vld [vmem:[%s3011 + $0xb0] sm:$0xf]
    %v3042 = vld [vmem:[%s3011 + $0xb4] sm:$0xff]
    %v3043 = vld [vmem:[%s3011 + $0xbc] sm:$0xf]
    %s3044 = scalar_lea.vmem [#allocation12], 3
    %v3045 = vld [vmem:[%s3044] sm:$0x7]
    %v3047 = vperm.slane %v3045, 0
    %v3048 = vperm.slane %v3045, 1
    %v3049 = vperm.slane %v3045, 2
    %v3085 = vunpack.c.l.b16 %v3012
    %v3086 = vunpack.c.h.b16 %v3012
    %v3087 = vunpack.c.l.b16 %v3013
    %v3088 = vunpack.c.l.b16 %v3014
    %v3089 = vunpack.c.h.b16 %v3014
    %v3090 = vunpack.c.l.b16 %v3015
    %v3091 = vunpack.c.l.b16 %v3016
    %v3092 = vunpack.c.h.b16 %v3016
    %v3093 = vunpack.c.l.b16 %v3017
    %v3094 = vunpack.c.l.b16 %v3018
    %v3095 = vunpack.c.h.b16 %v3018
    %v3096 = vunpack.c.l.b16 %v3019
    %v3097 = vunpack.c.l.b16 %v3020
    %v3098 = vunpack.c.h.b16 %v3020
    %v3099 = vunpack.c.l.b16 %v3021
    %v3100 = vunpack.c.l.b16 %v3022
    %v3101 = vunpack.c.h.b16 %v3022
    %v3102 = vunpack.c.l.b16 %v3023
    %v3103 = vunpack.c.l.b16 %v3024
    %v3104 = vunpack.c.h.b16 %v3024
    %v3105 = vunpack.c.l.b16 %v3025
    %v3106 = vunpack.c.l.b16 %v3026
    %v3107 = vunpack.c.h.b16 %v3026
    %v3108 = vunpack.c.l.b16 %v3027
    %v3109 = vunpack.c.l.b16 %v3028
    %v3110 = vunpack.c.h.b16 %v3028
    %v3111 = vunpack.c.l.b16 %v3029
    %v3112 = vunpack.c.l.b16 %v3030
    %v3113 = vunpack.c.h.b16 %v3030
    %v3114 = vunpack.c.l.b16 %v3031
    %v3115 = vunpack.c.l.b16 %v3032
    %v3116 = vunpack.c.h.b16 %v3032
    %v3117 = vunpack.c.l.b16 %v3033
    %v3118 = vunpack.c.l.b16 %v3034
    %v3119 = vunpack.c.h.b16 %v3034
    %v3120 = vunpack.c.l.b16 %v3035
    %v3121 = vunpack.c.l.b16 %v3036
    %v3122 = vunpack.c.h.b16 %v3036
    %v3123 = vunpack.c.l.b16 %v3037
    %v3124 = vunpack.c.l.b16 %v3038
    %v3125 = vunpack.c.h.b16 %v3038
    %v3126 = vunpack.c.l.b16 %v3039
    %v3127 = vunpack.c.l.b16 %v3040
    %v3128 = vunpack.c.h.b16 %v3040
    %v3129 = vunpack.c.l.b16 %v3041
    %v3130 = vunpack.c.l.b16 %v3042
    %v3131 = vunpack.c.h.b16 %v3042
    %v3132 = vunpack.c.l.b16 %v3043
    %v3133 = vpack.c.b16 %v3088, %v3085
    %v3134 = vpack.c.b16 %v3089, %v3086
    %v3135 = vpack.c.b16 %v3090, %v3087
    %v3136 = vpack.c.b16 %v3094, %v3091
    %v3137 = vpack.c.b16 %v3095, %v3092
    %v3138 = vpack.c.b16 %v3096, %v3093
    %v3139 = vpack.c.b16 %v3100, %v3097
    %v3140 = vpack.c.b16 %v3101, %v3098
    %v3141 = vpack.c.b16 %v3102, %v3099
    %v3142 = vpack.c.b16 %v3106, %v3103
    %v3143 = vpack.c.b16 %v3107, %v3104
    %v3144 = vpack.c.b16 %v3108, %v3105
    %v3145 = vpack.c.b16 %v3112, %v3109
    %v3146 = vpack.c.b16 %v3113, %v3110
    %v3147 = vpack.c.b16 %v3114, %v3111
    %v3148 = vpack.c.b16 %v3118, %v3115
    %v3149 = vpack.c.b16 %v3119, %v3116
    %v3150 = vpack.c.b16 %v3120, %v3117
    %v3151 = vpack.c.b16 %v3124, %v3121
    %v3152 = vpack.c.b16 %v3125, %v3122
    %v3153 = vpack.c.b16 %v3126, %v3123
    %v3154 = vpack.c.b16 %v3130, %v3127
    %v3155 = vpack.c.b16 %v3131, %v3128
    %v3156 = vpack.c.b16 %v3132, %v3129
    %3181 = vmatpush.bf16.msra.mxu0 %v3154
    %3182 = vmatpush.bf16.msra.mxu0 %v3151
    %3183 = vmatpush.bf16.msra.mxu0 %v3148
    %3184 = vmatpush.bf16.msra.mxu0 %v3145
    %3185 = vmatpush.bf16.msra.mxu0 %v3142
    %3186 = vmatpush.bf16.msra.mxu0 %v3139
    %3187 = vmatpush.bf16.msra.mxu0 %v3136
    %3188 = vmatpush.bf16.msra.mxu0 %v3133
    %3189 = vmatmul.bf16.gmra.mxu0 %v3008
    %v3190 = vpop.f32.mrf.mxu0
    %v3191 = vadd.f32 %v3047, %v3190
    %v3192 = vpop.f32.mrf.mxu0
    %v3193 = vadd.f32 %v3047, %v3192
    %3194 = vmatmul.bf16.gmra.mxu0 %v3009
    %v3195 = vpop.f32.mrf.mxu0
    %v3196 = vadd.f32 %v3047, %v3195
    %v3197 = vpop.f32.mrf.mxu0
    %v3198 = vadd.f32 %v3047, %v3197
    %3199 = vmatmul.bf16.gmra.mxu0 %v3010
    %v3200 = vpop.f32.mrf.mxu0
    %v3201 = vadd.f32 %v3047, %v3200
    %v3202 = vpop.f32.mrf.mxu0
    %v3203 = vadd.f32 %v3047, %v3202
    %3204 = vdwg.mxu0
    %3205 = vmatpush.bf16.msra.mxu0 %v3155
    %3206 = vmatpush.bf16.msra.mxu0 %v3152
    %3207 = vmatpush.bf16.msra.mxu0 %v3149
    %3208 = vmatpush.bf16.msra.mxu0 %v3146
    %3209 = vmatpush.bf16.msra.mxu0 %v3143
    %3210 = vmatpush.bf16.msra.mxu0 %v3140
    %3211 = vmatpush.bf16.msra.mxu0 %v3137
    %3212 = vmatpush.bf16.msra.mxu0 %v3134
    %3213 = vmatmul.bf16.gmra.mxu0 %v3008
    %v3214 = vpop.f32.mrf.mxu0
    %v3215 = vadd.f32 %v3048, %v3214
    %v3216 = vpop.f32.mrf.mxu0
    %v3217 = vadd.f32 %v3048, %v3216
    %3218 = vmatmul.bf16.gmra.mxu0 %v3009
    %v3219 = vpop.f32.mrf.mxu0
    %v3220 = vadd.f32 %v3048, %v3219
    %v3221 = vpop.f32.mrf.mxu0
    %v3222 = vadd.f32 %v3048, %v3221
    %3223 = vmatmul.bf16.gmra.mxu0 %v3010
    %v3224 = vpop.f32.mrf.mxu0
    %v3225 = vadd.f32 %v3048, %v3224
    %v3226 = vpop.f32.mrf.mxu0
    %v3227 = vadd.f32 %v3048, %v3226
    %3228 = vdwg.mxu0
    %3229 = vmatpush.bf16.msra.mxu0 %v3156
    %3230 = vmatpush.bf16.msra.mxu0 %v3153
    %3231 = vmatpush.bf16.msra.mxu0 %v3150
    %3232 = vmatpush.bf16.msra.mxu0 %v3147
    %3233 = vmatpush.bf16.msra.mxu0 %v3144
    %3234 = vmatpush.bf16.msra.mxu0 %v3141
    %3235 = vmatpush.bf16.msra.mxu0 %v3138
    %3236 = vmatpush.bf16.msra.mxu0 %v3135
    %3237 = vmatmul.bf16.gmra.mxu0 %v3008
    %v3238 = vpop.f32.mrf.mxu0
    %v3239 = vadd.f32 %v3049, %v3238
    %v3240 = vpop.f32.mrf.mxu0
    %v3241 = vadd.f32 %v3049, %v3240
    %3242 = vmatmul.bf16.gmra.mxu0 %v3009
    %v3243 = vpop.f32.mrf.mxu0
    %v3244 = vadd.f32 %v3049, %v3243
    %v3245 = vpop.f32.mrf.mxu0
    %v3246 = vadd.f32 %v3049, %v3245
    %3247 = vmatmul.bf16.gmra.mxu0 %v3010
    %v3248 = vpop.f32.mrf.mxu0
    %v3249 = vadd.f32 %v3049, %v3248
    %v3250 = vpop.f32.mrf.mxu0
    %v3251 = vadd.f32 %v3049, %v3250
    %3252 = vdwg.mxu0
    %v3253 = vpack.c.bf16 %v3215, %v3191
    %v3254 = vpack.c.bf16 %v3239, %v3239
    %v3255 = vpack.c.bf16 %v3217, %v3193
    %v3256 = vpack.c.bf16 %v3241, %v3241
    %v3257 = vpack.c.bf16 %v3220, %v3196
    %v3258 = vpack.c.bf16 %v3244, %v3244
    %v3259 = vpack.c.bf16 %v3222, %v3198
    %v3260 = vpack.c.bf16 %v3246, %v3246
    %v3261 = vpack.c.bf16 %v3225, %v3201
    %v3262 = vpack.c.bf16 %v3249, %v3249
    %v3263 = vpack.c.bf16 %v3227, %v3203
    %v3264 = vpack.c.bf16 %v3251, %v3251
    %3271 = vrot.lane.b32.xlu0 %v3253, 96
    %v3272 = vpop.permute.xlu0 %3271
    %3273 = vrot.lane.b32.xlu0 %v3255, 96
    %v3274 = vpop.permute.xlu0 %3273
    %3275 = vrot.lane.b32.xlu0 %v3257, 96
    %v3276 = vpop.permute.xlu0 %3275
    %3277 = vrot.lane.b32.xlu0 %v3259, 96
    %v3278 = vpop.permute.xlu0 %3277
    %3279 = vrot.lane.b32.xlu0 %v3261, 96
    %v3280 = vpop.permute.xlu0 %3279
    %3281 = vrot.lane.b32.xlu0 %v3263, 96
    %v3282 = vpop.permute.xlu0 %3281
    %3283 = vrot.lane.b32.xlu0 %v3253, 64
    %v3284 = vpop.permute.xlu0 %3283
    %3285 = vrot.lane.b32.xlu0 %v3255, 64
    %v3286 = vpop.permute.xlu0 %3285
    %3287 = vrot.lane.b32.xlu0 %v3257, 64
    %v3288 = vpop.permute.xlu0 %3287
    %3289 = vrot.lane.b32.xlu0 %v3259, 64
    %v3290 = vpop.permute.xlu0 %3289
    %3291 = vrot.lane.b32.xlu0 %v3261, 64
    %v3292 = vpop.permute.xlu0 %3291
    %3293 = vrot.lane.b32.xlu0 %v3263, 64
    %v3294 = vpop.permute.xlu0 %3293
    %3295 = vrot.lane.b32.xlu0 %v3253, 32
    %v3296 = vpop.permute.xlu0 %3295
    %3297 = vrot.lane.b32.xlu0 %v3255, 32
    %v3298 = vpop.permute.xlu0 %3297
    %3299 = vrot.lane.b32.xlu0 %v3257, 32
    %v3300 = vpop.permute.xlu0 %3299
    %3301 = vrot.lane.b32.xlu0 %v3259, 32
    %v3302 = vpop.permute.xlu0 %3301
    %3303 = vrot.lane.b32.xlu0 %v3261, 32
    %v3304 = vpop.permute.xlu0 %3303
    %3305 = vrot.lane.b32.xlu0 %v3263, 32
    %v3306 = vpop.permute.xlu0 %3305
    %v3307 = vrot.slane %v3253, 4
    %v3308 = vrot.slane %v3255, 4
    %v3309 = vrot.slane %v3257, 4
    %v3310 = vrot.slane %v3259, 4
    %v3311 = vrot.slane %v3261, 4
    %v3312 = vrot.slane %v3263, 4
    %v3313 = vrot.slane %v3272, 4
    %v3314 = vrot.slane %v3274, 4
    %v3315 = vrot.slane %v3276, 4
    %v3316 = vrot.slane %v3278, 4
    %v3317 = vrot.slane %v3280, 4
    %v3318 = vrot.slane %v3282, 4
    %v3319 = vrot.slane %v3284, 4
    %v3320 = vrot.slane %v3286, 4
    %v3321 = vrot.slane %v3288, 4
    %v3322 = vrot.slane %v3290, 4
    %v3323 = vrot.slane %v3292, 4
    %v3324 = vrot.slane %v3294, 4
    %v3325 = vrot.slane %v3296, 4
    %v3326 = vrot.slane %v3298, 4
    %v3327 = vrot.slane %v3300, 4
    %v3328 = vrot.slane %v3302, 4
    %v3329 = vrot.slane %v3304, 4
    %v3330 = vrot.slane %v3306, 4
    %3337 = vrot.lane.b32.xlu0 %v3254, 96
    %v3338 = vpop.permute.xlu0 %3337
    %3339 = vrot.lane.b32.xlu0 %v3256, 96
    %v3340 = vpop.permute.xlu0 %3339
    %3341 = vrot.lane.b32.xlu0 %v3258, 96
    %v3342 = vpop.permute.xlu0 %3341
    %3343 = vrot.lane.b32.xlu0 %v3260, 96
    %v3344 = vpop.permute.xlu0 %3343
    %3345 = vrot.lane.b32.xlu0 %v3262, 96
    %v3346 = vpop.permute.xlu0 %3345
    %3347 = vrot.lane.b32.xlu0 %v3264, 96
    %v3348 = vpop.permute.xlu0 %3347
    %3349 = vrot.lane.b32.xlu0 %v3254, 64
    %v3350 = vpop.permute.xlu0 %3349
    %3351 = vrot.lane.b32.xlu0 %v3256, 64
    %v3352 = vpop.permute.xlu0 %3351
    %3353 = vrot.lane.b32.xlu0 %v3258, 64
    %v3354 = vpop.permute.xlu0 %3353
    %3355 = vrot.lane.b32.xlu0 %v3260, 64
    %v3356 = vpop.permute.xlu0 %3355
    %3357 = vrot.lane.b32.xlu0 %v3262, 64
    %v3358 = vpop.permute.xlu0 %3357
    %3359 = vrot.lane.b32.xlu0 %v3264, 64
    %v3360 = vpop.permute.xlu0 %3359
    %3361 = vrot.lane.b32.xlu0 %v3254, 32
    %v3362 = vpop.permute.xlu0 %3361
    %3363 = vrot.lane.b32.xlu0 %v3256, 32
    %v3364 = vpop.permute.xlu0 %3363
    %3365 = vrot.lane.b32.xlu0 %v3258, 32
    %v3366 = vpop.permute.xlu0 %3365
    %3367 = vrot.lane.b32.xlu0 %v3260, 32
    %v3368 = vpop.permute.xlu0 %3367
    %3369 = vrot.lane.b32.xlu0 %v3262, 32
    %v3370 = vpop.permute.xlu0 %3369
    %3371 = vrot.lane.b32.xlu0 %v3264, 32
    %v3372 = vpop.permute.xlu0 %3371
    %v3373 = vunpack.c.l.b16 %v3253
    %v3374 = vunpack.c.l.b16 %v3255
    %v3375 = vunpack.c.l.b16 %v3257
    %v3376 = vunpack.c.l.b16 %v3259
    %v3377 = vunpack.c.l.b16 %v3261
    %v3378 = vunpack.c.l.b16 %v3263
    %v3379 = vpack.c.b16 %v3374, %v3373
    %v3380 = vpack.c.b16 %v3376, %v3375
    %v3381 = vpack.c.b16 %v3378, %v3377
    %v3382 = vunpack.c.l.b16 %v3307
    %v3383 = vunpack.c.l.b16 %v3308
    %v3384 = vunpack.c.l.b16 %v3309
    %v3385 = vunpack.c.l.b16 %v3310
    %v3386 = vunpack.c.l.b16 %v3311
    %v3387 = vunpack.c.l.b16 %v3312
    %v3388 = vpack.c.b16 %v3383, %v3382
    %v3389 = vpack.c.b16 %v3385, %v3384
    %v3390 = vpack.c.b16 %v3387, %v3386
    %v3392 = vsel %vm885, %v3379, 0
    %v3395 = vsel %vm885, %v3380, 0
    %v3398 = vsel %vm885, %v3381, 0
    %v3401 = vsel %vm885, %v3388, 0
    %v3404 = vsel %vm885, %v3389, 0
    %v3407 = vsel %vm885, %v3390, 0
    %3409 = vmatpush.bf16.xpose.msra.mxu0 0
    %3410 = vmatpush.bf16.xpose.msra.mxu0 0
    %3411 = vmatpush.bf16.xpose.msra.mxu0 0
    %3412 = vmatpush.bf16.xpose.msra.mxu0 0
    %3413 = vmatpush.bf16.xpose.msra.mxu0 0
    %3414 = vmatpush.bf16.xpose.msra.mxu0 %v3407
    %3415 = vmatpush.bf16.xpose.msra.mxu0 %v3404
    %3416 = vmatpush.bf16.xpose.msra.mxu0 %v3401
    %3417 = vmatmul.bf16.gmra.mxu0 %v3392
    %v3418 = vpop.f32.mrf.mxu0
    %v3419 = vadd.f32 %v351, %v3418
    %v3420 = vpop.f32.mrf.mxu0
    %v3421 = vadd.f32 %v352, %v3420
    %3422 = vmatmul.bf16.gmra.mxu0 %v3395
    %v3423 = vpop.f32.mrf.mxu0
    %v3424 = vadd.f32 %v353, %v3423
    %v3425 = vpop.f32.mrf.mxu0
    %v3426 = vadd.f32 %v354, %v3425
    %3427 = vmatmul.bf16.gmra.mxu0 %v3398
    %v3428 = vpop.f32.mrf.mxu0
    %v3429 = vadd.f32 %v355, %v3428
    %v3430 = vpop.f32.mrf.mxu0
    %v3431 = vadd.f32 %v356, %v3430
    %3432 = vdwg.mxu0
    %v3433 = vunpack.c.l.b16 %v3272
    %v3434 = vunpack.c.l.b16 %v3274
    %v3435 = vunpack.c.l.b16 %v3276
    %v3436 = vunpack.c.l.b16 %v3278
    %v3437 = vunpack.c.l.b16 %v3280
    %v3438 = vunpack.c.l.b16 %v3282
    %v3439 = vpack.c.b16 %v3434, %v3433
    %v3440 = vpack.c.b16 %v3436, %v3435
    %v3441 = vpack.c.b16 %v3438, %v3437
    %v3442 = vunpack.c.l.b16 %v3313
    %v3443 = vunpack.c.l.b16 %v3314
    %v3444 = vunpack.c.l.b16 %v3315
    %v3445 = vunpack.c.l.b16 %v3316
    %v3446 = vunpack.c.l.b16 %v3317
    %v3447 = vunpack.c.l.b16 %v3318
    %v3448 = vpack.c.b16 %v3443, %v3442
    %v3449 = vpack.c.b16 %v3445, %v3444
    %v3450 = vpack.c.b16 %v3447, %v3446
    %v3452 = vsel %vm885, %v3439, 0
    %v3455 = vsel %vm885, %v3440, 0
    %v3458 = vsel %vm885, %v3441, 0
    %v3461 = vsel %vm885, %v3448, 0
    %v3464 = vsel %vm885, %v3449, 0
    %v3467 = vsel %vm885, %v3450, 0
    %3469 = vmatpush.bf16.xpose.msra.mxu0 0
    %3470 = vmatpush.bf16.xpose.msra.mxu0 0
    %3471 = vmatpush.bf16.xpose.msra.mxu0 0
    %3472 = vmatpush.bf16.xpose.msra.mxu0 0
    %3473 = vmatpush.bf16.xpose.msra.mxu0 0
    %3474 = vmatpush.bf16.xpose.msra.mxu0 %v3467
    %3475 = vmatpush.bf16.xpose.msra.mxu0 %v3464
    %3476 = vmatpush.bf16.xpose.msra.mxu0 %v3461
    %3477 = vmatmul.bf16.gmra.mxu0 %v3452
    %v3478 = vpop.f32.mrf.mxu0
    %v3479 = vadd.f32 %v351, %v3478
    %v3480 = vpop.f32.mrf.mxu0
    %v3481 = vadd.f32 %v352, %v3480
    %3482 = vmatmul.bf16.gmra.mxu0 %v3455
    %v3483 = vpop.f32.mrf.mxu0
    %v3484 = vadd.f32 %v353, %v3483
    %v3485 = vpop.f32.mrf.mxu0
    %v3486 = vadd.f32 %v354, %v3485
    %3487 = vmatmul.bf16.gmra.mxu0 %v3458
    %v3488 = vpop.f32.mrf.mxu0
    %v3489 = vadd.f32 %v355, %v3488
    %v3490 = vpop.f32.mrf.mxu0
    %v3491 = vadd.f32 %v356, %v3490
    %3492 = vdwg.mxu0
    %v3493 = vunpack.c.l.b16 %v3284
    %v3494 = vunpack.c.l.b16 %v3286
    %v3495 = vunpack.c.l.b16 %v3288
    %v3496 = vunpack.c.l.b16 %v3290
    %v3497 = vunpack.c.l.b16 %v3292
    %v3498 = vunpack.c.l.b16 %v3294
    %v3499 = vpack.c.b16 %v3494, %v3493
    %v3500 = vpack.c.b16 %v3496, %v3495
    %v3501 = vpack.c.b16 %v3498, %v3497
    %v3502 = vunpack.c.l.b16 %v3319
    %v3503 = vunpack.c.l.b16 %v3320
    %v3504 = vunpack.c.l.b16 %v3321
    %v3505 = vunpack.c.l.b16 %v3322
    %v3506 = vunpack.c.l.b16 %v3323
    %v3507 = vunpack.c.l.b16 %v3324
    %v3508 = vpack.c.b16 %v3503, %v3502
    %v3509 = vpack.c.b16 %v3505, %v3504
    %v3510 = vpack.c.b16 %v3507, %v3506
    %v3512 = vsel %vm885, %v3499, 0
    %v3515 = vsel %vm885, %v3500, 0
    %v3518 = vsel %vm885, %v3501, 0
    %v3521 = vsel %vm885, %v3508, 0
    %v3524 = vsel %vm885, %v3509, 0
    %v3527 = vsel %vm885, %v3510, 0
    %3529 = vmatpush.bf16.xpose.msra.mxu0 0
    %3530 = vmatpush.bf16.xpose.msra.mxu0 0
    %3531 = vmatpush.bf16.xpose.msra.mxu0 0
    %3532 = vmatpush.bf16.xpose.msra.mxu0 0
    %3533 = vmatpush.bf16.xpose.msra.mxu0 0
    %3534 = vmatpush.bf16.xpose.msra.mxu0 %v3527
    %3535 = vmatpush.bf16.xpose.msra.mxu0 %v3524
    %3536 = vmatpush.bf16.xpose.msra.mxu0 %v3521
    %3537 = vmatmul.bf16.gmra.mxu0 %v3512
    %v3538 = vpop.f32.mrf.mxu0
    %v3539 = vadd.f32 %v351, %v3538
    %v3540 = vpop.f32.mrf.mxu0
    %v3541 = vadd.f32 %v352, %v3540
    %3542 = vmatmul.bf16.gmra.mxu0 %v3515
    %v3543 = vpop.f32.mrf.mxu0
    %v3544 = vadd.f32 %v353, %v3543
    %v3545 = vpop.f32.mrf.mxu0
    %v3546 = vadd.f32 %v354, %v3545
    %3547 = vmatmul.bf16.gmra.mxu0 %v3518
    %v3548 = vpop.f32.mrf.mxu0
    %v3549 = vadd.f32 %v355, %v3548
    %v3550 = vpop.f32.mrf.mxu0
    %v3551 = vadd.f32 %v356, %v3550
    %3552 = vdwg.mxu0
    %v3553 = vunpack.c.l.b16 %v3296
    %v3554 = vunpack.c.l.b16 %v3298
    %v3555 = vunpack.c.l.b16 %v3300
    %v3556 = vunpack.c.l.b16 %v3302
    %v3557 = vunpack.c.l.b16 %v3304
    %v3558 = vunpack.c.l.b16 %v3306
    %v3559 = vpack.c.b16 %v3554, %v3553
    %v3560 = vpack.c.b16 %v3556, %v3555
    %v3561 = vpack.c.b16 %v3558, %v3557
    %v3562 = vunpack.c.l.b16 %v3325
    %v3563 = vunpack.c.l.b16 %v3326
    %v3564 = vunpack.c.l.b16 %v3327
    %v3565 = vunpack.c.l.b16 %v3328
    %v3566 = vunpack.c.l.b16 %v3329
    %v3567 = vunpack.c.l.b16 %v3330
    %v3568 = vpack.c.b16 %v3563, %v3562
    %v3569 = vpack.c.b16 %v3565, %v3564
    %v3570 = vpack.c.b16 %v3567, %v3566
    %v3572 = vsel %vm885, %v3559, 0
    %v3575 = vsel %vm885, %v3560, 0
    %v3578 = vsel %vm885, %v3561, 0
    %v3581 = vsel %vm885, %v3568, 0
    %v3584 = vsel %vm885, %v3569, 0
    %v3587 = vsel %vm885, %v3570, 0
    %3589 = vmatpush.bf16.xpose.msra.mxu0 0
    %3590 = vmatpush.bf16.xpose.msra.mxu0 0
    %3591 = vmatpush.bf16.xpose.msra.mxu0 0
    %3592 = vmatpush.bf16.xpose.msra.mxu0 0
    %3593 = vmatpush.bf16.xpose.msra.mxu0 0
    %3594 = vmatpush.bf16.xpose.msra.mxu0 %v3587
    %3595 = vmatpush.bf16.xpose.msra.mxu0 %v3584
    %3596 = vmatpush.bf16.xpose.msra.mxu0 %v3581
    %3597 = vmatmul.bf16.gmra.mxu0 %v3572
    %v3598 = vpop.f32.mrf.mxu0
    %v3599 = vadd.f32 %v351, %v3598
    %v3600 = vpop.f32.mrf.mxu0
    %v3601 = vadd.f32 %v352, %v3600
    %3602 = vmatmul.bf16.gmra.mxu0 %v3575
    %v3603 = vpop.f32.mrf.mxu0
    %v3604 = vadd.f32 %v353, %v3603
    %v3605 = vpop.f32.mrf.mxu0
    %v3606 = vadd.f32 %v354, %v3605
    %3607 = vmatmul.bf16.gmra.mxu0 %v3578
    %v3608 = vpop.f32.mrf.mxu0
    %v3609 = vadd.f32 %v355, %v3608
    %v3610 = vpop.f32.mrf.mxu0
    %v3611 = vadd.f32 %v356, %v3610
    %3612 = vdwg.mxu0
    %v3613 = vsel %vm298, %v3419, -inf
    %3614 = vmax.xlane.f32.xlu0 %v3613
    %v3615 = vpop.xlane.xlu0 %3614
    %v3616 = vsel %vm298, %v3421, -inf
    %3617 = vmax.xlane.f32.xlu0 %v3616
    %v3618 = vpop.xlane.xlu0 %3617
    %v3619 = vsel %vm298, %v3424, -inf
    %3620 = vmax.xlane.f32.xlu0 %v3619
    %v3621 = vpop.xlane.xlu0 %3620
    %v3622 = vsel %vm298, %v3426, -inf
    %3623 = vmax.xlane.f32.xlu0 %v3622
    %v3624 = vpop.xlane.xlu0 %3623
    %v3625 = vsel %vm298, %v3429, -inf
    %3626 = vmax.xlane.f32.xlu0 %v3625
    %v3627 = vpop.xlane.xlu0 %3626
    %v3628 = vsel %vm298, %v3431, -inf
    %3629 = vmax.xlane.f32.xlu0 %v3628
    %v3630 = vpop.xlane.xlu0 %3629
    %v3631 = vsel %vm298, %v3479, -inf
    %3632 = vmax.xlane.f32.xlu0 %v3631
    %v3633 = vpop.xlane.xlu0 %3632
    %v3634 = vsel %vm298, %v3481, -inf
    %3635 = vmax.xlane.f32.xlu0 %v3634
    %v3636 = vpop.xlane.xlu0 %3635
    %v3637 = vsel %vm298, %v3484, -inf
    %3638 = vmax.xlane.f32.xlu0 %v3637
    %v3639 = vpop.xlane.xlu0 %3638
    %v3640 = vsel %vm298, %v3486, -inf
    %3641 = vmax.xlane.f32.xlu0 %v3640
    %v3642 = vpop.xlane.xlu0 %3641
    %v3643 = vsel %vm298, %v3489, -inf
    %3644 = vmax.xlane.f32.xlu0 %v3643
    %v3645 = vpop.xlane.xlu0 %3644
    %v3646 = vsel %vm298, %v3491, -inf
    %3647 = vmax.xlane.f32.xlu0 %v3646
    %v3648 = vpop.xlane.xlu0 %3647
    %v3649 = vsel %vm298, %v3539, -inf
    %3650 = vmax.xlane.f32.xlu0 %v3649
    %v3651 = vpop.xlane.xlu0 %3650
    %v3652 = vsel %vm298, %v3541, -inf
    %3653 = vmax.xlane.f32.xlu0 %v3652
    %v3654 = vpop.xlane.xlu0 %3653
    %v3655 = vsel %vm298, %v3544, -inf
    %3656 = vmax.xlane.f32.xlu0 %v3655
    %v3657 = vpop.xlane.xlu0 %3656
    %v3658 = vsel %vm298, %v3546, -inf
    %3659 = vmax.xlane.f32.xlu0 %v3658
    %v3660 = vpop.xlane.xlu0 %3659
    %v3661 = vsel %vm298, %v3549, -inf
    %3662 = vmax.xlane.f32.xlu0 %v3661
    %v3663 = vpop.xlane.xlu0 %3662
    %v3664 = vsel %vm298, %v3551, -inf
    %3665 = vmax.xlane.f32.xlu0 %v3664
    %v3666 = vpop.xlane.xlu0 %3665
    %v3667 = vsel %vm298, %v3599, -inf
    %3668 = vmax.xlane.f32.xlu0 %v3667
    %v3669 = vpop.xlane.xlu0 %3668
    %v3670 = vsel %vm298, %v3601, -inf
    %3671 = vmax.xlane.f32.xlu0 %v3670
    %v3672 = vpop.xlane.xlu0 %3671
    %v3673 = vsel %vm298, %v3604, -inf
    %3674 = vmax.xlane.f32.xlu0 %v3673
    %v3675 = vpop.xlane.xlu0 %3674
    %v3676 = vsel %vm298, %v3606, -inf
    %3677 = vmax.xlane.f32.xlu0 %v3676
    %v3678 = vpop.xlane.xlu0 %3677
    %v3679 = vsel %vm298, %v3609, -inf
    %3680 = vmax.xlane.f32.xlu0 %v3679
    %v3681 = vpop.xlane.xlu0 %3680
    %v3682 = vsel %vm298, %v3611, -inf
    %3683 = vmax.xlane.f32.xlu0 %v3682
    %v3684 = vpop.xlane.xlu0 %3683
    %v3685 = vsub.f32 %v3419, %v3615
    %v3686 = vsub.f32 %v3421, %v3618
    %v3687 = vsub.f32 %v3424, %v3621
    %v3688 = vsub.f32 %v3426, %v3624
    %v3689 = vsub.f32 %v3429, %v3627
    %v3690 = vsub.f32 %v3431, %v3630
    %v3691 = vsub.f32 %v3479, %v3633
    %v3692 = vsub.f32 %v3481, %v3636
    %v3693 = vsub.f32 %v3484, %v3639
    %v3694 = vsub.f32 %v3486, %v3642
    %v3695 = vsub.f32 %v3489, %v3645
    %v3696 = vsub.f32 %v3491, %v3648
    %v3697 = vsub.f32 %v3539, %v3651
    %v3698 = vsub.f32 %v3541, %v3654
    %v3699 = vsub.f32 %v3544, %v3657
    %v3700 = vsub.f32 %v3546, %v3660
    %v3701 = vsub.f32 %v3549, %v3663
    %v3702 = vsub.f32 %v3551, %v3666
    %v3703 = vsub.f32 %v3599, %v3669
    %v3704 = vsub.f32 %v3601, %v3672
    %v3705 = vsub.f32 %v3604, %v3675
    %v3706 = vsub.f32 %v3606, %v3678
    %v3707 = vsub.f32 %v3609, %v3681
    %v3708 = vsub.f32 %v3611, %v3684
    %v3709 = vmul.f32 %v3685, 1.442695
    %v3710 = vpow.pop %v3709
    %v3711 = vmul.f32 %v3686, 1.442695
    %v3712 = vpow.pop %v3711
    %v3713 = vmul.f32 %v3687, 1.442695
    %v3714 = vpow.pop %v3713
    %v3715 = vmul.f32 %v3688, 1.442695
    %v3716 = vpow.pop %v3715
    %v3717 = vmul.f32 %v3689, 1.442695
    %v3718 = vpow.pop %v3717
    %v3719 = vmul.f32 %v3690, 1.442695
    %v3720 = vpow.pop %v3719
    %v3721 = vmul.f32 %v3691, 1.442695
    %v3722 = vpow.pop %v3721
    %v3723 = vmul.f32 %v3692, 1.442695
    %v3724 = vpow.pop %v3723
    %v3725 = vmul.f32 %v3693, 1.442695
    %v3726 = vpow.pop %v3725
    %v3727 = vmul.f32 %v3694, 1.442695
    %v3728 = vpow.pop %v3727
    %v3729 = vmul.f32 %v3695, 1.442695
    %v3730 = vpow.pop %v3729
    %v3731 = vmul.f32 %v3696, 1.442695
    %v3732 = vpow.pop %v3731
    %v3733 = vmul.f32 %v3697, 1.442695
    %v3734 = vpow.pop %v3733
    %v3735 = vmul.f32 %v3698, 1.442695
    %v3736 = vpow.pop %v3735
    %v3737 = vmul.f32 %v3699, 1.442695
    %v3738 = vpow.pop %v3737
    %v3739 = vmul.f32 %v3700, 1.442695
    %v3740 = vpow.pop %v3739
    %v3741 = vmul.f32 %v3701, 1.442695
    %v3742 = vpow.pop %v3741
    %v3743 = vmul.f32 %v3702, 1.442695
    %v3744 = vpow.pop %v3743
    %v3745 = vmul.f32 %v3703, 1.442695
    %v3746 = vpow.pop %v3745
    %v3747 = vmul.f32 %v3704, 1.442695
    %v3748 = vpow.pop %v3747
    %v3749 = vmul.f32 %v3705, 1.442695
    %v3750 = vpow.pop %v3749
    %v3751 = vmul.f32 %v3706, 1.442695
    %v3752 = vpow.pop %v3751
    %v3753 = vmul.f32 %v3707, 1.442695
    %v3754 = vpow.pop %v3753
    %v3755 = vmul.f32 %v3708, 1.442695
    %v3756 = vpow.pop %v3755
    %v3757 = vsel %vm298, %v3710, 0.0
    %3758 = vadd.xlane.f32.xlu0 %v3757
    %v3759 = vpop.xlane.xlu0 %3758
    %v3760 = vsel %vm298, %v3712, 0.0
    %3761 = vadd.xlane.f32.xlu0 %v3760
    %v3762 = vpop.xlane.xlu0 %3761
    %v3763 = vsel %vm298, %v3714, 0.0
    %3764 = vadd.xlane.f32.xlu0 %v3763
    %v3765 = vpop.xlane.xlu0 %3764
    %v3766 = vsel %vm298, %v3716, 0.0
    %3767 = vadd.xlane.f32.xlu0 %v3766
    %v3768 = vpop.xlane.xlu0 %3767
    %v3769 = vsel %vm298, %v3718, 0.0
    %3770 = vadd.xlane.f32.xlu0 %v3769
    %v3771 = vpop.xlane.xlu0 %3770
    %v3772 = vsel %vm298, %v3720, 0.0
    %3773 = vadd.xlane.f32.xlu0 %v3772
    %v3774 = vpop.xlane.xlu0 %3773
    %v3775 = vsel %vm298, %v3722, 0.0
    %3776 = vadd.xlane.f32.xlu0 %v3775
    %v3777 = vpop.xlane.xlu0 %3776
    %v3778 = vsel %vm298, %v3724, 0.0
    %3779 = vadd.xlane.f32.xlu0 %v3778
    %v3780 = vpop.xlane.xlu0 %3779
    %v3781 = vsel %vm298, %v3726, 0.0
    %3782 = vadd.xlane.f32.xlu0 %v3781
    %v3783 = vpop.xlane.xlu0 %3782
    %v3784 = vsel %vm298, %v3728, 0.0
    %3785 = vadd.xlane.f32.xlu0 %v3784
    %v3786 = vpop.xlane.xlu0 %3785
    %v3787 = vsel %vm298, %v3730, 0.0
    %3788 = vadd.xlane.f32.xlu0 %v3787
    %v3789 = vpop.xlane.xlu0 %3788
    %v3790 = vsel %vm298, %v3732, 0.0
    %3791 = vadd.xlane.f32.xlu0 %v3790
    %v3792 = vpop.xlane.xlu0 %3791
    %v3793 = vsel %vm298, %v3734, 0.0
    %3794 = vadd.xlane.f32.xlu0 %v3793
    %v3795 = vpop.xlane.xlu0 %3794
    %v3796 = vsel %vm298, %v3736, 0.0
    %3797 = vadd.xlane.f32.xlu0 %v3796
    %v3798 = vpop.xlane.xlu0 %3797
    %v3799 = vsel %vm298, %v3738, 0.0
    %3800 = vadd.xlane.f32.xlu0 %v3799
    %v3801 = vpop.xlane.xlu0 %3800
    %v3802 = vsel %vm298, %v3740, 0.0
    %3803 = vadd.xlane.f32.xlu0 %v3802
    %v3804 = vpop.xlane.xlu0 %3803
    %v3805 = vsel %vm298, %v3742, 0.0
    %3806 = vadd.xlane.f32.xlu0 %v3805
    %v3807 = vpop.xlane.xlu0 %3806
    %v3808 = vsel %vm298, %v3744, 0.0
    %3809 = vadd.xlane.f32.xlu0 %v3808
    %v3810 = vpop.xlane.xlu0 %3809
    %v3811 = vsel %vm298, %v3746, 0.0
    %3812 = vadd.xlane.f32.xlu0 %v3811
    %v3813 = vpop.xlane.xlu0 %3812
    %v3814 = vsel %vm298, %v3748, 0.0
    %3815 = vadd.xlane.f32.xlu0 %v3814
    %v3816 = vpop.xlane.xlu0 %3815
    %v3817 = vsel %vm298, %v3750, 0.0
    %3818 = vadd.xlane.f32.xlu0 %v3817
    %v3819 = vpop.xlane.xlu0 %3818
    %v3820 = vsel %vm298, %v3752, 0.0
    %3821 = vadd.xlane.f32.xlu0 %v3820
    %v3822 = vpop.xlane.xlu0 %3821
    %v3823 = vsel %vm298, %v3754, 0.0
    %3824 = vadd.xlane.f32.xlu0 %v3823
    %v3825 = vpop.xlane.xlu0 %3824
    %v3826 = vsel %vm298, %v3756, 0.0
    %3827 = vadd.xlane.f32.xlu0 %v3826
    %v3828 = vpop.xlane.xlu0 %3827
    %v3829 = vrcp.pop %v3759
    %v3830 = vrcp.pop %v3762
    %v3831 = vrcp.pop %v3765
    %v3832 = vrcp.pop %v3768
    %v3833 = vrcp.pop %v3771
    %v3834 = vrcp.pop %v3774
    %v3835 = vrcp.pop %v3777
    %v3836 = vrcp.pop %v3780
    %v3837 = vrcp.pop %v3783
    %v3838 = vrcp.pop %v3786
    %v3839 = vrcp.pop %v3789
    %v3840 = vrcp.pop %v3792
    %v3841 = vrcp.pop %v3795
    %v3842 = vrcp.pop %v3798
    %v3843 = vrcp.pop %v3801
    %v3844 = vrcp.pop %v3804
    %v3845 = vrcp.pop %v3807
    %v3846 = vrcp.pop %v3810
    %v3847 = vrcp.pop %v3813
    %v3848 = vrcp.pop %v3816
    %v3849 = vrcp.pop %v3819
    %v3850 = vrcp.pop %v3822
    %v3851 = vrcp.pop %v3825
    %v3852 = vrcp.pop %v3828
    %v3853 = vmul.f32 %v3710, %v3829
    %v3854 = vmul.f32 %v3712, %v3830
    %v3855 = vmul.f32 %v3714, %v3831
    %v3856 = vmul.f32 %v3716, %v3832
    %v3857 = vmul.f32 %v3718, %v3833
    %v3858 = vmul.f32 %v3720, %v3834
    %v3859 = vmul.f32 %v3722, %v3835
    %v3860 = vmul.f32 %v3724, %v3836
    %v3861 = vmul.f32 %v3726, %v3837
    %v3862 = vmul.f32 %v3728, %v3838
    %v3863 = vmul.f32 %v3730, %v3839
    %v3864 = vmul.f32 %v3732, %v3840
    %v3865 = vmul.f32 %v3734, %v3841
    %v3866 = vmul.f32 %v3736, %v3842
    %v3867 = vmul.f32 %v3738, %v3843
    %v3868 = vmul.f32 %v3740, %v3844
    %v3869 = vmul.f32 %v3742, %v3845
    %v3870 = vmul.f32 %v3744, %v3846
    %v3871 = vmul.f32 %v3746, %v3847
    %v3872 = vmul.f32 %v3748, %v3848
    %v3873 = vmul.f32 %v3750, %v3849
    %v3874 = vmul.f32 %v3752, %v3850
    %v3875 = vmul.f32 %v3754, %v3851
    %v3876 = vmul.f32 %v3756, %v3852
    %v3877 = vpack.c.bf16 %v3853, %v3853
    %v3878 = vpack.c.bf16 %v3854, %v3854
    %v3879 = vpack.c.bf16 %v3855, %v3855
    %v3880 = vpack.c.bf16 %v3856, %v3856
    %v3881 = vpack.c.bf16 %v3857, %v3857
    %v3882 = vpack.c.bf16 %v3858, %v3858
    %v3883 = vpack.c.bf16 %v3859, %v3859
    %v3884 = vpack.c.bf16 %v3860, %v3860
    %v3885 = vpack.c.bf16 %v3861, %v3861
    %v3886 = vpack.c.bf16 %v3862, %v3862
    %v3887 = vpack.c.bf16 %v3863, %v3863
    %v3888 = vpack.c.bf16 %v3864, %v3864
    %v3889 = vpack.c.bf16 %v3865, %v3865
    %v3890 = vpack.c.bf16 %v3866, %v3866
    %v3891 = vpack.c.bf16 %v3867, %v3867
    %v3892 = vpack.c.bf16 %v3868, %v3868
    %v3893 = vpack.c.bf16 %v3869, %v3869
    %v3894 = vpack.c.bf16 %v3870, %v3870
    %v3895 = vpack.c.bf16 %v3871, %v3871
    %v3896 = vpack.c.bf16 %v3872, %v3872
    %v3897 = vpack.c.bf16 %v3873, %v3873
    %v3898 = vpack.c.bf16 %v3874, %v3874
    %v3899 = vpack.c.bf16 %v3875, %v3875
    %v3900 = vpack.c.bf16 %v3876, %v3876
    %v3907 = vunpack.c.l.b16 %v3877
    %v3908 = vunpack.c.l.b16 %v3878
    %v3909 = vunpack.c.l.b16 %v3879
    %v3910 = vunpack.c.l.b16 %v3880
    %v3911 = vunpack.c.l.b16 %v3881
    %v3912 = vunpack.c.l.b16 %v3882
    %v3913 = vpack.c.b16 %v3908, %v3907
    %v3914 = vpack.c.b16 %v3910, %v3909
    %v3915 = vpack.c.b16 %v3912, %v3911
    %v3916 = vunpack.c.l.b16 %v3254
    %v3917 = vunpack.c.l.b16 %v3256
    %v3918 = vunpack.c.l.b16 %v3258
    %v3919 = vunpack.c.l.b16 %v3260
    %v3920 = vunpack.c.l.b16 %v3262
    %v3921 = vunpack.c.l.b16 %v3264
    %v3922 = vpack.c.b16 %v3917, %v3916
    %v3923 = vpack.c.b16 %v3919, %v3918
    %v3924 = vpack.c.b16 %v3921, %v3920
    %v3929 = vsel %vm298, %v3913, 0
    %v3932 = vsel %vm298, %v3914, 0
    %v3935 = vsel %vm298, %v3915, 0
    %3937 = vmatpush.bf16.msra.mxu0 0
    %3938 = vmatpush.bf16.msra.mxu0 0
    %3939 = vmatpush.bf16.msra.mxu0 0
    %3940 = vmatpush.bf16.msra.mxu0 0
    %3941 = vmatpush.bf16.msra.mxu0 0
    %3942 = vmatpush.bf16.msra.mxu0 %v3924
    %3943 = vmatpush.bf16.msra.mxu0 %v3923
    %3944 = vmatpush.bf16.msra.mxu0 %v3922
    %3945 = vmatmul.bf16.gmra.mxu0 %v3929
    %v3946 = vpop.f32.mrf.mxu0
    %v3947 = vadd.f32 0.0, %v3946
    %v3948 = vpop.f32.mrf.mxu0
    %v3949 = vadd.f32 0.0, %v3948
    %3950 = vmatmul.bf16.gmra.mxu0 %v3932
    %v3951 = vpop.f32.mrf.mxu0
    %v3952 = vadd.f32 0.0, %v3951
    %v3953 = vpop.f32.mrf.mxu0
    %v3954 = vadd.f32 0.0, %v3953
    %3955 = vmatmul.bf16.gmra.mxu0 %v3935
    %v3956 = vpop.f32.mrf.mxu0
    %v3957 = vadd.f32 0.0, %v3956
    %v3958 = vpop.f32.mrf.mxu0
    %v3959 = vadd.f32 0.0, %v3958
    %3960 = vdwg.mxu0
    %v3967 = vunpack.c.l.b16 %v3883
    %v3968 = vunpack.c.l.b16 %v3884
    %v3969 = vunpack.c.l.b16 %v3885
    %v3970 = vunpack.c.l.b16 %v3886
    %v3971 = vunpack.c.l.b16 %v3887
    %v3972 = vunpack.c.l.b16 %v3888
    %v3973 = vpack.c.b16 %v3968, %v3967
    %v3974 = vpack.c.b16 %v3970, %v3969
    %v3975 = vpack.c.b16 %v3972, %v3971
    %v3976 = vunpack.c.l.b16 %v3338
    %v3977 = vunpack.c.l.b16 %v3340
    %v3978 = vunpack.c.l.b16 %v3342
    %v3979 = vunpack.c.l.b16 %v3344
    %v3980 = vunpack.c.l.b16 %v3346
    %v3981 = vunpack.c.l.b16 %v3348
    %v3982 = vpack.c.b16 %v3977, %v3976
    %v3983 = vpack.c.b16 %v3979, %v3978
    %v3984 = vpack.c.b16 %v3981, %v3980
    %v3989 = vsel %vm298, %v3973, 0
    %v3992 = vsel %vm298, %v3974, 0
    %v3995 = vsel %vm298, %v3975, 0
    %3997 = vmatpush.bf16.msra.mxu0 0
    %3998 = vmatpush.bf16.msra.mxu0 0
    %3999 = vmatpush.bf16.msra.mxu0 0
    %4000 = vmatpush.bf16.msra.mxu0 0
    %4001 = vmatpush.bf16.msra.mxu0 0
    %4002 = vmatpush.bf16.msra.mxu0 %v3984
    %4003 = vmatpush.bf16.msra.mxu0 %v3983
    %4004 = vmatpush.bf16.msra.mxu0 %v3982
    %4005 = vmatmul.bf16.gmra.mxu0 %v3989
    %v4006 = vpop.f32.mrf.mxu0
    %v4007 = vadd.f32 0.0, %v4006
    %v4008 = vpop.f32.mrf.mxu0
    %v4009 = vadd.f32 0.0, %v4008
    %4010 = vmatmul.bf16.gmra.mxu0 %v3992
    %v4011 = vpop.f32.mrf.mxu0
    %v4012 = vadd.f32 0.0, %v4011
    %v4013 = vpop.f32.mrf.mxu0
    %v4014 = vadd.f32 0.0, %v4013
    %4015 = vmatmul.bf16.gmra.mxu0 %v3995
    %v4016 = vpop.f32.mrf.mxu0
    %v4017 = vadd.f32 0.0, %v4016
    %v4018 = vpop.f32.mrf.mxu0
    %v4019 = vadd.f32 0.0, %v4018
    %4020 = vdwg.mxu0
    %v4027 = vunpack.c.l.b16 %v3889
    %v4028 = vunpack.c.l.b16 %v3890
    %v4029 = vunpack.c.l.b16 %v3891
    %v4030 = vunpack.c.l.b16 %v3892
    %v4031 = vunpack.c.l.b16 %v3893
    %v4032 = vunpack.c.l.b16 %v3894
    %v4033 = vpack.c.b16 %v4028, %v4027
    %v4034 = vpack.c.b16 %v4030, %v4029
    %v4035 = vpack.c.b16 %v4032, %v4031
    %v4036 = vunpack.c.l.b16 %v3350
    %v4037 = vunpack.c.l.b16 %v3352
    %v4038 = vunpack.c.l.b16 %v3354
    %v4039 = vunpack.c.l.b16 %v3356
    %v4040 = vunpack.c.l.b16 %v3358
    %v4041 = vunpack.c.l.b16 %v3360
    %v4042 = vpack.c.b16 %v4037, %v4036
    %v4043 = vpack.c.b16 %v4039, %v4038
    %v4044 = vpack.c.b16 %v4041, %v4040
    %v4049 = vsel %vm298, %v4033, 0
    %v4052 = vsel %vm298, %v4034, 0
    %v4055 = vsel %vm298, %v4035, 0
    %4057 = vmatpush.bf16.msra.mxu0 0
    %4058 = vmatpush.bf16.msra.mxu0 0
    %4059 = vmatpush.bf16.msra.mxu0 0
    %4060 = vmatpush.bf16.msra.mxu0 0
    %4061 = vmatpush.bf16.msra.mxu0 0
    %4062 = vmatpush.bf16.msra.mxu0 %v4044
    %4063 = vmatpush.bf16.msra.mxu0 %v4043
    %4064 = vmatpush.bf16.msra.mxu0 %v4042
    %4065 = vmatmul.bf16.gmra.mxu0 %v4049
    %v4066 = vpop.f32.mrf.mxu0
    %v4067 = vadd.f32 0.0, %v4066
    %v4068 = vpop.f32.mrf.mxu0
    %v4069 = vadd.f32 0.0, %v4068
    %4070 = vmatmul.bf16.gmra.mxu0 %v4052
    %v4071 = vpop.f32.mrf.mxu0
    %v4072 = vadd.f32 0.0, %v4071
    %v4073 = vpop.f32.mrf.mxu0
    %v4074 = vadd.f32 0.0, %v4073
    %4075 = vmatmul.bf16.gmra.mxu0 %v4055
    %v4076 = vpop.f32.mrf.mxu0
    %v4077 = vadd.f32 0.0, %v4076
    %v4078 = vpop.f32.mrf.mxu0
    %v4079 = vadd.f32 0.0, %v4078
    %4080 = vdwg.mxu0
    %v4087 = vunpack.c.l.b16 %v3895
    %v4088 = vunpack.c.l.b16 %v3896
    %v4089 = vunpack.c.l.b16 %v3897
    %v4090 = vunpack.c.l.b16 %v3898
    %v4091 = vunpack.c.l.b16 %v3899
    %v4092 = vunpack.c.l.b16 %v3900
    %v4093 = vpack.c.b16 %v4088, %v4087
    %v4094 = vpack.c.b16 %v4090, %v4089
    %v4095 = vpack.c.b16 %v4092, %v4091
    %v4096 = vunpack.c.l.b16 %v3362
    %v4097 = vunpack.c.l.b16 %v3364
    %v4098 = vunpack.c.l.b16 %v3366
    %v4099 = vunpack.c.l.b16 %v3368
    %v4100 = vunpack.c.l.b16 %v3370
    %v4101 = vunpack.c.l.b16 %v3372
    %v4102 = vpack.c.b16 %v4097, %v4096
    %v4103 = vpack.c.b16 %v4099, %v4098
    %v4104 = vpack.c.b16 %v4101, %v4100
    %v4109 = vsel %vm298, %v4093, 0
    %v4112 = vsel %vm298, %v4094, 0
    %v4115 = vsel %vm298, %v4095, 0
    %4117 = vmatpush.bf16.msra.mxu0 0
    %4118 = vmatpush.bf16.msra.mxu0 0
    %4119 = vmatpush.bf16.msra.mxu0 0
    %4120 = vmatpush.bf16.msra.mxu0 0
    %4121 = vmatpush.bf16.msra.mxu0 0
    %4122 = vmatpush.bf16.msra.mxu0 %v4104
    %4123 = vmatpush.bf16.msra.mxu0 %v4103
    %4124 = vmatpush.bf16.msra.mxu0 %v4102
    %4125 = vmatmul.bf16.gmra.mxu0 %v4109
    %v4126 = vpop.f32.mrf.mxu0
    %v4127 = vadd.f32 0.0, %v4126
    %v4128 = vpop.f32.mrf.mxu0
    %v4129 = vadd.f32 0.0, %v4128
    %4130 = vmatmul.bf16.gmra.mxu0 %v4112
    %v4131 = vpop.f32.mrf.mxu0
    %v4132 = vadd.f32 0.0, %v4131
    %v4133 = vpop.f32.mrf.mxu0
    %v4134 = vadd.f32 0.0, %v4133
    %4135 = vmatmul.bf16.gmra.mxu0 %v4115
    %v4136 = vpop.f32.mrf.mxu0
    %v4137 = vadd.f32 0.0, %v4136
    %v4138 = vpop.f32.mrf.mxu0
    %v4139 = vadd.f32 0.0, %v4138
    %4140 = vdwg.mxu0
    %4147 = vrot.lane.b32.xlu0 %v4007, 32
    %v4148 = vpop.permute.xlu0 %4147
    %4149 = vrot.lane.b32.xlu0 %v4009, 32
    %v4150 = vpop.permute.xlu0 %4149
    %4151 = vrot.lane.b32.xlu0 %v4012, 32
    %v4152 = vpop.permute.xlu0 %4151
    %4153 = vrot.lane.b32.xlu0 %v4014, 32
    %v4154 = vpop.permute.xlu0 %4153
    %4155 = vrot.lane.b32.xlu0 %v4017, 32
    %v4156 = vpop.permute.xlu0 %4155
    %4157 = vrot.lane.b32.xlu0 %v4019, 32
    %v4158 = vpop.permute.xlu0 %4157
    %4171 = vrot.lane.b32.xlu0 %v4067, 64
    %v4172 = vpop.permute.xlu0 %4171
    %4173 = vrot.lane.b32.xlu0 %v4069, 64
    %v4174 = vpop.permute.xlu0 %4173
    %4175 = vrot.lane.b32.xlu0 %v4072, 64
    %v4176 = vpop.permute.xlu0 %4175
    %4177 = vrot.lane.b32.xlu0 %v4074, 64
    %v4178 = vpop.permute.xlu0 %4177
    %4179 = vrot.lane.b32.xlu0 %v4077, 64
    %v4180 = vpop.permute.xlu0 %4179
    %4181 = vrot.lane.b32.xlu0 %v4079, 64
    %v4182 = vpop.permute.xlu0 %4181
    %4195 = vrot.lane.b32.xlu0 %v4127, 96
    %v4196 = vpop.permute.xlu0 %4195
    %4197 = vrot.lane.b32.xlu0 %v4129, 96
    %v4198 = vpop.permute.xlu0 %4197
    %4199 = vrot.lane.b32.xlu0 %v4132, 96
    %v4200 = vpop.permute.xlu0 %4199
    %4201 = vrot.lane.b32.xlu0 %v4134, 96
    %v4202 = vpop.permute.xlu0 %4201
    %4203 = vrot.lane.b32.xlu0 %v4137, 96
    %v4204 = vpop.permute.xlu0 %4203
    %4205 = vrot.lane.b32.xlu0 %v4139, 96
    %v4206 = vpop.permute.xlu0 %4205
    %v4213 = vsel %vm885, %v3947, %v4148
    %v4214 = vsel %vm885, %v3949, %v4150
    %v4215 = vsel %vm885, %v3952, %v4152
    %v4216 = vsel %vm885, %v3954, %v4154
    %v4217 = vsel %vm885, %v3957, %v4156
    %v4218 = vsel %vm885, %v3959, %v4158
    %v4219 = vsel %vm1714, %v4213, %v4172
    %v4220 = vsel %vm1714, %v4214, %v4174
    %v4221 = vsel %vm1714, %v4215, %v4176
    %v4222 = vsel %vm1714, %v4216, %v4178
    %v4223 = vsel %vm1714, %v4217, %v4180
    %v4224 = vsel %vm1714, %v4218, %v4182
    %v4225 = vsel %vm1721, %v4219, %v4196
    %v4226 = vsel %vm1721, %v4220, %v4198
    %v4227 = vsel %vm1721, %v4221, %v4200
    %v4228 = vsel %vm1721, %v4222, %v4202
    %v4229 = vsel %vm1721, %v4223, %v4204
    %v4230 = vsel %vm1721, %v4224, %v4206
    %v4231 = vpack.c.bf16 %v4226, %v4225
    %v4232 = vpack.c.bf16 %v4228, %v4227
    %v4233 = vpack.c.bf16 %v4230, %v4229
    %s4234 = scalar_lea.vmem [#allocation14], 64
    %v4235 = vld [vmem:[%s4234] sm:$0xf]
    %v4236 = vld [vmem:[%s4234 + $0x4] sm:$0xf]
    %v4237 = vld [vmem:[%s4234 + $0x8] sm:$0xf]
    %v4238 = vld [vmem:[%s4234 + $0xc] sm:$0xf]
    %v4239 = vld [vmem:[%s4234 + $0x10] sm:$0xf]
    %v4240 = vld [vmem:[%s4234 + $0x14] sm:$0xf]
    %v4241 = vld [vmem:[%s4234 + $0x18] sm:$0xf]
    %v4242 = vld [vmem:[%s4234 + $0x1c] sm:$0xf]
    %v4243 = vld [vmem:[%s4234 + $0x20] sm:$0xf]
    %v4244 = vld [vmem:[%s4234 + $0x24] sm:$0xf]
    %v4245 = vld [vmem:[%s4234 + $0x28] sm:$0xf]
    %v4246 = vld [vmem:[%s4234 + $0x2c] sm:$0xf]
    %v4247 = vld [vmem:[%s4234 + $0x30] sm:$0xf]
    %v4248 = vld [vmem:[%s4234 + $0x34] sm:$0xf]
    %v4249 = vld [vmem:[%s4234 + $0x38] sm:$0xf]
    %v4250 = vld [vmem:[%s4234 + $0x3c] sm:$0xf]
    %v4267 = vunpack.c.l.b16 %v4235
    %v4268 = vunpack.c.l.b16 %v4236
    %v4269 = vunpack.c.l.b16 %v4237
    %v4270 = vunpack.c.l.b16 %v4238
    %v4271 = vunpack.c.l.b16 %v4239
    %v4272 = vunpack.c.l.b16 %v4240
    %v4273 = vunpack.c.l.b16 %v4241
    %v4274 = vunpack.c.l.b16 %v4242
    %v4275 = vunpack.c.l.b16 %v4243
    %v4276 = vunpack.c.l.b16 %v4244
    %v4277 = vunpack.c.l.b16 %v4245
    %v4278 = vunpack.c.l.b16 %v4246
    %v4279 = vunpack.c.l.b16 %v4247
    %v4280 = vunpack.c.l.b16 %v4248
    %v4281 = vunpack.c.l.b16 %v4249
    %v4282 = vunpack.c.l.b16 %v4250
    %v4283 = vpack.c.b16 %v4268, %v4267
    %v4284 = vpack.c.b16 %v4270, %v4269
    %v4285 = vpack.c.b16 %v4272, %v4271
    %v4286 = vpack.c.b16 %v4274, %v4273
    %v4287 = vpack.c.b16 %v4276, %v4275
    %v4288 = vpack.c.b16 %v4278, %v4277
    %v4289 = vpack.c.b16 %v4280, %v4279
    %v4290 = vpack.c.b16 %v4282, %v4281
    %4299 = vmatpush.bf16.msra.mxu0 %v4290
    %4300 = vmatpush.bf16.msra.mxu0 %v4289
    %4301 = vmatpush.bf16.msra.mxu0 %v4288
    %4302 = vmatpush.bf16.msra.mxu0 %v4287
    %4303 = vmatpush.bf16.msra.mxu0 %v4286
    %4304 = vmatpush.bf16.msra.mxu0 %v4285
    %4305 = vmatpush.bf16.msra.mxu0 %v4284
    %4306 = vmatpush.bf16.msra.mxu0 %v4283
    %4307 = vmatmul.bf16.gmra.mxu0 %v4231
    %v4308 = vpop.f32.mrf.mxu0
    %v4309 = vadd.f32 0.0, %v4308
    %v4310 = vpop.f32.mrf.mxu0
    %v4311 = vadd.f32 0.0, %v4310
    %4312 = vmatmul.bf16.gmra.mxu0 %v4232
    %v4313 = vpop.f32.mrf.mxu0
    %v4314 = vadd.f32 0.0, %v4313
    %v4315 = vpop.f32.mrf.mxu0
    %v4316 = vadd.f32 0.0, %v4315
    %4317 = vmatmul.bf16.gmra.mxu0 %v4233
    %v4318 = vpop.f32.mrf.mxu0
    %v4319 = vadd.f32 0.0, %v4318
    %v4320 = vpop.f32.mrf.mxu0
    %v4321 = vadd.f32 0.0, %v4320
    %4322 = vdwg.mxu0
    %v4323 = vadd.f32 %v2860, %v4309
    %v4324 = vadd.f32 %v2861, %v4311
    %v4325 = vadd.f32 %v2862, %v4314
    %v4326 = vadd.f32 %v2863, %v4316
    %v4327 = vadd.f32 %v2864, %v4319
    %v4328 = vadd.f32 %v2865, %v4321
    %s4329 = scalar_lea.vmem [#allocation15], 1
    %v4330 = vld [vmem:[%s4329] sm:$0x1]
    %v4332 = vperm.slane %v4330, 0
    %v4334 = vadd.f32 %v4323, %v4332
    %v4335 = vadd.f32 %v4324, %v4332
    %v4336 = vadd.f32 %v4325, %v4332
    %v4337 = vadd.f32 %v4326, %v4332
    %v4338 = vadd.f32 %v4327, %v4332
    %v4339 = vadd.f32 %v4328, %v4332
    %s4340 = scalar_lea.vmem [#allocation17], 1
    %v4341 = vld [vmem:[%s4340] sm:$0x1]
    %s4342 = scalar_lea.vmem [#allocation18], 1
    %v4343 = vld [vmem:[%s4342] sm:$0x1]
    %4344 = vadd.xlane.f32.xlu0 %v4334
    %v4345 = vpop.xlane.xlu0 %4344
    %4346 = vadd.xlane.f32.xlu0 %v4335
    %v4347 = vpop.xlane.xlu0 %4346
    %4348 = vadd.xlane.f32.xlu0 %v4336
    %v4349 = vpop.xlane.xlu0 %4348
    %4350 = vadd.xlane.f32.xlu0 %v4337
    %v4351 = vpop.xlane.xlu0 %4350
    %4352 = vadd.xlane.f32.xlu0 %v4338
    %v4353 = vpop.xlane.xlu0 %4352
    %4354 = vadd.xlane.f32.xlu0 %v4339
    %v4355 = vpop.xlane.xlu0 %4354
    %v4356 = vmul.f32 %v4345, %v377
    %v4357 = vmul.f32 %v4347, %v377
    %v4358 = vmul.f32 %v4349, %v377
    %v4359 = vmul.f32 %v4351, %v377
    %v4360 = vmul.f32 %v4353, %v377
    %v4361 = vmul.f32 %v4355, %v377
    %v4362 = vsub.f32 %v4334, %v4356
    %v4363 = vsub.f32 %v4335, %v4357
    %v4364 = vsub.f32 %v4336, %v4358
    %v4365 = vsub.f32 %v4337, %v4359
    %v4366 = vsub.f32 %v4338, %v4360
    %v4367 = vsub.f32 %v4339, %v4361
    %v4368 = vmul.f32 %v4362, %v4362
    %v4369 = vmul.f32 %v4363, %v4363
    %v4370 = vmul.f32 %v4364, %v4364
    %v4371 = vmul.f32 %v4365, %v4365
    %v4372 = vmul.f32 %v4366, %v4366
    %v4373 = vmul.f32 %v4367, %v4367
    %4374 = vadd.xlane.f32.xlu0 %v4368
    %v4375 = vpop.xlane.xlu0 %4374
    %4376 = vadd.xlane.f32.xlu0 %v4369
    %v4377 = vpop.xlane.xlu0 %4376
    %4378 = vadd.xlane.f32.xlu0 %v4370
    %v4379 = vpop.xlane.xlu0 %4378
    %4380 = vadd.xlane.f32.xlu0 %v4371
    %v4381 = vpop.xlane.xlu0 %4380
    %4382 = vadd.xlane.f32.xlu0 %v4372
    %v4383 = vpop.xlane.xlu0 %4382
    %4384 = vadd.xlane.f32.xlu0 %v4373
    %v4385 = vpop.xlane.xlu0 %4384
    %v4386 = vmul.f32 %v4375, %v377
    %v4387 = vmul.f32 %v4377, %v377
    %v4388 = vmul.f32 %v4379, %v377
    %v4389 = vmul.f32 %v4381, %v377
    %v4390 = vmul.f32 %v4383, %v377
    %v4391 = vmul.f32 %v4385, %v377
    %v4392 = vadd.f32 %v4386, 1e-06
    %v4393 = vadd.f32 %v4387, 1e-06
    %v4394 = vadd.f32 %v4388, 1e-06
    %v4395 = vadd.f32 %v4389, 1e-06
    %v4396 = vadd.f32 %v4390, 1e-06
    %v4397 = vadd.f32 %v4391, 1e-06
    %v4398 = vrsqrt.pop %v4392
    %v4399 = vmul.f32 %v4398, %v4392
    %v4400 = vmul.f32 %v4399, %v4398
    %v4401 = vmul.f32 0.5, %v4400
    %v4402 = vsub.f32 1.5, %v4401
    %v4403 = vmul.f32 %v4398, %v4402
    %vm4404 = vweird.f32 %v4392
    %vm4405 = vweird.f32 %v4398
    %vm4406 = vmor %vm4404, %vm4405
    %v4407 = vsel %vm4406, %v4398, %v4403
    %v4408 = vrsqrt.pop %v4393
    %v4409 = vmul.f32 %v4408, %v4393
    %v4410 = vmul.f32 %v4409, %v4408
    %v4411 = vmul.f32 0.5, %v4410
    %v4412 = vsub.f32 1.5, %v4411
    %v4413 = vmul.f32 %v4408, %v4412
    %vm4414 = vweird.f32 %v4393
    %vm4415 = vweird.f32 %v4408
    %vm4416 = vmor %vm4414, %vm4415
    %v4417 = vsel %vm4416, %v4408, %v4413
    %v4418 = vrsqrt.pop %v4394
    %v4419 = vmul.f32 %v4418, %v4394
    %v4420 = vmul.f32 %v4419, %v4418
    %v4421 = vmul.f32 0.5, %v4420
    %v4422 = vsub.f32 1.5, %v4421
    %v4423 = vmul.f32 %v4418, %v4422
    %vm4424 = vweird.f32 %v4394
    %vm4425 = vweird.f32 %v4418
    %vm4426 = vmor %vm4424, %vm4425
    %v4427 = vsel %vm4426, %v4418, %v4423
    %v4428 = vrsqrt.pop %v4395
    %v4429 = vmul.f32 %v4428, %v4395
    %v4430 = vmul.f32 %v4429, %v4428
    %v4431 = vmul.f32 0.5, %v4430
    %v4432 = vsub.f32 1.5, %v4431
    %v4433 = vmul.f32 %v4428, %v4432
    %vm4434 = vweird.f32 %v4395
    %vm4435 = vweird.f32 %v4428
    %vm4436 = vmor %vm4434, %vm4435
    %v4437 = vsel %vm4436, %v4428, %v4433
    %v4438 = vrsqrt.pop %v4396
    %v4439 = vmul.f32 %v4438, %v4396
    %v4440 = vmul.f32 %v4439, %v4438
    %v4441 = vmul.f32 0.5, %v4440
    %v4442 = vsub.f32 1.5, %v4441
    %v4443 = vmul.f32 %v4438, %v4442
    %vm4444 = vweird.f32 %v4396
    %vm4445 = vweird.f32 %v4438
    %vm4446 = vmor %vm4444, %vm4445
    %v4447 = vsel %vm4446, %v4438, %v4443
    %v4448 = vrsqrt.pop %v4397
    %v4449 = vmul.f32 %v4448, %v4397
    %v4450 = vmul.f32 %v4449, %v4448
    %v4451 = vmul.f32 0.5, %v4450
    %v4452 = vsub.f32 1.5, %v4451
    %v4453 = vmul.f32 %v4448, %v4452
    %vm4454 = vweird.f32 %v4397
    %vm4455 = vweird.f32 %v4448
    %vm4456 = vmor %vm4454, %vm4455
    %v4457 = vsel %vm4456, %v4448, %v4453
    %v4458 = vmul.f32 %v4362, %v4407
    %v4459 = vmul.f32 %v4363, %v4417
    %v4460 = vmul.f32 %v4364, %v4427
    %v4461 = vmul.f32 %v4365, %v4437
    %v4462 = vmul.f32 %v4366, %v4447
    %v4463 = vmul.f32 %v4367, %v4457
    %v4465 = vperm.slane %v4341, 0
    %v4467 = vmul.f32 %v4458, %v4465
    %v4468 = vmul.f32 %v4459, %v4465
    %v4469 = vmul.f32 %v4460, %v4465
    %v4470 = vmul.f32 %v4461, %v4465
    %v4471 = vmul.f32 %v4462, %v4465
    %v4472 = vmul.f32 %v4463, %v4465
    %v4474 = vperm.slane %v4343, 0
    %v4476 = vadd.f32 %v4467, %v4474
    %v4477 = vadd.f32 %v4468, %v4474
    %v4478 = vadd.f32 %v4469, %v4474
    %v4479 = vadd.f32 %v4470, %v4474
    %v4480 = vadd.f32 %v4471, %v4474
    %v4481 = vadd.f32 %v4472, %v4474
    %v4482 = vpack.c.bf16 %v4477, %v4476
    %v4483 = vpack.c.bf16 %v4479, %v4478
    %v4484 = vpack.c.bf16 %v4481, %v4480
    %s4485 = scalar_lea.vmem [#allocation20], 256
    %v4486 = vld [vmem:[%s4485] sm:$0xff]
    %v4487 = vld [vmem:[%s4485 + $0x8] sm:$0xff]
    %v4488 = vld [vmem:[%s4485 + $0x10] sm:$0xff]
    %v4489 = vld [vmem:[%s4485 + $0x18] sm:$0xff]
    %v4490 = vld [vmem:[%s4485 + $0x20] sm:$0xff]
    %v4491 = vld [vmem:[%s4485 + $0x28] sm:$0xff]
    %v4492 = vld [vmem:[%s4485 + $0x30] sm:$0xff]
    %v4493 = vld [vmem:[%s4485 + $0x38] sm:$0xff]
    %v4494 = vld [vmem:[%s4485 + $0x40] sm:$0xff]
    %v4495 = vld [vmem:[%s4485 + $0x48] sm:$0xff]
    %v4496 = vld [vmem:[%s4485 + $0x50] sm:$0xff]
    %v4497 = vld [vmem:[%s4485 + $0x58] sm:$0xff]
    %v4498 = vld [vmem:[%s4485 + $0x60] sm:$0xff]
    %v4499 = vld [vmem:[%s4485 + $0x68] sm:$0xff]
    %v4500 = vld [vmem:[%s4485 + $0x70] sm:$0xff]
    %v4501 = vld [vmem:[%s4485 + $0x78] sm:$0xff]
    %v4502 = vld [vmem:[%s4485 + $0x80] sm:$0xff]
    %v4503 = vld [vmem:[%s4485 + $0x88] sm:$0xff]
    %v4504 = vld [vmem:[%s4485 + $0x90] sm:$0xff]
    %v4505 = vld [vmem:[%s4485 + $0x98] sm:$0xff]
    %v4506 = vld [vmem:[%s4485 + $0xa0] sm:$0xff]
    %v4507 = vld [vmem:[%s4485 + $0xa8] sm:$0xff]
    %v4508 = vld [vmem:[%s4485 + $0xb0] sm:$0xff]
    %v4509 = vld [vmem:[%s4485 + $0xb8] sm:$0xff]
    %v4510 = vld [vmem:[%s4485 + $0xc0] sm:$0xff]
    %v4511 = vld [vmem:[%s4485 + $0xc8] sm:$0xff]
    %v4512 = vld [vmem:[%s4485 + $0xd0] sm:$0xff]
    %v4513 = vld [vmem:[%s4485 + $0xd8] sm:$0xff]
    %v4514 = vld [vmem:[%s4485 + $0xe0] sm:$0xff]
    %v4515 = vld [vmem:[%s4485 + $0xe8] sm:$0xff]
    %v4516 = vld [vmem:[%s4485 + $0xf0] sm:$0xff]
    %v4517 = vld [vmem:[%s4485 + $0xf8] sm:$0xff]
    %s4518 = scalar_lea.vmem %s15, 4
    %v4519 = vld [vmem:[%s4518] sm:$0xf]
    %v4521 = vperm.slane %v4519, 0
    %v4522 = vperm.slane %v4519, 1
    %v4523 = vperm.slane %v4519, 2
    %v4524 = vperm.slane %v4519, 3
    %v4561 = vunpack.c.l.b16 %v4486
    %v4562 = vunpack.c.h.b16 %v4486
    %v4563 = vunpack.c.l.b16 %v4487
    %v4564 = vunpack.c.h.b16 %v4487
    %v4565 = vunpack.c.l.b16 %v4488
    %v4566 = vunpack.c.h.b16 %v4488
    %v4567 = vunpack.c.l.b16 %v4489
    %v4568 = vunpack.c.h.b16 %v4489
    %v4569 = vunpack.c.l.b16 %v4490
    %v4570 = vunpack.c.h.b16 %v4490
    %v4571 = vunpack.c.l.b16 %v4491
    %v4572 = vunpack.c.h.b16 %v4491
    %v4573 = vunpack.c.l.b16 %v4492
    %v4574 = vunpack.c.h.b16 %v4492
    %v4575 = vunpack.c.l.b16 %v4493
    %v4576 = vunpack.c.h.b16 %v4493
    %v4577 = vunpack.c.l.b16 %v4494
    %v4578 = vunpack.c.h.b16 %v4494
    %v4579 = vunpack.c.l.b16 %v4495
    %v4580 = vunpack.c.h.b16 %v4495
    %v4581 = vunpack.c.l.b16 %v4496
    %v4582 = vunpack.c.h.b16 %v4496
    %v4583 = vunpack.c.l.b16 %v4497
    %v4584 = vunpack.c.h.b16 %v4497
    %v4585 = vunpack.c.l.b16 %v4498
    %v4586 = vunpack.c.h.b16 %v4498
    %v4587 = vunpack.c.l.b16 %v4499
    %v4588 = vunpack.c.h.b16 %v4499
    %v4589 = vunpack.c.l.b16 %v4500
    %v4590 = vunpack.c.h.b16 %v4500
    %v4591 = vunpack.c.l.b16 %v4501
    %v4592 = vunpack.c.h.b16 %v4501
    %v4593 = vunpack.c.l.b16 %v4502
    %v4594 = vunpack.c.h.b16 %v4502
    %v4595 = vunpack.c.l.b16 %v4503
    %v4596 = vunpack.c.h.b16 %v4503
    %v4597 = vunpack.c.l.b16 %v4504
    %v4598 = vunpack.c.h.b16 %v4504
    %v4599 = vunpack.c.l.b16 %v4505
    %v4600 = vunpack.c.h.b16 %v4505
    %v4601 = vunpack.c.l.b16 %v4506
    %v4602 = vunpack.c.h.b16 %v4506
    %v4603 = vunpack.c.l.b16 %v4507
    %v4604 = vunpack.c.h.b16 %v4507
    %v4605 = vunpack.c.l.b16 %v4508
    %v4606 = vunpack.c.h.b16 %v4508
    %v4607 = vunpack.c.l.b16 %v4509
    %v4608 = vunpack.c.h.b16 %v4509
    %v4609 = vunpack.c.l.b16 %v4510
    %v4610 = vunpack.c.h.b16 %v4510
    %v4611 = vunpack.c.l.b16 %v4511
    %v4612 = vunpack.c.h.b16 %v4511
    %v4613 = vunpack.c.l.b16 %v4512
    %v4614 = vunpack.c.h.b16 %v4512
    %v4615 = vunpack.c.l.b16 %v4513
    %v4616 = vunpack.c.h.b16 %v4513
    %v4617 = vunpack.c.l.b16 %v4514
    %v4618 = vunpack.c.h.b16 %v4514
    %v4619 = vunpack.c.l.b16 %v4515
    %v4620 = vunpack.c.h.b16 %v4515
    %v4621 = vunpack.c.l.b16 %v4516
    %v4622 = vunpack.c.h.b16 %v4516
    %v4623 = vunpack.c.l.b16 %v4517
    %v4624 = vunpack.c.h.b16 %v4517
    %v4625 = vpack.c.b16 %v4565, %v4561
    %v4626 = vpack.c.b16 %v4566, %v4562
    %v4627 = vpack.c.b16 %v4567, %v4563
    %v4628 = vpack.c.b16 %v4568, %v4564
    %v4629 = vpack.c.b16 %v4573, %v4569
    %v4630 = vpack.c.b16 %v4574, %v4570
    %v4631 = vpack.c.b16 %v4575, %v4571
    %v4632 = vpack.c.b16 %v4576, %v4572
    %v4633 = vpack.c.b16 %v4581, %v4577
    %v4634 = vpack.c.b16 %v4582, %v4578
    %v4635 = vpack.c.b16 %v4583, %v4579
    %v4636 = vpack.c.b16 %v4584, %v4580
    %v4637 = vpack.c.b16 %v4589, %v4585
    %v4638 = vpack.c.b16 %v4590, %v4586
    %v4639 = vpack.c.b16 %v4591, %v4587
    %v4640 = vpack.c.b16 %v4592, %v4588
    %v4641 = vpack.c.b16 %v4597, %v4593
    %v4642 = vpack.c.b16 %v4598, %v4594
    %v4643 = vpack.c.b16 %v4599, %v4595
    %v4644 = vpack.c.b16 %v4600, %v4596
    %v4645 = vpack.c.b16 %v4605, %v4601
    %v4646 = vpack.c.b16 %v4606, %v4602
    %v4647 = vpack.c.b16 %v4607, %v4603
    %v4648 = vpack.c.b16 %v4608, %v4604
    %v4649 = vpack.c.b16 %v4613, %v4609
    %v4650 = vpack.c.b16 %v4614, %v4610
    %v4651 = vpack.c.b16 %v4615, %v4611
    %v4652 = vpack.c.b16 %v4616, %v4612
    %v4653 = vpack.c.b16 %v4621, %v4617
    %v4654 = vpack.c.b16 %v4622, %v4618
    %v4655 = vpack.c.b16 %v4623, %v4619
    %v4656 = vpack.c.b16 %v4624, %v4620
    %4689 = vmatpush.bf16.msra.mxu0 %v4653
    %4690 = vmatpush.bf16.msra.mxu0 %v4649
    %4691 = vmatpush.bf16.msra.mxu0 %v4645
    %4692 = vmatpush.bf16.msra.mxu0 %v4641
    %4693 = vmatpush.bf16.msra.mxu0 %v4637
    %4694 = vmatpush.bf16.msra.mxu0 %v4633
    %4695 = vmatpush.bf16.msra.mxu0 %v4629
    %4696 = vmatpush.bf16.msra.mxu0 %v4625
    %4697 = vmatmul.bf16.gmra.mxu0 %v4482
    %v4698 = vpop.f32.mrf.mxu0
    %v4699 = vadd.f32 %v4521, %v4698
    %v4700 = vpop.f32.mrf.mxu0
    %v4701 = vadd.f32 %v4521, %v4700
    %4702 = vmatmul.bf16.gmra.mxu0 %v4483
    %v4703 = vpop.f32.mrf.mxu0
    %v4704 = vadd.f32 %v4521, %v4703
    %v4705 = vpop.f32.mrf.mxu0
    %v4706 = vadd.f32 %v4521, %v4705
    %4707 = vmatmul.bf16.gmra.mxu0 %v4484
    %v4708 = vpop.f32.mrf.mxu0
    %v4709 = vadd.f32 %v4521, %v4708
    %v4710 = vpop.f32.mrf.mxu0
    %v4711 = vadd.f32 %v4521, %v4710
    %4712 = vdwg.mxu0
    %4713 = vmatpush.bf16.msra.mxu0 %v4654
    %4714 = vmatpush.bf16.msra.mxu0 %v4650
    %4715 = vmatpush.bf16.msra.mxu0 %v4646
    %4716 = vmatpush.bf16.msra.mxu0 %v4642
    %4717 = vmatpush.bf16.msra.mxu0 %v4638
    %4718 = vmatpush.bf16.msra.mxu0 %v4634
    %4719 = vmatpush.bf16.msra.mxu0 %v4630
    %4720 = vmatpush.bf16.msra.mxu0 %v4626
    %4721 = vmatmul.bf16.gmra.mxu0 %v4482
    %v4722 = vpop.f32.mrf.mxu0
    %v4723 = vadd.f32 %v4522, %v4722
    %v4724 = vpop.f32.mrf.mxu0
    %v4725 = vadd.f32 %v4522, %v4724
    %4726 = vmatmul.bf16.gmra.mxu0 %v4483
    %v4727 = vpop.f32.mrf.mxu0
    %v4728 = vadd.f32 %v4522, %v4727
    %v4729 = vpop.f32.mrf.mxu0
    %v4730 = vadd.f32 %v4522, %v4729
    %4731 = vmatmul.bf16.gmra.mxu0 %v4484
    %v4732 = vpop.f32.mrf.mxu0
    %v4733 = vadd.f32 %v4522, %v4732
    %v4734 = vpop.f32.mrf.mxu0
    %v4735 = vadd.f32 %v4522, %v4734
    %4736 = vdwg.mxu0
    %4737 = vmatpush.bf16.msra.mxu0 %v4655
    %4738 = vmatpush.bf16.msra.mxu0 %v4651
    %4739 = vmatpush.bf16.msra.mxu0 %v4647
    %4740 = vmatpush.bf16.msra.mxu0 %v4643
    %4741 = vmatpush.bf16.msra.mxu0 %v4639
    %4742 = vmatpush.bf16.msra.mxu0 %v4635
    %4743 = vmatpush.bf16.msra.mxu0 %v4631
    %4744 = vmatpush.bf16.msra.mxu0 %v4627
    %4745 = vmatmul.bf16.gmra.mxu0 %v4482
    %v4746 = vpop.f32.mrf.mxu0
    %v4747 = vadd.f32 %v4523, %v4746
    %v4748 = vpop.f32.mrf.mxu0
    %v4749 = vadd.f32 %v4523, %v4748
    %4750 = vmatmul.bf16.gmra.mxu0 %v4483
    %v4751 = vpop.f32.mrf.mxu0
    %v4752 = vadd.f32 %v4523, %v4751
    %v4753 = vpop.f32.mrf.mxu0
    %v4754 = vadd.f32 %v4523, %v4753
    %4755 = vmatmul.bf16.gmra.mxu0 %v4484
    %v4756 = vpop.f32.mrf.mxu0
    %v4757 = vadd.f32 %v4523, %v4756
    %v4758 = vpop.f32.mrf.mxu0
    %v4759 = vadd.f32 %v4523, %v4758
    %4760 = vdwg.mxu0
    %4761 = vmatpush.bf16.msra.mxu0 %v4656
    %4762 = vmatpush.bf16.msra.mxu0 %v4652
    %4763 = vmatpush.bf16.msra.mxu0 %v4648
    %4764 = vmatpush.bf16.msra.mxu0 %v4644
    %4765 = vmatpush.bf16.msra.mxu0 %v4640
    %4766 = vmatpush.bf16.msra.mxu0 %v4636
    %4767 = vmatpush.bf16.msra.mxu0 %v4632
    %4768 = vmatpush.bf16.msra.mxu0 %v4628
    %4769 = vmatmul.bf16.gmra.mxu0 %v4482
    %v4770 = vpop.f32.mrf.mxu0
    %v4771 = vadd.f32 %v4524, %v4770
    %v4772 = vpop.f32.mrf.mxu0
    %v4773 = vadd.f32 %v4524, %v4772
    %4774 = vmatmul.bf16.gmra.mxu0 %v4483
    %v4775 = vpop.f32.mrf.mxu0
    %v4776 = vadd.f32 %v4524, %v4775
    %v4777 = vpop.f32.mrf.mxu0
    %v4778 = vadd.f32 %v4524, %v4777
    %4779 = vmatmul.bf16.gmra.mxu0 %v4484
    %v4780 = vpop.f32.mrf.mxu0
    %v4781 = vadd.f32 %v4524, %v4780
    %v4782 = vpop.f32.mrf.mxu0
    %v4783 = vadd.f32 %v4524, %v4782
    %4784 = vdwg.mxu0
    %v4785 = vmul.f32 %v4699, %v4699
    %v4786 = vmul.f32 %v4723, %v4723
    %v4787 = vmul.f32 %v4747, %v4747
    %v4788 = vmul.f32 %v4771, %v4771
    %v4789 = vmul.f32 %v4701, %v4701
    %v4790 = vmul.f32 %v4725, %v4725
    %v4791 = vmul.f32 %v4749, %v4749
    %v4792 = vmul.f32 %v4773, %v4773
    %v4793 = vmul.f32 %v4704, %v4704
    %v4794 = vmul.f32 %v4728, %v4728
    %v4795 = vmul.f32 %v4752, %v4752
    %v4796 = vmul.f32 %v4776, %v4776
    %v4797 = vmul.f32 %v4706, %v4706
    %v4798 = vmul.f32 %v4730, %v4730
    %v4799 = vmul.f32 %v4754, %v4754
    %v4800 = vmul.f32 %v4778, %v4778
    %v4801 = vmul.f32 %v4709, %v4709
    %v4802 = vmul.f32 %v4733, %v4733
    %v4803 = vmul.f32 %v4757, %v4757
    %v4804 = vmul.f32 %v4781, %v4781
    %v4805 = vmul.f32 %v4711, %v4711
    %v4806 = vmul.f32 %v4735, %v4735
    %v4807 = vmul.f32 %v4759, %v4759
    %v4808 = vmul.f32 %v4783, %v4783
    %v4809 = vmul.f32 %v4699, %v4785
    %v4810 = vmul.f32 %v4723, %v4786
    %v4811 = vmul.f32 %v4747, %v4787
    %v4812 = vmul.f32 %v4771, %v4788
    %v4813 = vmul.f32 %v4701, %v4789
    %v4814 = vmul.f32 %v4725, %v4790
    %v4815 = vmul.f32 %v4749, %v4791
    %v4816 = vmul.f32 %v4773, %v4792
    %v4817 = vmul.f32 %v4704, %v4793
    %v4818 = vmul.f32 %v4728, %v4794
    %v4819 = vmul.f32 %v4752, %v4795
    %v4820 = vmul.f32 %v4776, %v4796
    %v4821 = vmul.f32 %v4706, %v4797
    %v4822 = vmul.f32 %v4730, %v4798
    %v4823 = vmul.f32 %v4754, %v4799
    %v4824 = vmul.f32 %v4778, %v4800
    %v4825 = vmul.f32 %v4709, %v4801
    %v4826 = vmul.f32 %v4733, %v4802
    %v4827 = vmul.f32 %v4757, %v4803
    %v4828 = vmul.f32 %v4781, %v4804
    %v4829 = vmul.f32 %v4711, %v4805
    %v4830 = vmul.f32 %v4735, %v4806
    %v4831 = vmul.f32 %v4759, %v4807
    %v4832 = vmul.f32 %v4783, %v4808
    %v4833 = vmul.f32 %v4809, 0.044715
    %v4834 = vmul.f32 %v4810, 0.044715
    %v4835 = vmul.f32 %v4811, 0.044715
    %v4836 = vmul.f32 %v4812, 0.044715
    %v4837 = vmul.f32 %v4813, 0.044715
    %v4838 = vmul.f32 %v4814, 0.044715
    %v4839 = vmul.f32 %v4815, 0.044715
    %v4840 = vmul.f32 %v4816, 0.044715
    %v4841 = vmul.f32 %v4817, 0.044715
    %v4842 = vmul.f32 %v4818, 0.044715
    %v4843 = vmul.f32 %v4819, 0.044715
    %v4844 = vmul.f32 %v4820, 0.044715
    %v4845 = vmul.f32 %v4821, 0.044715
    %v4846 = vmul.f32 %v4822, 0.044715
    %v4847 = vmul.f32 %v4823, 0.044715
    %v4848 = vmul.f32 %v4824, 0.044715
    %v4849 = vmul.f32 %v4825, 0.044715
    %v4850 = vmul.f32 %v4826, 0.044715
    %v4851 = vmul.f32 %v4827, 0.044715
    %v4852 = vmul.f32 %v4828, 0.044715
    %v4853 = vmul.f32 %v4829, 0.044715
    %v4854 = vmul.f32 %v4830, 0.044715
    %v4855 = vmul.f32 %v4831, 0.044715
    %v4856 = vmul.f32 %v4832, 0.044715
    %v4857 = vadd.f32 %v4699, %v4833
    %v4858 = vadd.f32 %v4723, %v4834
    %v4859 = vadd.f32 %v4747, %v4835
    %v4860 = vadd.f32 %v4771, %v4836
    %v4861 = vadd.f32 %v4701, %v4837
    %v4862 = vadd.f32 %v4725, %v4838
    %v4863 = vadd.f32 %v4749, %v4839
    %v4864 = vadd.f32 %v4773, %v4840
    %v4865 = vadd.f32 %v4704, %v4841
    %v4866 = vadd.f32 %v4728, %v4842
    %v4867 = vadd.f32 %v4752, %v4843
    %v4868 = vadd.f32 %v4776, %v4844
    %v4869 = vadd.f32 %v4706, %v4845
    %v4870 = vadd.f32 %v4730, %v4846
    %v4871 = vadd.f32 %v4754, %v4847
    %v4872 = vadd.f32 %v4778, %v4848
    %v4873 = vadd.f32 %v4709, %v4849
    %v4874 = vadd.f32 %v4733, %v4850
    %v4875 = vadd.f32 %v4757, %v4851
    %v4876 = vadd.f32 %v4781, %v4852
    %v4877 = vadd.f32 %v4711, %v4853
    %v4878 = vadd.f32 %v4735, %v4854
    %v4879 = vadd.f32 %v4759, %v4855
    %v4880 = vadd.f32 %v4783, %v4856
    %v4881 = vmul.f32 %v4857, 0.7978846
    %v4882 = vmul.f32 %v4858, 0.7978846
    %v4883 = vmul.f32 %v4859, 0.7978846
    %v4884 = vmul.f32 %v4860, 0.7978846
    %v4885 = vmul.f32 %v4861, 0.7978846
    %v4886 = vmul.f32 %v4862, 0.7978846
    %v4887 = vmul.f32 %v4863, 0.7978846
    %v4888 = vmul.f32 %v4864, 0.7978846
    %v4889 = vmul.f32 %v4865, 0.7978846
    %v4890 = vmul.f32 %v4866, 0.7978846
    %v4891 = vmul.f32 %v4867, 0.7978846
    %v4892 = vmul.f32 %v4868, 0.7978846
    %v4893 = vmul.f32 %v4869, 0.7978846
    %v4894 = vmul.f32 %v4870, 0.7978846
    %v4895 = vmul.f32 %v4871, 0.7978846
    %v4896 = vmul.f32 %v4872, 0.7978846
    %v4897 = vmul.f32 %v4873, 0.7978846
    %v4898 = vmul.f32 %v4874, 0.7978846
    %v4899 = vmul.f32 %v4875, 0.7978846
    %v4900 = vmul.f32 %v4876, 0.7978846
    %v4901 = vmul.f32 %v4877, 0.7978846
    %v4902 = vmul.f32 %v4878, 0.7978846
    %v4903 = vmul.f32 %v4879, 0.7978846
    %v4904 = vmul.f32 %v4880, 0.7978846
    %v4905 = vtanh.pop %v4881
    %v4906 = vtanh.pop %v4882
    %v4907 = vtanh.pop %v4883
    %v4908 = vtanh.pop %v4884
    %v4909 = vtanh.pop %v4885
    %v4910 = vtanh.pop %v4886
    %v4911 = vtanh.pop %v4887
    %v4912 = vtanh.pop %v4888
    %v4913 = vtanh.pop %v4889
    %v4914 = vtanh.pop %v4890
    %v4915 = vtanh.pop %v4891
    %v4916 = vtanh.pop %v4892
    %v4917 = vtanh.pop %v4893
    %v4918 = vtanh.pop %v4894
    %v4919 = vtanh.pop %v4895
    %v4920 = vtanh.pop %v4896
    %v4921 = vtanh.pop %v4897
    %v4922 = vtanh.pop %v4898
    %v4923 = vtanh.pop %v4899
    %v4924 = vtanh.pop %v4900
    %v4925 = vtanh.pop %v4901
    %v4926 = vtanh.pop %v4902
    %v4927 = vtanh.pop %v4903
    %v4928 = vtanh.pop %v4904
    %v4929 = vadd.f32 %v4905, 1.0
    %v4930 = vadd.f32 %v4906, 1.0
    %v4931 = vadd.f32 %v4907, 1.0
    %v4932 = vadd.f32 %v4908, 1.0
    %v4933 = vadd.f32 %v4909, 1.0
    %v4934 = vadd.f32 %v4910, 1.0
    %v4935 = vadd.f32 %v4911, 1.0
    %v4936 = vadd.f32 %v4912, 1.0
    %v4937 = vadd.f32 %v4913, 1.0
    %v4938 = vadd.f32 %v4914, 1.0
    %v4939 = vadd.f32 %v4915, 1.0
    %v4940 = vadd.f32 %v4916, 1.0
    %v4941 = vadd.f32 %v4917, 1.0
    %v4942 = vadd.f32 %v4918, 1.0
    %v4943 = vadd.f32 %v4919, 1.0
    %v4944 = vadd.f32 %v4920, 1.0
    %v4945 = vadd.f32 %v4921, 1.0
    %v4946 = vadd.f32 %v4922, 1.0
    %v4947 = vadd.f32 %v4923, 1.0
    %v4948 = vadd.f32 %v4924, 1.0
    %v4949 = vadd.f32 %v4925, 1.0
    %v4950 = vadd.f32 %v4926, 1.0
    %v4951 = vadd.f32 %v4927, 1.0
    %v4952 = vadd.f32 %v4928, 1.0
    %v4953 = vmul.f32 %v4929, 0.5
    %v4954 = vmul.f32 %v4930, 0.5
    %v4955 = vmul.f32 %v4931, 0.5
    %v4956 = vmul.f32 %v4932, 0.5
    %v4957 = vmul.f32 %v4933, 0.5
    %v4958 = vmul.f32 %v4934, 0.5
    %v4959 = vmul.f32 %v4935, 0.5
    %v4960 = vmul.f32 %v4936, 0.5
    %v4961 = vmul.f32 %v4937, 0.5
    %v4962 = vmul.f32 %v4938, 0.5
    %v4963 = vmul.f32 %v4939, 0.5
    %v4964 = vmul.f32 %v4940, 0.5
    %v4965 = vmul.f32 %v4941, 0.5
    %v4966 = vmul.f32 %v4942, 0.5
    %v4967 = vmul.f32 %v4943, 0.5
    %v4968 = vmul.f32 %v4944, 0.5
    %v4969 = vmul.f32 %v4945, 0.5
    %v4970 = vmul.f32 %v4946, 0.5
    %v4971 = vmul.f32 %v4947, 0.5
    %v4972 = vmul.f32 %v4948, 0.5
    %v4973 = vmul.f32 %v4949, 0.5
    %v4974 = vmul.f32 %v4950, 0.5
    %v4975 = vmul.f32 %v4951, 0.5
    %v4976 = vmul.f32 %v4952, 0.5
    %v4977 = vmul.f32 %v4699, %v4953
    %v4978 = vmul.f32 %v4723, %v4954
    %v4979 = vmul.f32 %v4747, %v4955
    %v4980 = vmul.f32 %v4771, %v4956
    %v4981 = vmul.f32 %v4701, %v4957
    %v4982 = vmul.f32 %v4725, %v4958
    %v4983 = vmul.f32 %v4749, %v4959
    %v4984 = vmul.f32 %v4773, %v4960
    %v4985 = vmul.f32 %v4704, %v4961
    %v4986 = vmul.f32 %v4728, %v4962
    %v4987 = vmul.f32 %v4752, %v4963
    %v4988 = vmul.f32 %v4776, %v4964
    %v4989 = vmul.f32 %v4706, %v4965
    %v4990 = vmul.f32 %v4730, %v4966
    %v4991 = vmul.f32 %v4754, %v4967
    %v4992 = vmul.f32 %v4778, %v4968
    %v4993 = vmul.f32 %v4709, %v4969
    %v4994 = vmul.f32 %v4733, %v4970
    %v4995 = vmul.f32 %v4757, %v4971
    %v4996 = vmul.f32 %v4781, %v4972
    %v4997 = vmul.f32 %v4711, %v4973
    %v4998 = vmul.f32 %v4735, %v4974
    %v4999 = vmul.f32 %v4759, %v4975
    %v5000 = vmul.f32 %v4783, %v4976
    %v5001 = vpack.c.bf16 %v4981, %v4977
    %v5002 = vpack.c.bf16 %v4982, %v4978
    %v5003 = vpack.c.bf16 %v4983, %v4979
    %v5004 = vpack.c.bf16 %v4984, %v4980
    %v5005 = vpack.c.bf16 %v4989, %v4985
    %v5006 = vpack.c.bf16 %v4990, %v4986
    %v5007 = vpack.c.bf16 %v4991, %v4987
    %v5008 = vpack.c.bf16 %v4992, %v4988
    %v5009 = vpack.c.bf16 %v4997, %v4993
    %v5010 = vpack.c.bf16 %v4998, %v4994
    %v5011 = vpack.c.bf16 %v4999, %v4995
    %v5012 = vpack.c.bf16 %v5000, %v4996
    %s5013 = scalar_lea.vmem [#allocation21], 256
    %v5014 = vld [vmem:[%s5013] sm:$0xf]
    %v5015 = vld [vmem:[%s5013 + $0x4] sm:$0xf]
    %v5016 = vld [vmem:[%s5013 + $0x8] sm:$0xf]
    %v5017 = vld [vmem:[%s5013 + $0xc] sm:$0xf]
    %v5018 = vld [vmem:[%s5013 + $0x10] sm:$0xf]
    %v5019 = vld [vmem:[%s5013 + $0x14] sm:$0xf]
    %v5020 = vld [vmem:[%s5013 + $0x18] sm:$0xf]
    %v5021 = vld [vmem:[%s5013 + $0x1c] sm:$0xf]
    %v5022 = vld [vmem:[%s5013 + $0x20] sm:$0xf]
    %v5023 = vld [vmem:[%s5013 + $0x24] sm:$0xf]
    %v5024 = vld [vmem:[%s5013 + $0x28] sm:$0xf]
    %v5025 = vld [vmem:[%s5013 + $0x2c] sm:$0xf]
    %v5026 = vld [vmem:[%s5013 + $0x30] sm:$0xf]
    %v5027 = vld [vmem:[%s5013 + $0x34] sm:$0xf]
    %v5028 = vld [vmem:[%s5013 + $0x38] sm:$0xf]
    %v5029 = vld [vmem:[%s5013 + $0x3c] sm:$0xf]
    %v5030 = vld [vmem:[%s5013 + $0x40] sm:$0xf]
    %v5031 = vld [vmem:[%s5013 + $0x44] sm:$0xf]
    %v5032 = vld [vmem:[%s5013 + $0x48] sm:$0xf]
    %v5033 = vld [vmem:[%s5013 + $0x4c] sm:$0xf]
    %v5034 = vld [vmem:[%s5013 + $0x50] sm:$0xf]
    %v5035 = vld [vmem:[%s5013 + $0x54] sm:$0xf]
    %v5036 = vld [vmem:[%s5013 + $0x58] sm:$0xf]
    %v5037 = vld [vmem:[%s5013 + $0x5c] sm:$0xf]
    %v5038 = vld [vmem:[%s5013 + $0x60] sm:$0xf]
    %v5039 = vld [vmem:[%s5013 + $0x64] sm:$0xf]
    %v5040 = vld [vmem:[%s5013 + $0x68] sm:$0xf]
    %v5041 = vld [vmem:[%s5013 + $0x6c] sm:$0xf]
    %v5042 = vld [vmem:[%s5013 + $0x70] sm:$0xf]
    %v5043 = vld [vmem:[%s5013 + $0x74] sm:$0xf]
    %v5044 = vld [vmem:[%s5013 + $0x78] sm:$0xf]
    %v5045 = vld [vmem:[%s5013 + $0x7c] sm:$0xf]
    %v5046 = vld [vmem:[%s5013 + $0x80] sm:$0xf]
    %v5047 = vld [vmem:[%s5013 + $0x84] sm:$0xf]
    %v5048 = vld [vmem:[%s5013 + $0x88] sm:$0xf]
    %v5049 = vld [vmem:[%s5013 + $0x8c] sm:$0xf]
    %v5050 = vld [vmem:[%s5013 + $0x90] sm:$0xf]
    %v5051 = vld [vmem:[%s5013 + $0x94] sm:$0xf]
    %v5052 = vld [vmem:[%s5013 + $0x98] sm:$0xf]
    %v5053 = vld [vmem:[%s5013 + $0x9c] sm:$0xf]
    %v5054 = vld [vmem:[%s5013 + $0xa0] sm:$0xf]
    %v5055 = vld [vmem:[%s5013 + $0xa4] sm:$0xf]
    %v5056 = vld [vmem:[%s5013 + $0xa8] sm:$0xf]
    %v5057 = vld [vmem:[%s5013 + $0xac] sm:$0xf]
    %v5058 = vld [vmem:[%s5013 + $0xb0] sm:$0xf]
    %v5059 = vld [vmem:[%s5013 + $0xb4] sm:$0xf]
    %v5060 = vld [vmem:[%s5013 + $0xb8] sm:$0xf]
    %v5061 = vld [vmem:[%s5013 + $0xbc] sm:$0xf]
    %v5062 = vld [vmem:[%s5013 + $0xc0] sm:$0xf]
    %v5063 = vld [vmem:[%s5013 + $0xc4] sm:$0xf]
    %v5064 = vld [vmem:[%s5013 + $0xc8] sm:$0xf]
    %v5065 = vld [vmem:[%s5013 + $0xcc] sm:$0xf]
    %v5066 = vld [vmem:[%s5013 + $0xd0] sm:$0xf]
    %v5067 = vld [vmem:[%s5013 + $0xd4] sm:$0xf]
    %v5068 = vld [vmem:[%s5013 + $0xd8] sm:$0xf]
    %v5069 = vld [vmem:[%s5013 + $0xdc] sm:$0xf]
    %v5070 = vld [vmem:[%s5013 + $0xe0] sm:$0xf]
    %v5071 = vld [vmem:[%s5013 + $0xe4] sm:$0xf]
    %v5072 = vld [vmem:[%s5013 + $0xe8] sm:$0xf]
    %v5073 = vld [vmem:[%s5013 + $0xec] sm:$0xf]
    %v5074 = vld [vmem:[%s5013 + $0xf0] sm:$0xf]
    %v5075 = vld [vmem:[%s5013 + $0xf4] sm:$0xf]
    %v5076 = vld [vmem:[%s5013 + $0xf8] sm:$0xf]
    %v5077 = vld [vmem:[%s5013 + $0xfc] sm:$0xf]
    %s5078 = scalar_lea.vmem %s17, 1
    %v5079 = vld [vmem:[%s5078] sm:$0x1]
    %v5081 = vperm.slane %v5079, 0
    %v5147 = vunpack.c.l.b16 %v5014
    %v5148 = vunpack.c.l.b16 %v5015
    %v5149 = vunpack.c.l.b16 %v5016
    %v5150 = vunpack.c.l.b16 %v5017
    %v5151 = vunpack.c.l.b16 %v5018
    %v5152 = vunpack.c.l.b16 %v5019
    %v5153 = vunpack.c.l.b16 %v5020
    %v5154 = vunpack.c.l.b16 %v5021
    %v5155 = vunpack.c.l.b16 %v5022
    %v5156 = vunpack.c.l.b16 %v5023
    %v5157 = vunpack.c.l.b16 %v5024
    %v5158 = vunpack.c.l.b16 %v5025
    %v5159 = vunpack.c.l.b16 %v5026
    %v5160 = vunpack.c.l.b16 %v5027
    %v5161 = vunpack.c.l.b16 %v5028
    %v5162 = vunpack.c.l.b16 %v5029
    %v5163 = vunpack.c.l.b16 %v5030
    %v5164 = vunpack.c.l.b16 %v5031
    %v5165 = vunpack.c.l.b16 %v5032
    %v5166 = vunpack.c.l.b16 %v5033
    %v5167 = vunpack.c.l.b16 %v5034
    %v5168 = vunpack.c.l.b16 %v5035
    %v5169 = vunpack.c.l.b16 %v5036
    %v5170 = vunpack.c.l.b16 %v5037
    %v5171 = vunpack.c.l.b16 %v5038
    %v5172 = vunpack.c.l.b16 %v5039
    %v5173 = vunpack.c.l.b16 %v5040
    %v5174 = vunpack.c.l.b16 %v5041
    %v5175 = vunpack.c.l.b16 %v5042
    %v5176 = vunpack.c.l.b16 %v5043
    %v5177 = vunpack.c.l.b16 %v5044
    %v5178 = vunpack.c.l.b16 %v5045
    %v5179 = vunpack.c.l.b16 %v5046
    %v5180 = vunpack.c.l.b16 %v5047
    %v5181 = vunpack.c.l.b16 %v5048
    %v5182 = vunpack.c.l.b16 %v5049
    %v5183 = vunpack.c.l.b16 %v5050
    %v5184 = vunpack.c.l.b16 %v5051
    %v5185 = vunpack.c.l.b16 %v5052
    %v5186 = vunpack.c.l.b16 %v5053
    %v5187 = vunpack.c.l.b16 %v5054
    %v5188 = vunpack.c.l.b16 %v5055
    %v5189 = vunpack.c.l.b16 %v5056
    %v5190 = vunpack.c.l.b16 %v5057
    %v5191 = vunpack.c.l.b16 %v5058
    %v5192 = vunpack.c.l.b16 %v5059
    %v5193 = vunpack.c.l.b16 %v5060
    %v5194 = vunpack.c.l.b16 %v5061
    %v5195 = vunpack.c.l.b16 %v5062
    %v5196 = vunpack.c.l.b16 %v5063
    %v5197 = vunpack.c.l.b16 %v5064
    %v5198 = vunpack.c.l.b16 %v5065
    %v5199 = vunpack.c.l.b16 %v5066
    %v5200 = vunpack.c.l.b16 %v5067
    %v5201 = vunpack.c.l.b16 %v5068
    %v5202 = vunpack.c.l.b16 %v5069
    %v5203 = vunpack.c.l.b16 %v5070
    %v5204 = vunpack.c.l.b16 %v5071
    %v5205 = vunpack.c.l.b16 %v5072
    %v5206 = vunpack.c.l.b16 %v5073
    %v5207 = vunpack.c.l.b16 %v5074
    %v5208 = vunpack.c.l.b16 %v5075
    %v5209 = vunpack.c.l.b16 %v5076
    %v5210 = vunpack.c.l.b16 %v5077
    %v5211 = vpack.c.b16 %v5148, %v5147
    %v5212 = vpack.c.b16 %v5150, %v5149
    %v5213 = vpack.c.b16 %v5152, %v5151
    %v5214 = vpack.c.b16 %v5154, %v5153
    %v5215 = vpack.c.b16 %v5156, %v5155
    %v5216 = vpack.c.b16 %v5158, %v5157
    %v5217 = vpack.c.b16 %v5160, %v5159
    %v5218 = vpack.c.b16 %v5162, %v5161
    %v5219 = vpack.c.b16 %v5164, %v5163
    %v5220 = vpack.c.b16 %v5166, %v5165
    %v5221 = vpack.c.b16 %v5168, %v5167
    %v5222 = vpack.c.b16 %v5170, %v5169
    %v5223 = vpack.c.b16 %v5172, %v5171
    %v5224 = vpack.c.b16 %v5174, %v5173
    %v5225 = vpack.c.b16 %v5176, %v5175
    %v5226 = vpack.c.b16 %v5178, %v5177
    %v5227 = vpack.c.b16 %v5180, %v5179
    %v5228 = vpack.c.b16 %v5182, %v5181
    %v5229 = vpack.c.b16 %v5184, %v5183
    %v5230 = vpack.c.b16 %v5186, %v5185
    %v5231 = vpack.c.b16 %v5188, %v5187
    %v5232 = vpack.c.b16 %v5190, %v5189
    %v5233 = vpack.c.b16 %v5192, %v5191
    %v5234 = vpack.c.b16 %v5194, %v5193
    %v5235 = vpack.c.b16 %v5196, %v5195
    %v5236 = vpack.c.b16 %v5198, %v5197
    %v5237 = vpack.c.b16 %v5200, %v5199
    %v5238 = vpack.c.b16 %v5202, %v5201
    %v5239 = vpack.c.b16 %v5204, %v5203
    %v5240 = vpack.c.b16 %v5206, %v5205
    %v5241 = vpack.c.b16 %v5208, %v5207
    %v5242 = vpack.c.b16 %v5210, %v5209
    %5275 = vmatpush.bf16.msra.mxu0 %v5218
    %5276 = vmatpush.bf16.msra.mxu0 %v5217
    %5277 = vmatpush.bf16.msra.mxu0 %v5216
    %5278 = vmatpush.bf16.msra.mxu0 %v5215
    %5279 = vmatpush.bf16.msra.mxu0 %v5214
    %5280 = vmatpush.bf16.msra.mxu0 %v5213
    %5281 = vmatpush.bf16.msra.mxu0 %v5212
    %5282 = vmatpush.bf16.msra.mxu0 %v5211
    %5283 = vmatmul.bf16.gmra.mxu0 %v5001
    %v5284 = vpop.f32.mrf.mxu0
    %v5285 = vadd.f32 %v5081, %v5284
    %v5286 = vpop.f32.mrf.mxu0
    %v5287 = vadd.f32 %v5081, %v5286
    %5288 = vmatmul.bf16.gmra.mxu0 %v5005
    %v5289 = vpop.f32.mrf.mxu0
    %v5290 = vadd.f32 %v5081, %v5289
    %v5291 = vpop.f32.mrf.mxu0
    %v5292 = vadd.f32 %v5081, %v5291
    %5293 = vmatmul.bf16.gmra.mxu0 %v5009
    %v5294 = vpop.f32.mrf.mxu0
    %v5295 = vadd.f32 %v5081, %v5294
    %v5296 = vpop.f32.mrf.mxu0
    %v5297 = vadd.f32 %v5081, %v5296
    %5298 = vdwg.mxu0
    %5299 = vmatpush.bf16.msra.mxu0 %v5226
    %5300 = vmatpush.bf16.msra.mxu0 %v5225
    %5301 = vmatpush.bf16.msra.mxu0 %v5224
    %5302 = vmatpush.bf16.msra.mxu0 %v5223
    %5303 = vmatpush.bf16.msra.mxu0 %v5222
    %5304 = vmatpush.bf16.msra.mxu0 %v5221
    %5305 = vmatpush.bf16.msra.mxu0 %v5220
    %5306 = vmatpush.bf16.msra.mxu0 %v5219
    %5307 = vmatmul.bf16.gmra.mxu0 %v5002
    %v5308 = vpop.f32.mrf.mxu0
    %v5309 = vadd.f32 %v5285, %v5308
    %v5310 = vpop.f32.mrf.mxu0
    %v5311 = vadd.f32 %v5287, %v5310
    %5312 = vmatmul.bf16.gmra.mxu0 %v5006
    %v5313 = vpop.f32.mrf.mxu0
    %v5314 = vadd.f32 %v5290, %v5313
    %v5315 = vpop.f32.mrf.mxu0
    %v5316 = vadd.f32 %v5292, %v5315
    %5317 = vmatmul.bf16.gmra.mxu0 %v5010
    %v5318 = vpop.f32.mrf.mxu0
    %v5319 = vadd.f32 %v5295, %v5318
    %v5320 = vpop.f32.mrf.mxu0
    %v5321 = vadd.f32 %v5297, %v5320
    %5322 = vdwg.mxu0
    %5323 = vmatpush.bf16.msra.mxu0 %v5234
    %5324 = vmatpush.bf16.msra.mxu0 %v5233
    %5325 = vmatpush.bf16.msra.mxu0 %v5232
    %5326 = vmatpush.bf16.msra.mxu0 %v5231
    %5327 = vmatpush.bf16.msra.mxu0 %v5230
    %5328 = vmatpush.bf16.msra.mxu0 %v5229
    %5329 = vmatpush.bf16.msra.mxu0 %v5228
    %5330 = vmatpush.bf16.msra.mxu0 %v5227
    %5331 = vmatmul.bf16.gmra.mxu0 %v5003
    %v5332 = vpop.f32.mrf.mxu0
    %v5333 = vadd.f32 %v5309, %v5332
    %v5334 = vpop.f32.mrf.mxu0
    %v5335 = vadd.f32 %v5311, %v5334
    %5336 = vmatmul.bf16.gmra.mxu0 %v5007
    %v5337 = vpop.f32.mrf.mxu0
    %v5338 = vadd.f32 %v5314, %v5337
    %v5339 = vpop.f32.mrf.mxu0
    %v5340 = vadd.f32 %v5316, %v5339
    %5341 = vmatmul.bf16.gmra.mxu0 %v5011
    %v5342 = vpop.f32.mrf.mxu0
    %v5343 = vadd.f32 %v5319, %v5342
    %v5344 = vpop.f32.mrf.mxu0
    %v5345 = vadd.f32 %v5321, %v5344
    %5346 = vdwg.mxu0
    %5347 = vmatpush.bf16.msra.mxu0 %v5242
    %5348 = vmatpush.bf16.msra.mxu0 %v5241
    %5349 = vmatpush.bf16.msra.mxu0 %v5240
    %5350 = vmatpush.bf16.msra.mxu0 %v5239
    %5351 = vmatpush.bf16.msra.mxu0 %v5238
    %5352 = vmatpush.bf16.msra.mxu0 %v5237
    %5353 = vmatpush.bf16.msra.mxu0 %v5236
    %5354 = vmatpush.bf16.msra.mxu0 %v5235
    %5355 = vmatmul.bf16.gmra.mxu0 %v5004
    %v5356 = vpop.f32.mrf.mxu0
    %v5357 = vadd.f32 %v5333, %v5356
    %v5358 = vpop.f32.mrf.mxu0
    %v5359 = vadd.f32 %v5335, %v5358
    %5360 = vmatmul.bf16.gmra.mxu0 %v5008
    %v5361 = vpop.f32.mrf.mxu0
    %v5362 = vadd.f32 %v5338, %v5361
    %v5363 = vpop.f32.mrf.mxu0
    %v5364 = vadd.f32 %v5340, %v5363
    %5365 = vmatmul.bf16.gmra.mxu0 %v5012
    %v5366 = vpop.f32.mrf.mxu0
    %v5367 = vadd.f32 %v5343, %v5366
    %v5368 = vpop.f32.mrf.mxu0
    %v5369 = vadd.f32 %v5345, %v5368
    %5370 = vdwg.mxu0
    %v5371 = vadd.f32 %v4334, %v5357
    %v5372 = vadd.f32 %v4335, %v5359
    %v5373 = vadd.f32 %v4336, %v5362
    %v5374 = vadd.f32 %v4337, %v5364
    %v5375 = vadd.f32 %v4338, %v5367
    %v5376 = vadd.f32 %v4339, %v5369
    %v5377 = vld [vmem:[%s18] sm:$0x1]
    %v5378 = vld [vmem:[%s19] sm:$0x1]
    %5379 = vadd.xlane.f32.xlu0 %v5371
    %v5380 = vpop.xlane.xlu0 %5379
    %5381 = vadd.xlane.f32.xlu0 %v5372
    %v5382 = vpop.xlane.xlu0 %5381
    %5383 = vadd.xlane.f32.xlu0 %v5373
    %v5384 = vpop.xlane.xlu0 %5383
    %5385 = vadd.xlane.f32.xlu0 %v5374
    %v5386 = vpop.xlane.xlu0 %5385
    %5387 = vadd.xlane.f32.xlu0 %v5375
    %v5388 = vpop.xlane.xlu0 %5387
    %5389 = vadd.xlane.f32.xlu0 %v5376
    %v5390 = vpop.xlane.xlu0 %5389
    %v5391 = vmul.f32 %v5380, %v377
    %v5392 = vmul.f32 %v5382, %v377
    %v5393 = vmul.f32 %v5384, %v377
    %v5394 = vmul.f32 %v5386, %v377
    %v5395 = vmul.f32 %v5388, %v377
    %v5396 = vmul.f32 %v5390, %v377
    %v5397 = vsub.f32 %v5371, %v5391
    %v5398 = vsub.f32 %v5372, %v5392
    %v5399 = vsub.f32 %v5373, %v5393
    %v5400 = vsub.f32 %v5374, %v5394
    %v5401 = vsub.f32 %v5375, %v5395
    %v5402 = vsub.f32 %v5376, %v5396
    %v5403 = vmul.f32 %v5397, %v5397
    %v5404 = vmul.f32 %v5398, %v5398
    %v5405 = vmul.f32 %v5399, %v5399
    %v5406 = vmul.f32 %v5400, %v5400
    %v5407 = vmul.f32 %v5401, %v5401
    %v5408 = vmul.f32 %v5402, %v5402
    %5409 = vadd.xlane.f32.xlu0 %v5403
    %v5410 = vpop.xlane.xlu0 %5409
    %5411 = vadd.xlane.f32.xlu0 %v5404
    %v5412 = vpop.xlane.xlu0 %5411
    %5413 = vadd.xlane.f32.xlu0 %v5405
    %v5414 = vpop.xlane.xlu0 %5413
    %5415 = vadd.xlane.f32.xlu0 %v5406
    %v5416 = vpop.xlane.xlu0 %5415
    %5417 = vadd.xlane.f32.xlu0 %v5407
    %v5418 = vpop.xlane.xlu0 %5417
    %5419 = vadd.xlane.f32.xlu0 %v5408
    %v5420 = vpop.xlane.xlu0 %5419
    %v5421 = vmul.f32 %v5410, %v377
    %v5422 = vmul.f32 %v5412, %v377
    %v5423 = vmul.f32 %v5414, %v377
    %v5424 = vmul.f32 %v5416, %v377
    %v5425 = vmul.f32 %v5418, %v377
    %v5426 = vmul.f32 %v5420, %v377
    %v5427 = vadd.f32 %v5421, 1e-06
    %v5428 = vadd.f32 %v5422, 1e-06
    %v5429 = vadd.f32 %v5423, 1e-06
    %v5430 = vadd.f32 %v5424, 1e-06
    %v5431 = vadd.f32 %v5425, 1e-06
    %v5432 = vadd.f32 %v5426, 1e-06
    %v5433 = vrsqrt.pop %v5427
    %v5434 = vmul.f32 %v5433, %v5427
    %v5435 = vmul.f32 %v5434, %v5433
    %v5436 = vmul.f32 0.5, %v5435
    %v5437 = vsub.f32 1.5, %v5436
    %v5438 = vmul.f32 %v5433, %v5437
    %vm5439 = vweird.f32 %v5427
    %vm5440 = vweird.f32 %v5433
    %vm5441 = vmor %vm5439, %vm5440
    %v5442 = vsel %vm5441, %v5433, %v5438
    %v5443 = vrsqrt.pop %v5428
    %v5444 = vmul.f32 %v5443, %v5428
    %v5445 = vmul.f32 %v5444, %v5443
    %v5446 = vmul.f32 0.5, %v5445
    %v5447 = vsub.f32 1.5, %v5446
    %v5448 = vmul.f32 %v5443, %v5447
    %vm5449 = vweird.f32 %v5428
    %vm5450 = vweird.f32 %v5443
    %vm5451 = vmor %vm5449, %vm5450
    %v5452 = vsel %vm5451, %v5443, %v5448
    %v5453 = vrsqrt.pop %v5429
    %v5454 = vmul.f32 %v5453, %v5429
    %v5455 = vmul.f32 %v5454, %v5453
    %v5456 = vmul.f32 0.5, %v5455
    %v5457 = vsub.f32 1.5, %v5456
    %v5458 = vmul.f32 %v5453, %v5457
    %vm5459 = vweird.f32 %v5429
    %vm5460 = vweird.f32 %v5453
    %vm5461 = vmor %vm5459, %vm5460
    %v5462 = vsel %vm5461, %v5453, %v5458
    %v5463 = vrsqrt.pop %v5430
    %v5464 = vmul.f32 %v5463, %v5430
    %v5465 = vmul.f32 %v5464, %v5463
    %v5466 = vmul.f32 0.5, %v5465
    %v5467 = vsub.f32 1.5, %v5466
    %v5468 = vmul.f32 %v5463, %v5467
    %vm5469 = vweird.f32 %v5430
    %vm5470 = vweird.f32 %v5463
    %vm5471 = vmor %vm5469, %vm5470
    %v5472 = vsel %vm5471, %v5463, %v5468
    %v5473 = vrsqrt.pop %v5431
    %v5474 = vmul.f32 %v5473, %v5431
    %v5475 = vmul.f32 %v5474, %v5473
    %v5476 = vmul.f32 0.5, %v5475
    %v5477 = vsub.f32 1.5, %v5476
    %v5478 = vmul.f32 %v5473, %v5477
    %vm5479 = vweird.f32 %v5431
    %vm5480 = vweird.f32 %v5473
    %vm5481 = vmor %vm5479, %vm5480
    %v5482 = vsel %vm5481, %v5473, %v5478
    %v5483 = vrsqrt.pop %v5432
    %v5484 = vmul.f32 %v5483, %v5432
    %v5485 = vmul.f32 %v5484, %v5483
    %v5486 = vmul.f32 0.5, %v5485
    %v5487 = vsub.f32 1.5, %v5486
    %v5488 = vmul.f32 %v5483, %v5487
    %vm5489 = vweird.f32 %v5432
    %vm5490 = vweird.f32 %v5483
    %vm5491 = vmor %vm5489, %vm5490
    %v5492 = vsel %vm5491, %v5483, %v5488
    %v5493 = vmul.f32 %v5397, %v5442
    %v5494 = vmul.f32 %v5398, %v5452
    %v5495 = vmul.f32 %v5399, %v5462
    %v5496 = vmul.f32 %v5400, %v5472
    %v5497 = vmul.f32 %v5401, %v5482
    %v5498 = vmul.f32 %v5402, %v5492
    %v5500 = vperm.slane %v5377, 0
    %v5502 = vmul.f32 %v5493, %v5500
    %v5503 = vmul.f32 %v5494, %v5500
    %v5504 = vmul.f32 %v5495, %v5500
    %v5505 = vmul.f32 %v5496, %v5500
    %v5506 = vmul.f32 %v5497, %v5500
    %v5507 = vmul.f32 %v5498, %v5500
    %v5509 = vperm.slane %v5378, 0
    %v5511 = vadd.f32 %v5502, %v5509
    %v5512 = vadd.f32 %v5503, %v5509
    %v5513 = vadd.f32 %v5504, %v5509
    %v5514 = vadd.f32 %v5505, %v5509
    %v5515 = vadd.f32 %v5506, %v5509
    %v5516 = vadd.f32 %v5507, %v5509
    %v5517 = vadd.f32 %v5511, %v5512
    %vm5518 = vcmask 1040384
    %v5519 = vsel %vm5518, %v5513, 0.0
    %v5520 = vadd.f32 %v5517, %v5519
    %v5521 = vrot.slane %v5520, 4
    %v5522 = vadd.f32 %v5520, %v5521
    %v5523 = vrot.slane %v5522, 2
    %v5524 = vadd.f32 %v5522, %v5523
    %v5525 = vrot.slane %v5524, 1
    %v5526 = vadd.f32 %v5524, %v5525
    %v5527 = vadd.f32 %v5514, %v5515
    %v5528 = vsel %vm5518, %v5516, 0.0
    %v5529 = vadd.f32 %v5527, %v5528
    %v5530 = vrot.slane %v5529, 4
    %v5531 = vadd.f32 %v5529, %v5530
    %v5532 = vrot.slane %v5531, 2
    %v5533 = vadd.f32 %v5531, %v5532
    %v5534 = vrot.slane %v5533, 1
    %v5535 = vadd.f32 %v5533, %v5534
    %v5536 = vsel %vm5518, %v5526, %v5535
    %v5537 = vmul.f32 %v5536, 0.05882353
    %v5538 = vpack.c.bf16 %v5537, %v5537
    %v5539 = vld [vmem:[%s20] sm:$0xf]
    %v5540 = vld [vmem:[%s20 + $0x4] sm:$0xf]
    %v5541 = vld [vmem:[%s20 + $0x8] sm:$0xf]
    %v5542 = vld [vmem:[%s20 + $0xc] sm:$0xf]
    %v5543 = vld [vmem:[%s20 + $0x10] sm:$0xf]
    %v5544 = vld [vmem:[%s20 + $0x14] sm:$0xf]
    %v5545 = vld [vmem:[%s20 + $0x18] sm:$0xf]
    %v5546 = vld [vmem:[%s20 + $0x1c] sm:$0xf]
    %v5547 = vld [vmem:[%s20 + $0x20] sm:$0xf]
    %v5548 = vld [vmem:[%s20 + $0x24] sm:$0xf]
    %v5549 = vld [vmem:[%s20 + $0x28] sm:$0xf]
    %v5550 = vld [vmem:[%s20 + $0x2c] sm:$0xf]
    %v5551 = vld [vmem:[%s20 + $0x30] sm:$0xf]
    %v5552 = vld [vmem:[%s20 + $0x34] sm:$0xf]
    %v5553 = vld [vmem:[%s20 + $0x38] sm:$0xf]
    %v5554 = vld [vmem:[%s20 + $0x3c] sm:$0xf]
    %v5555 = vld [vmem:[%s21] sm:$0x1]
    %v5557 = vperm.slane %v5555, 0
    %v5575 = vunpack.c.l.b16 %v5539
    %v5576 = vunpack.c.l.b16 %v5540
    %v5577 = vunpack.c.l.b16 %v5541
    %v5578 = vunpack.c.l.b16 %v5542
    %v5579 = vunpack.c.l.b16 %v5543
    %v5580 = vunpack.c.l.b16 %v5544
    %v5581 = vunpack.c.l.b16 %v5545
    %v5582 = vunpack.c.l.b16 %v5546
    %v5583 = vunpack.c.l.b16 %v5547
    %v5584 = vunpack.c.l.b16 %v5548
    %v5585 = vunpack.c.l.b16 %v5549
    %v5586 = vunpack.c.l.b16 %v5550
    %v5587 = vunpack.c.l.b16 %v5551
    %v5588 = vunpack.c.l.b16 %v5552
    %v5589 = vunpack.c.l.b16 %v5553
    %v5590 = vunpack.c.l.b16 %v5554
    %v5591 = vpack.c.b16 %v5576, %v5575
    %v5592 = vpack.c.b16 %v5578, %v5577
    %v5593 = vpack.c.b16 %v5580, %v5579
    %v5594 = vpack.c.b16 %v5582, %v5581
    %v5595 = vpack.c.b16 %v5584, %v5583
    %v5596 = vpack.c.b16 %v5586, %v5585
    %v5597 = vpack.c.b16 %v5588, %v5587
    %v5598 = vpack.c.b16 %v5590, %v5589
    %5607 = vmatpush.bf16.msra.mxu0 %v5598
    %5608 = vmatpush.bf16.msra.mxu0 %v5597
    %5609 = vmatpush.bf16.msra.mxu0 %v5596
    %5610 = vmatpush.bf16.msra.mxu0 %v5595
    %5611 = vmatpush.bf16.msra.mxu0 %v5594
    %5612 = vmatpush.bf16.msra.mxu0 %v5593
    %5613 = vmatpush.bf16.msra.mxu0 %v5592
    %5614 = vmatpush.bf16.msra.mxu0 %v5591
    %5615 = vmatmul.bf16.gmra.mxu0 %v5538
    %v5616 = vpop.f32.mrf.mxu0
    %v5617 = vadd.f32 %v5557, %v5616
    %v5618 = vpop.f32.mrf.mxu0
    %5619 = vdwg.mxu0
    %vm5620 = vcmask 58368
    %5621 = vst.msk [vmem:[#allocation23] sm:$0x3] %vm5620, %v5617
    // Predicated region
    $region138: #{tpu_custom_call.1} parent=1 // pred_check
      _
    $region139: #{tpu_custom_call.1} parent=1 // pred_check_branch
      %5623 = sbr.rel (0) target = $region141
    $region140: #{tpu_custom_call.1} parent=1 // pred_region
      %5625 = vsyncadd [#allocation5], 0
      %s5627 = sshll.u32 [#allocation23], 4
      %s5628 = int_to_ptr.vmem [resolvable:$true] %s5627
      %s5629 = sshll.u32 %s22, 4
      %s5630 = int_to_ptr.hbm [resolvable:$true] %s5629
      %5632 = dma.vmem_to_hbm [thread:$0]  %s5628, 32, %s5630, [#allocation5]
    $region141: #{tpu_custom_call.1} parent=1 // pred_fallthru
      _
    // Predicated region
    $region142: #{tpu_custom_call.1} parent=1 // pred_check
      _
    $region143: #{tpu_custom_call.1} parent=1 // pred_check_branch
      %5634 = sbr.rel (0) target = $region145
    $region144: #{tpu_custom_call.1} parent=1 // pred_region
      %5636 = dma.done [#allocation5], 32
    $region145: #{tpu_custom_call.1} parent=1 // pred_fallthru
      _
    %5637 = vsyncpa [#allocation4], 1
    %5638 = vsyncpa [#allocation7], 1
    %5639 = vsyncpa [#allocation10], 1
    %5640 = vsyncpa [#allocation13], 1
    %5641 = vsyncpa [#allocation16], 1
    %5642 = vsyncpa [#allocation19], 1
    %5643 = vsyncpa [#allocation22], 1
    %5644 = vsyncpa [#allocation5], 1

</llo_original>
